<compile_context>
chip_gen: v7x
topology: tpu7x:2x2x1
jax: 0.10.0
libtpu: 0.0.40
codegen_flags: <defaults>
</compile_context>

<pallas_src>
import jax
import jax.numpy as jnp
from jax import lax
from jax.experimental import pallas as pl
from jax.experimental.pallas import tpu as pltpu


def _round_up(x, m):
    return ((x + m - 1) // m) * m


CHUNK = 8   # decode steps per grid invocation (sublane-aligned output blocks)


# ---------------------------------------------------------------------------
# Kernel factory: one grid step == one chunk of C decode steps.
# ---------------------------------------------------------------------------
def _make_decoder_kernel(T, C, Hp):
    """Kernel body with static true length T, chunk size C, padded hidden Hp."""

    def kernel(toks_ref,     # (Tp,) int32   token ids (SMEM scalar prefetch)
               emb_ref,      # (Vp, Hp)      embedding table (VMEM-resident)
               h0_ref,       # (1, Hp)       initial hidden
               wx_ref,       # (Hp, 3Hp)     input->gates weights, cols [r|z|n]
               wh_ref,       # (Hp, 3Hp)     hidden->gates weights, cols [r|z|n]
               bx_ref,       # (1, 3Hp)      input-side gate bias
               bh_ref,       # (1, 3Hp)      hidden-side gate bias
               wout_ref,     # (Hp, Vp)      output projection
               bout_ref,     # (1, Vp)       output bias (-1e30 on padded lanes)
               logp_ref,     # (C, Vp) out   chunk of per-step log-probs
               hout_ref):    # (1, Hp) out   carried / final hidden (resident)
        chunk = pl.program_id(0)

        @pl.when(chunk == 0)
        def _():
            hout_ref[...] = h0_ref[...]

        base = chunk * C

        def step(i, h):
            t = base + i
            tok = toks_ref[t]
            # relu(embedding(token)) -- in-VMEM row gather.
            x = jnp.maximum(emb_ref[pl.ds(tok, 1), :], 0.0)        # (1, Hp)

            # Split gate matmuls (two native K=128 MXU passes, no concat copy).
            gx = jnp.dot(x, wx_ref[...], preferred_element_type=jnp.float32) + bx_ref[...]
            gh = jnp.dot(h, wh_ref[...], preferred_element_type=jnp.float32) + bh_ref[...]

            r = jax.nn.sigmoid(gx[:, 0:Hp] + gh[:, 0:Hp])
            z = jax.nn.sigmoid(gx[:, Hp:2 * Hp] + gh[:, Hp:2 * Hp])
            n = jnp.tanh(gx[:, 2 * Hp:3 * Hp] + r * gh[:, 2 * Hp:3 * Hp])
            h_new = (1.0 - z) * n + z * h

            # Linear + LogSoftmax(dim=1).  Padded logit lanes carry a -1e30
            # bias so they contribute nothing to the log-sum-exp.
            logits = jnp.dot(h_new, wout_ref[...],
                             preferred_element_type=jnp.float32) + bout_ref[...]
            m = jnp.max(logits, axis=-1, keepdims=True)
            lse = m + jnp.log(jnp.sum(jnp.exp(logits - m), axis=-1, keepdims=True))
            logp_ref[pl.ds(i, 1), :] = logits - lse

            if T % C != 0:
                # Do not advance the hidden state on padded (t >= T) steps.
                h_new = jnp.where(t < T, h_new, h)
            return h_new

        h_final = lax.fori_loop(0, C, step, hout_ref[...], unroll=True)
        hout_ref[...] = h_final

    return kernel


# ---------------------------------------------------------------------------
# Parameter construction / packing
# ---------------------------------------------------------------------------
def make_raw_params(key, hidden_size, output_size):
    """Raw (unpadded) parameters in the PyTorch-equivalent transposed layout."""
    kE, k1, k2, k3, k4, k5, k6 = jax.random.split(key, 7)
    bound = 1.0 / jnp.sqrt(hidden_size)
    u = lambda k, shape: jax.random.uniform(k, shape, jnp.float32, -bound, bound)
    return {
        "embedding": jax.random.normal(kE, (output_size, hidden_size), jnp.float32),
        # PyTorch GRU stores (3H, H); we keep the transposed (H, 3H), gate order [r|z|n].
        "w_ih_t": u(k1, (hidden_size, 3 * hidden_size)),
        "w_hh_t": u(k2, (hidden_size, 3 * hidden_size)),
        "b_ih": u(k3, (1, 3 * hidden_size)),
        "b_hh": u(k4, (1, 3 * hidden_size)),
        # PyTorch Linear stores (V, H); we keep the transposed (H, V).
        "w_out_t": u(k5, (hidden_size, output_size)),
        "b_out": u(k6, (1, output_size)),
    }


def pack_params(raw):
    """Pad every feature dim to 128 lanes; gate slabs go to [r|z|n] column blocks."""
    emb = raw["embedding"]
    V, H = emb.shape
    Hp = _round_up(H, 128)
    Vp = _round_up(V, 128)

    def pad_gates_w(w):   # (H, 3H) -> (Hp, 3Hp) with each gate in its own Hp slab
        out = jnp.zeros((Hp, 3 * Hp), jnp.float32)
        for g in range(3):
            out = out.at[0:H, g * Hp:g * Hp + H].set(w[:, g * H:(g + 1) * H])
        return out

    def pad_gates_b(b):   # (1, 3H) -> (1, 3Hp)
        out = jnp.zeros((1, 3 * Hp), jnp.float32)
        for g in range(3):
            out = out.at[:, g * Hp:g * Hp + H].set(b[:, g * H:(g + 1) * H])
        return out

    emb_p = jnp.zeros((Vp, Hp), jnp.float32).at[0:V, 0:H].set(emb)
    wout_p = jnp.zeros((Hp, Vp), jnp.float32).at[0:H, 0:V].set(raw["w_out_t"])
    # Padded logit lanes get a huge negative bias -> exp underflows to 0.
    bout_p = jnp.full((1, Vp), -1e30, jnp.float32).at[:, 0:V].set(raw["b_out"])

    return {"emb_p": emb_p,
            "wx_p": pad_gates_w(raw["w_ih_t"]), "wh_p": pad_gates_w(raw["w_hh_t"]),
            "bx_p": pad_gates_b(raw["b_ih"]), "bh_p": pad_gates_b(raw["b_hh"]),
            "wout_p": wout_p, "bout_p": bout_p,
            "H": H, "V": V, "Hp": Hp, "Vp": Vp}


# ---------------------------------------------------------------------------
# Wrappers
# ---------------------------------------------------------------------------
def rnn_decoder_decode(tokens, hidden, packed):
    """Teacher-forced decode of the given tokens in ONE pallas_call.

    tokens: int (T,); hidden: f32 (1, 1, H).
    Returns (log_probs (T, V), new_hidden (1, 1, H)).
    """
    H, V, Hp, Vp = packed["H"], packed["V"], packed["Hp"], packed["Vp"]
    T = int(tokens.shape[0])
    C = CHUNK
    Tp = _round_up(T, C)
    num_chunks = Tp // C

    toks_p = jnp.zeros((Tp,), jnp.int32).at[:T].set(tokens.astype(jnp.int32))
    h0_p = jnp.zeros((1, Hp), jnp.float32).at[:, 0:H].set(hidden.reshape(1, H))

    kernel = _make_decoder_kernel(T, C, Hp)

    grid_spec = pltpu.PrefetchScalarGridSpec(
        num_scalar_prefetch=1,
        grid=(num_chunks,),
        in_specs=[
            # All inputs have constant block indices -> VMEM-resident across all
            # chunks (each fetched from HBM exactly once).
            pl.BlockSpec((Vp, Hp), lambda c, toks: (0, 0)),       # embedding table
            pl.BlockSpec((1, Hp), lambda c, toks: (0, 0)),        # h0
            pl.BlockSpec((Hp, 3 * Hp), lambda c, toks: (0, 0)),   # Wx
            pl.BlockSpec((Hp, 3 * Hp), lambda c, toks: (0, 0)),   # Wh
            pl.BlockSpec((1, 3 * Hp), lambda c, toks: (0, 0)),    # bx
            pl.BlockSpec((1, 3 * Hp), lambda c, toks: (0, 0)),    # bh
            pl.BlockSpec((Hp, Vp), lambda c, toks: (0, 0)),       # Wout
            pl.BlockSpec((1, Vp), lambda c, toks: (0, 0)),        # bout
        ],
        out_specs=[
            pl.BlockSpec((C, Vp), lambda c, toks: (c, 0)),        # (8,128)-aligned logp chunk
            pl.BlockSpec((1, Hp), lambda c, toks: (0, 0)),        # carried / final hidden
        ],
    )

    flops_per_step = 2 * Hp * (3 * Hp) * 2 + 2 * Hp * Vp
    weight_bytes = 4 * (Vp * Hp + 2 * Hp * 3 * Hp + Hp * Vp + 2 * 3 * Hp + Vp + Hp)
    cost = pl.CostEstimate(
        flops=Tp * flops_per_step,
        transcendentals=Tp * (3 * Hp + Vp),
        bytes_accessed=weight_bytes + Tp * 4 * Vp + Tp * 4,
    )

    logp_p, h_p = pl.pallas_call(
        kernel,
        grid_spec=grid_spec,
        out_shape=(
            jax.ShapeDtypeStruct((Tp, Vp), jnp.float32),
            jax.ShapeDtypeStruct((1, Hp), jnp.float32),
        ),
        compiler_params=pltpu.CompilerParams(
            dimension_semantics=("arbitrary",)),   # hidden state carried chunk->chunk
        cost_estimate=cost,
    )(toks_p, packed["emb_p"], h0_p, packed["wx_p"], packed["wh_p"],
      packed["bx_p"], packed["bh_p"], packed["wout_p"], packed["bout_p"])

    return logp_p[:T, :V], h_p[:, :H].reshape(1, 1, H)


def rnn_decoder_forward(token_idx, hidden, packed):
    """Exact equivalent of rnnDecoder.forward: single step (T == 1)."""
    logp, h_new = rnn_decoder_decode(token_idx, hidden, packed)
    return logp, h_new


# ---------------------------------------------------------------------------
# Pure-JAX reference (PyTorch GRU semantics), for correctness checks.
# ---------------------------------------------------------------------------
def _reference_decode(tokens, hidden, raw):
    H = raw["w_ih_t"].shape[0]
    h = hidden.reshape(1, H)
    outs = []
    for t in range(tokens.shape[0]):
        x = jnp.maximum(raw["embedding"][tokens[t]][None, :], 0.0)
        gi = x @ raw["w_ih_t"] + raw["b_ih"]
        gh = h @ raw["w_hh_t"] + raw["b_hh"]
        r = jax.nn.sigmoid(gi[:, :H] + gh[:, :H])
        z = jax.nn.sigmoid(gi[:, H:2 * H] + gh[:, H:2 * H])
        n = jnp.tanh(gi[:, 2 * H:] + r * gh[:, 2 * H:])
        h = (1.0 - z) * n + z * h
        logits = h @ raw["w_out_t"] + raw["b_out"]
        outs.append(jax.nn.log_softmax(logits, axis=1))
    return jnp.concatenate(outs, axis=0), h.reshape(1, 1, H)


if __name__ == "__main__":
    hidden_size = 32
    output_size = 64   # vocabulary size

    key = jax.random.PRNGKey(0)
    kp, kt1, kt2 = jax.random.split(key, 3)
    raw = make_raw_params(kp, hidden_size, output_size)
    packed = pack_params(raw)

    hidden0 = jnp.zeros((1, 1, hidden_size), jnp.float32)   # initHidden()

    # --- single step: exact semantics of rnnDecoder.forward ---
    token1 = jax.random.randint(kt1, (1,), 0, output_size, dtype=jnp.int32)
    logp1, h1 = rnn_decoder_forward(token1, hidden0, packed)
    logp1 = jax.block_until_ready(logp1)
    h1 = jax.block_until_ready(h1)

    ref_logp1, ref_h1 = _reference_decode(token1, hidden0, raw)
    assert logp1.shape == (1, output_size) and h1.shape == (1, 1, hidden_size)
    assert jnp.allclose(logp1, ref_logp1, atol=1e-5, rtol=1e-5)
    assert jnp.allclose(h1, ref_h1, atol=1e-5, rtol=1e-5)

    # --- multi-step decode (chunked time loop; T not a multiple of 8 on purpose) ---
    T = 11
    tokensT = jax.random.randint(kt2, (T,), 0, output_size, dtype=jnp.int32)
    logpT, hT = rnn_decoder_decode(tokensT, hidden0, packed)
    logpT = jax.block_until_ready(logpT)
    hT = jax.block_until_ready(hT)

    ref_logpT, ref_hT = _reference_decode(tokensT, hidden0, raw)
    assert logpT.shape == (T, output_size) and hT.shape == (1, 1, hidden_size)
    assert jnp.allclose(logpT, ref_logpT, atol=1e-5, rtol=1e-5)
    assert jnp.allclose(hT, ref_hT, atol=1e-5, rtol=1e-5)

    print("KERNEL_OK")
</pallas_src>

<mosaic_0001>
module attributes {stable_mosaic.version = 11 : i64} {
  func.func @kernel(%arg0: i32, %arg1: memref<8xi32, #tpu.memory_space<smem>>, %arg2: memref<128x128xf32, #tpu.memory_space<vmem>>, %arg3: memref<1x128xf32, #tpu.memory_space<vmem>>, %arg4: memref<128x384xf32, #tpu.memory_space<vmem>>, %arg5: memref<128x384xf32, #tpu.memory_space<vmem>>, %arg6: memref<1x384xf32, #tpu.memory_space<vmem>>, %arg7: memref<1x384xf32, #tpu.memory_space<vmem>>, %arg8: memref<128x128xf32, #tpu.memory_space<vmem>>, %arg9: memref<1x128xf32, #tpu.memory_space<vmem>>, %arg10: memref<8x128xf32, #tpu.memory_space<vmem>>, %arg11: memref<1x128xf32, #tpu.memory_space<vmem>>) attributes {dimension_semantics = [#tpu.dimension_semantics<arbitrary>], iteration_bounds = array<i64: 1>, scalar_prefetch = 1 : i64, scratch_operands = 0 : i64, tpu.core_type = #tpu.core_type<tc>, window_params = [{pipeline_mode = #tpu.pipeline_mode<synchronous>, transform_indices = @transform_0, window_bounds = array<i64: 128, 128>}, {pipeline_mode = #tpu.pipeline_mode<synchronous>, transform_indices = @transform_1, window_bounds = array<i64: 1, 128>}, {pipeline_mode = #tpu.pipeline_mode<synchronous>, transform_indices = @transform_2, window_bounds = array<i64: 128, 384>}, {pipeline_mode = #tpu.pipeline_mode<synchronous>, transform_indices = @transform_3, window_bounds = array<i64: 128, 384>}, {pipeline_mode = #tpu.pipeline_mode<synchronous>, transform_indices = @transform_4, window_bounds = array<i64: 1, 384>}, {pipeline_mode = #tpu.pipeline_mode<synchronous>, transform_indices = @transform_5, window_bounds = array<i64: 1, 384>}, {pipeline_mode = #tpu.pipeline_mode<synchronous>, transform_indices = @transform_6, window_bounds = array<i64: 128, 128>}, {pipeline_mode = #tpu.pipeline_mode<synchronous>, transform_indices = @transform_7, window_bounds = array<i64: 1, 128>}, {transform_indices = @transform_8, window_bounds = array<i64: 8, 128>}, {pipeline_mode = #tpu.pipeline_mode<synchronous>, transform_indices = @transform_9, window_bounds = array<i64: 1, 128>}]} {
    %c0_i32 = arith.constant 0 : i32
    %0 = arith.cmpi eq, %arg0, %c0_i32 : i32
    %1 = arith.extui %0 : i1 to i32
    %c0_i32_0 = arith.constant 0 : i32
    %2 = arith.cmpi ne, %1, %c0_i32_0 : i32
    scf.if %2 {
      %c0_197 = arith.constant 0 : index
      %c0_198 = arith.constant 0 : index
      %486 = vector.load %arg3[%c0_197, %c0_198] : memref<1x128xf32, #tpu.memory_space<vmem>>, vector<1x128xf32>
      %c0_199 = arith.constant 0 : index
      %c0_200 = arith.constant 0 : index
      %487 = vector.load %arg11[%c0_199, %c0_200] : memref<1x128xf32, #tpu.memory_space<vmem>>, vector<1x128xf32>
      tpu.vector_store %arg11[%c0_199, %c0_200], %486 {strides = array<i32>} : memref<1x128xf32, #tpu.memory_space<vmem>>, vector<1x128xf32>,
    } else {
    }
    %c8_i32 = arith.constant 8 : i32
    %3 = arith.muli %arg0, %c8_i32 : i32
    %c0 = arith.constant 0 : index
    %c0_1 = arith.constant 0 : index
    %4 = vector.load %arg11[%c0, %c0_1] : memref<1x128xf32, #tpu.memory_space<vmem>>, vector<1x128xf32>
    %c0_i32_2 = arith.constant 0 : i32
    %5 = arith.addi %3, %c0_i32_2 : i32
    %6 = arith.index_cast %5 : i32 to index
    %7 = memref.load %arg1[%6] : memref<8xi32, #tpu.memory_space<smem>>
    %8 = arith.index_cast %7 : i32 to index
    %c0_3 = arith.constant 0 : index
    %9 = vector.load %arg2[%8, %c0_3] : memref<128x128xf32, #tpu.memory_space<vmem>>, vector<1x128xf32>
    %cst = arith.constant 0.000000e+00 : f32
    %10 = vector.broadcast %cst : f32 to vector<1x128xf32>
    %11 = arith.maximumf %9, %10 : vector<1x128xf32>
    %c0_4 = arith.constant 0 : index
    %c0_5 = arith.constant 0 : index
    %12 = vector.load %arg4[%c0_4, %c0_5] : memref<128x384xf32, #tpu.memory_space<vmem>>, vector<128x384xf32>
    %cst_6 = arith.constant dense<0.000000e+00> : vector<1x384xf32>
    %13 = tpu.matmul %11, %12, %cst_6 {dimension_numbers = #tpu.dot_dimension_numbers<[1], [0], [0], [1], [0, 0, 1, 1], [], []>} : vector<1x128xf32>, vector<128x384xf32>, vector<1x384xf32> -> vector<1x384xf32>
    %c0_7 = arith.constant 0 : index
    %c0_8 = arith.constant 0 : index
    %14 = vector.load %arg6[%c0_7, %c0_8] : memref<1x384xf32, #tpu.memory_space<vmem>>, vector<1x384xf32>
    %15 = arith.addf %13, %14 : vector<1x384xf32>
    %c0_9 = arith.constant 0 : index
    %c0_10 = arith.constant 0 : index
    %16 = vector.load %arg5[%c0_9, %c0_10] : memref<128x384xf32, #tpu.memory_space<vmem>>, vector<128x384xf32>
    %cst_11 = arith.constant dense<0.000000e+00> : vector<1x384xf32>
    %17 = tpu.matmul %4, %16, %cst_11 {dimension_numbers = #tpu.dot_dimension_numbers<[1], [0], [0], [1], [0, 0, 1, 1], [], []>} : vector<1x128xf32>, vector<128x384xf32>, vector<1x384xf32> -> vector<1x384xf32>
    %c0_12 = arith.constant 0 : index
    %c0_13 = arith.constant 0 : index
    %18 = vector.load %arg7[%c0_12, %c0_13] : memref<1x384xf32, #tpu.memory_space<vmem>>, vector<1x384xf32>
    %19 = arith.addf %17, %18 : vector<1x384xf32>
    %20 = vector.extract_strided_slice %15 {offsets = [0, 0], sizes = [1, 128], strides = [1, 1]} : vector<1x384xf32> to vector<1x128xf32>
    %21 = vector.extract_strided_slice %19 {offsets = [0, 0], sizes = [1, 128], strides = [1, 1]} : vector<1x384xf32> to vector<1x128xf32>
    %22 = arith.addf %20, %21 : vector<1x128xf32>
    %23 = arith.negf %22 : vector<1x128xf32>
    %24 = math.exp %23 : vector<1x128xf32>
    %cst_14 = arith.constant 1.000000e+00 : f32
    %25 = vector.broadcast %cst_14 : f32 to vector<1x128xf32>
    %26 = arith.addf %25, %24 : vector<1x128xf32>
    %27 = arith.divf %25, %26 : vector<1x128xf32>
    %28 = vector.extract_strided_slice %15 {offsets = [0, 128], sizes = [1, 128], strides = [1, 1]} : vector<1x384xf32> to vector<1x128xf32>
    %29 = vector.extract_strided_slice %19 {offsets = [0, 128], sizes = [1, 128], strides = [1, 1]} : vector<1x384xf32> to vector<1x128xf32>
    %30 = arith.addf %28, %29 : vector<1x128xf32>
    %31 = arith.negf %30 : vector<1x128xf32>
    %32 = math.exp %31 : vector<1x128xf32>
    %cst_15 = arith.constant 1.000000e+00 : f32
    %33 = vector.broadcast %cst_15 : f32 to vector<1x128xf32>
    %34 = arith.addf %33, %32 : vector<1x128xf32>
    %35 = arith.divf %33, %34 : vector<1x128xf32>
    %36 = vector.extract_strided_slice %15 {offsets = [0, 256], sizes = [1, 128], strides = [1, 1]} : vector<1x384xf32> to vector<1x128xf32>
    %37 = vector.extract_strided_slice %19 {offsets = [0, 256], sizes = [1, 128], strides = [1, 1]} : vector<1x384xf32> to vector<1x128xf32>
    %38 = arith.mulf %27, %37 : vector<1x128xf32>
    %39 = arith.addf %36, %38 : vector<1x128xf32>
    %40 = math.tanh %39 : vector<1x128xf32>
    %cst_16 = arith.constant 1.000000e+00 : f32
    %41 = vector.broadcast %cst_16 : f32 to vector<1x128xf32>
    %42 = arith.subf %41, %35 : vector<1x128xf32>
    %43 = arith.mulf %42, %40 : vector<1x128xf32>
    %44 = arith.mulf %35, %4 : vector<1x128xf32>
    %45 = arith.addf %43, %44 : vector<1x128xf32>
    %c0_17 = arith.constant 0 : index
    %c0_18 = arith.constant 0 : index
    %46 = vector.load %arg8[%c0_17, %c0_18] : memref<128x128xf32, #tpu.memory_space<vmem>>, vector<128x128xf32>
    %cst_19 = arith.constant dense<0.000000e+00> : vector<1x128xf32>
    %47 = tpu.matmul %45, %46, %cst_19 {dimension_numbers = #tpu.dot_dimension_numbers<[1], [0], [0], [1], [0, 0, 1, 1], [], []>} : vector<1x128xf32>, vector<128x128xf32>, vector<1x128xf32> -> vector<1x128xf32>
    %c0_20 = arith.constant 0 : index
    %c0_21 = arith.constant 0 : index
    %48 = vector.load %arg9[%c0_20, %c0_21] : memref<1x128xf32, #tpu.memory_space<vmem>>, vector<1x128xf32>
    %49 = arith.addf %47, %48 : vector<1x128xf32>
    %cst_22 = arith.constant dense<0xFF800000> : vector<1xf32>
    %50 = vector.multi_reduction <maximumf>, %49, %cst_22 [1] : vector<1x128xf32> to vector<1xf32>
    %51 = vector.shape_cast %50 : vector<1xf32> to vector<1x1xf32>
    %52 = vector.broadcast %51 : vector<1x1xf32> to vector<1x128xf32>
    %53 = arith.subf %49, %52 : vector<1x128xf32>
    %54 = math.exp %53 : vector<1x128xf32>
    %cst_23 = arith.constant dense<0.000000e+00> : vector<1xf32>
    %55 = vector.multi_reduction <add>, %54, %cst_23 [1] : vector<1x128xf32> to vector<1xf32>
    %56 = vector.shape_cast %55 : vector<1xf32> to vector<1x1xf32>
    %57 = math.log %56 : vector<1x1xf32>
    %58 = arith.addf %51, %57 : vector<1x1xf32>
    %59 = vector.broadcast %58 : vector<1x1xf32> to vector<1x128xf32>
    %60 = arith.subf %49, %59 : vector<1x128xf32>
    %61 = arith.index_cast %c0_i32_2 : i32 to index
    %c0_24 = arith.constant 0 : index
    %62 = vector.load %arg10[%61, %c0_24] : memref<8x128xf32, #tpu.memory_space<vmem>>, vector<1x128xf32>
    tpu.vector_store %arg10[%61, %c0_24], %60 {strides = array<i32>} : memref<8x128xf32, #tpu.memory_space<vmem>>, vector<1x128xf32>,
    %c1_i32 = arith.constant 1 : i32
    %63 = arith.cmpi slt, %5, %c1_i32 : i32
    %64 = arith.select %63, %45, %4 : vector<1x128xf32>
    %c1_i32_25 = arith.constant 1 : i32
    %65 = arith.addi %3, %c1_i32_25 : i32
    %66 = arith.index_cast %65 : i32 to index
    %67 = memref.load %arg1[%66] : memref<8xi32, #tpu.memory_space<smem>>
    %68 = arith.index_cast %67 : i32 to index
    %c0_26 = arith.constant 0 : index
    %69 = vector.load %arg2[%68, %c0_26] : memref<128x128xf32, #tpu.memory_space<vmem>>, vector<1x128xf32>
    %cst_27 = arith.constant 0.000000e+00 : f32
    %70 = vector.broadcast %cst_27 : f32 to vector<1x128xf32>
    %71 = arith.maximumf %69, %70 : vector<1x128xf32>
    %c0_28 = arith.constant 0 : index
    %c0_29 = arith.constant 0 : index
    %72 = vector.load %arg4[%c0_28, %c0_29] : memref<128x384xf32, #tpu.memory_space<vmem>>, vector<128x384xf32>
    %cst_30 = arith.constant dense<0.000000e+00> : vector<1x384xf32>
    %73 = tpu.matmul %71, %72, %cst_30 {dimension_numbers = #tpu.dot_dimension_numbers<[1], [0], [0], [1], [0, 0, 1, 1], [], []>} : vector<1x128xf32>, vector<128x384xf32>, vector<1x384xf32> -> vector<1x384xf32>
    %c0_31 = arith.constant 0 : index
    %c0_32 = arith.constant 0 : index
    %74 = vector.load %arg6[%c0_31, %c0_32] : memref<1x384xf32, #tpu.memory_space<vmem>>, vector<1x384xf32>
    %75 = arith.addf %73, %74 : vector<1x384xf32>
    %c0_33 = arith.constant 0 : index
    %c0_34 = arith.constant 0 : index
    %76 = vector.load %arg5[%c0_33, %c0_34] : memref<128x384xf32, #tpu.memory_space<vmem>>, vector<128x384xf32>
    %cst_35 = arith.constant dense<0.000000e+00> : vector<1x384xf32>
    %77 = tpu.matmul %64, %76, %cst_35 {dimension_numbers = #tpu.dot_dimension_numbers<[1], [0], [0], [1], [0, 0, 1, 1], [], []>} : vector<1x128xf32>, vector<128x384xf32>, vector<1x384xf32> -> vector<1x384xf32>
    %c0_36 = arith.constant 0 : index
    %c0_37 = arith.constant 0 : index
    %78 = vector.load %arg7[%c0_36, %c0_37] : memref<1x384xf32, #tpu.memory_space<vmem>>, vector<1x384xf32>
    %79 = arith.addf %77, %78 : vector<1x384xf32>
    %80 = vector.extract_strided_slice %75 {offsets = [0, 0], sizes = [1, 128], strides = [1, 1]} : vector<1x384xf32> to vector<1x128xf32>
    %81 = vector.extract_strided_slice %79 {offsets = [0, 0], sizes = [1, 128], strides = [1, 1]} : vector<1x384xf32> to vector<1x128xf32>
    %82 = arith.addf %80, %81 : vector<1x128xf32>
    %83 = arith.negf %82 : vector<1x128xf32>
    %84 = math.exp %83 : vector<1x128xf32>
    %cst_38 = arith.constant 1.000000e+00 : f32
    %85 = vector.broadcast %cst_38 : f32 to vector<1x128xf32>
    %86 = arith.addf %85, %84 : vector<1x128xf32>
    %87 = arith.divf %85, %86 : vector<1x128xf32>
    %88 = vector.extract_strided_slice %75 {offsets = [0, 128], sizes = [1, 128], strides = [1, 1]} : vector<1x384xf32> to vector<1x128xf32>
    %89 = vector.extract_strided_slice %79 {offsets = [0, 128], sizes = [1, 128], strides = [1, 1]} : vector<1x384xf32> to vector<1x128xf32>
    %90 = arith.addf %88, %89 : vector<1x128xf32>
    %91 = arith.negf %90 : vector<1x128xf32>
    %92 = math.exp %91 : vector<1x128xf32>
    %cst_39 = arith.constant 1.000000e+00 : f32
    %93 = vector.broadcast %cst_39 : f32 to vector<1x128xf32>
    %94 = arith.addf %93, %92 : vector<1x128xf32>
    %95 = arith.divf %93, %94 : vector<1x128xf32>
    %96 = vector.extract_strided_slice %75 {offsets = [0, 256], sizes = [1, 128], strides = [1, 1]} : vector<1x384xf32> to vector<1x128xf32>
    %97 = vector.extract_strided_slice %79 {offsets = [0, 256], sizes = [1, 128], strides = [1, 1]} : vector<1x384xf32> to vector<1x128xf32>
    %98 = arith.mulf %87, %97 : vector<1x128xf32>
    %99 = arith.addf %96, %98 : vector<1x128xf32>
    %100 = math.tanh %99 : vector<1x128xf32>
    %cst_40 = arith.constant 1.000000e+00 : f32
    %101 = vector.broadcast %cst_40 : f32 to vector<1x128xf32>
    %102 = arith.subf %101, %95 : vector<1x128xf32>
    %103 = arith.mulf %102, %100 : vector<1x128xf32>
    %104 = arith.mulf %95, %64 : vector<1x128xf32>
    %105 = arith.addf %103, %104 : vector<1x128xf32>
    %c0_41 = arith.constant 0 : index
    %c0_42 = arith.constant 0 : index
    %106 = vector.load %arg8[%c0_41, %c0_42] : memref<128x128xf32, #tpu.memory_space<vmem>>, vector<128x128xf32>
    %cst_43 = arith.constant dense<0.000000e+00> : vector<1x128xf32>
    %107 = tpu.matmul %105, %106, %cst_43 {dimension_numbers = #tpu.dot_dimension_numbers<[1], [0], [0], [1], [0, 0, 1, 1], [], []>} : vector<1x128xf32>, vector<128x128xf32>, vector<1x128xf32> -> vector<1x128xf32>
    %c0_44 = arith.constant 0 : index
    %c0_45 = arith.constant 0 : index
    %108 = vector.load %arg9[%c0_44, %c0_45] : memref<1x128xf32, #tpu.memory_space<vmem>>, vector<1x128xf32>
    %109 = arith.addf %107, %108 : vector<1x128xf32>
    %cst_46 = arith.constant dense<0xFF800000> : vector<1xf32>
    %110 = vector.multi_reduction <maximumf>, %109, %cst_46 [1] : vector<1x128xf32> to vector<1xf32>
    %111 = vector.shape_cast %110 : vector<1xf32> to vector<1x1xf32>
    %112 = vector.broadcast %111 : vector<1x1xf32> to vector<1x128xf32>
    %113 = arith.subf %109, %112 : vector<1x128xf32>
    %114 = math.exp %113 : vector<1x128xf32>
    %cst_47 = arith.constant dense<0.000000e+00> : vector<1xf32>
    %115 = vector.multi_reduction <add>, %114, %cst_47 [1] : vector<1x128xf32> to vector<1xf32>
    %116 = vector.shape_cast %115 : vector<1xf32> to vector<1x1xf32>
    %117 = math.log %116 : vector<1x1xf32>
    %118 = arith.addf %111, %117 : vector<1x1xf32>
    %119 = vector.broadcast %118 : vector<1x1xf32> to vector<1x128xf32>
    %120 = arith.subf %109, %119 : vector<1x128xf32>
    %121 = arith.index_cast %c1_i32_25 : i32 to index
    %c0_48 = arith.constant 0 : index
    %122 = vector.load %arg10[%121, %c0_48] : memref<8x128xf32, #tpu.memory_space<vmem>>, vector<1x128xf32>
    tpu.vector_store %arg10[%121, %c0_48], %120 {strides = array<i32>} : memref<8x128xf32, #tpu.memory_space<vmem>>, vector<1x128xf32>,
    %c1_i32_49 = arith.constant 1 : i32
    %123 = arith.cmpi slt, %65, %c1_i32_49 : i32
    %124 = arith.select %123, %105, %64 : vector<1x128xf32>
    %c2_i32 = arith.constant 2 : i32
    %125 = arith.addi %3, %c2_i32 : i32
    %126 = arith.index_cast %125 : i32 to index
    %127 = memref.load %arg1[%126] : memref<8xi32, #tpu.memory_space<smem>>
    %128 = arith.index_cast %127 : i32 to index
    %c0_50 = arith.constant 0 : index
    %129 = vector.load %arg2[%128, %c0_50] : memref<128x128xf32, #tpu.memory_space<vmem>>, vector<1x128xf32>
    %cst_51 = arith.constant 0.000000e+00 : f32
    %130 = vector.broadcast %cst_51 : f32 to vector<1x128xf32>
    %131 = arith.maximumf %129, %130 : vector<1x128xf32>
    %c0_52 = arith.constant 0 : index
    %c0_53 = arith.constant 0 : index
    %132 = vector.load %arg4[%c0_52, %c0_53] : memref<128x384xf32, #tpu.memory_space<vmem>>, vector<128x384xf32>
    %cst_54 = arith.constant dense<0.000000e+00> : vector<1x384xf32>
    %133 = tpu.matmul %131, %132, %cst_54 {dimension_numbers = #tpu.dot_dimension_numbers<[1], [0], [0], [1], [0, 0, 1, 1], [], []>} : vector<1x128xf32>, vector<128x384xf32>, vector<1x384xf32> -> vector<1x384xf32>
    %c0_55 = arith.constant 0 : index
    %c0_56 = arith.constant 0 : index
    %134 = vector.load %arg6[%c0_55, %c0_56] : memref<1x384xf32, #tpu.memory_space<vmem>>, vector<1x384xf32>
    %135 = arith.addf %133, %134 : vector<1x384xf32>
    %c0_57 = arith.constant 0 : index
    %c0_58 = arith.constant 0 : index
    %136 = vector.load %arg5[%c0_57, %c0_58] : memref<128x384xf32, #tpu.memory_space<vmem>>, vector<128x384xf32>
    %cst_59 = arith.constant dense<0.000000e+00> : vector<1x384xf32>
    %137 = tpu.matmul %124, %136, %cst_59 {dimension_numbers = #tpu.dot_dimension_numbers<[1], [0], [0], [1], [0, 0, 1, 1], [], []>} : vector<1x128xf32>, vector<128x384xf32>, vector<1x384xf32> -> vector<1x384xf32>
    %c0_60 = arith.constant 0 : index
    %c0_61 = arith.constant 0 : index
    %138 = vector.load %arg7[%c0_60, %c0_61] : memref<1x384xf32, #tpu.memory_space<vmem>>, vector<1x384xf32>
    %139 = arith.addf %137, %138 : vector<1x384xf32>
    %140 = vector.extract_strided_slice %135 {offsets = [0, 0], sizes = [1, 128], strides = [1, 1]} : vector<1x384xf32> to vector<1x128xf32>
    %141 = vector.extract_strided_slice %139 {offsets = [0, 0], sizes = [1, 128], strides = [1, 1]} : vector<1x384xf32> to vector<1x128xf32>
    %142 = arith.addf %140, %141 : vector<1x128xf32>
    %143 = arith.negf %142 : vector<1x128xf32>
    %144 = math.exp %143 : vector<1x128xf32>
    %cst_62 = arith.constant 1.000000e+00 : f32
    %145 = vector.broadcast %cst_62 : f32 to vector<1x128xf32>
    %146 = arith.addf %145, %144 : vector<1x128xf32>
    %147 = arith.divf %145, %146 : vector<1x128xf32>
    %148 = vector.extract_strided_slice %135 {offsets = [0, 128], sizes = [1, 128], strides = [1, 1]} : vector<1x384xf32> to vector<1x128xf32>
    %149 = vector.extract_strided_slice %139 {offsets = [0, 128], sizes = [1, 128], strides = [1, 1]} : vector<1x384xf32> to vector<1x128xf32>
    %150 = arith.addf %148, %149 : vector<1x128xf32>
    %151 = arith.negf %150 : vector<1x128xf32>
    %152 = math.exp %151 : vector<1x128xf32>
    %cst_63 = arith.constant 1.000000e+00 : f32
    %153 = vector.broadcast %cst_63 : f32 to vector<1x128xf32>
    %154 = arith.addf %153, %152 : vector<1x128xf32>
    %155 = arith.divf %153, %154 : vector<1x128xf32>
    %156 = vector.extract_strided_slice %135 {offsets = [0, 256], sizes = [1, 128], strides = [1, 1]} : vector<1x384xf32> to vector<1x128xf32>
    %157 = vector.extract_strided_slice %139 {offsets = [0, 256], sizes = [1, 128], strides = [1, 1]} : vector<1x384xf32> to vector<1x128xf32>
    %158 = arith.mulf %147, %157 : vector<1x128xf32>
    %159 = arith.addf %156, %158 : vector<1x128xf32>
    %160 = math.tanh %159 : vector<1x128xf32>
    %cst_64 = arith.constant 1.000000e+00 : f32
    %161 = vector.broadcast %cst_64 : f32 to vector<1x128xf32>
    %162 = arith.subf %161, %155 : vector<1x128xf32>
    %163 = arith.mulf %162, %160 : vector<1x128xf32>
    %164 = arith.mulf %155, %124 : vector<1x128xf32>
    %165 = arith.addf %163, %164 : vector<1x128xf32>
    %c0_65 = arith.constant 0 : index
    %c0_66 = arith.constant 0 : index
    %166 = vector.load %arg8[%c0_65, %c0_66] : memref<128x128xf32, #tpu.memory_space<vmem>>, vector<128x128xf32>
    %cst_67 = arith.constant dense<0.000000e+00> : vector<1x128xf32>
    %167 = tpu.matmul %165, %166, %cst_67 {dimension_numbers = #tpu.dot_dimension_numbers<[1], [0], [0], [1], [0, 0, 1, 1], [], []>} : vector<1x128xf32>, vector<128x128xf32>, vector<1x128xf32> -> vector<1x128xf32>
    %c0_68 = arith.constant 0 : index
    %c0_69 = arith.constant 0 : index
    %168 = vector.load %arg9[%c0_68, %c0_69] : memref<1x128xf32, #tpu.memory_space<vmem>>, vector<1x128xf32>
    %169 = arith.addf %167, %168 : vector<1x128xf32>
    %cst_70 = arith.constant dense<0xFF800000> : vector<1xf32>
    %170 = vector.multi_reduction <maximumf>, %169, %cst_70 [1] : vector<1x128xf32> to vector<1xf32>
    %171 = vector.shape_cast %170 : vector<1xf32> to vector<1x1xf32>
    %172 = vector.broadcast %171 : vector<1x1xf32> to vector<1x128xf32>
    %173 = arith.subf %169, %172 : vector<1x128xf32>
    %174 = math.exp %173 : vector<1x128xf32>
    %cst_71 = arith.constant dense<0.000000e+00> : vector<1xf32>
    %175 = vector.multi_reduction <add>, %174, %cst_71 [1] : vector<1x128xf32> to vector<1xf32>
    %176 = vector.shape_cast %175 : vector<1xf32> to vector<1x1xf32>
    %177 = math.log %176 : vector<1x1xf32>
    %178 = arith.addf %171, %177 : vector<1x1xf32>
    %179 = vector.broadcast %178 : vector<1x1xf32> to vector<1x128xf32>
    %180 = arith.subf %169, %179 : vector<1x128xf32>
    %181 = arith.index_cast %c2_i32 : i32 to index
    %c0_72 = arith.constant 0 : index
    %182 = vector.load %arg10[%181, %c0_72] : memref<8x128xf32, #tpu.memory_space<vmem>>, vector<1x128xf32>
    tpu.vector_store %arg10[%181, %c0_72], %180 {strides = array<i32>} : memref<8x128xf32, #tpu.memory_space<vmem>>, vector<1x128xf32>,
    %c1_i32_73 = arith.constant 1 : i32
    %183 = arith.cmpi slt, %125, %c1_i32_73 : i32
    %184 = arith.select %183, %165, %124 : vector<1x128xf32>
    %c3_i32 = arith.constant 3 : i32
    %185 = arith.addi %3, %c3_i32 : i32
    %186 = arith.index_cast %185 : i32 to index
    %187 = memref.load %arg1[%186] : memref<8xi32, #tpu.memory_space<smem>>
    %188 = arith.index_cast %187 : i32 to index
    %c0_74 = arith.constant 0 : index
    %189 = vector.load %arg2[%188, %c0_74] : memref<128x128xf32, #tpu.memory_space<vmem>>, vector<1x128xf32>
    %cst_75 = arith.constant 0.000000e+00 : f32
    %190 = vector.broadcast %cst_75 : f32 to vector<1x128xf32>
    %191 = arith.maximumf %189, %190 : vector<1x128xf32>
    %c0_76 = arith.constant 0 : index
    %c0_77 = arith.constant 0 : index
    %192 = vector.load %arg4[%c0_76, %c0_77] : memref<128x384xf32, #tpu.memory_space<vmem>>, vector<128x384xf32>
    %cst_78 = arith.constant dense<0.000000e+00> : vector<1x384xf32>
    %193 = tpu.matmul %191, %192, %cst_78 {dimension_numbers = #tpu.dot_dimension_numbers<[1], [0], [0], [1], [0, 0, 1, 1], [], []>} : vector<1x128xf32>, vector<128x384xf32>, vector<1x384xf32> -> vector<1x384xf32>
    %c0_79 = arith.constant 0 : index
    %c0_80 = arith.constant 0 : index
    %194 = vector.load %arg6[%c0_79, %c0_80] : memref<1x384xf32, #tpu.memory_space<vmem>>, vector<1x384xf32>
    %195 = arith.addf %193, %194 : vector<1x384xf32>
    %c0_81 = arith.constant 0 : index
    %c0_82 = arith.constant 0 : index
    %196 = vector.load %arg5[%c0_81, %c0_82] : memref<128x384xf32, #tpu.memory_space<vmem>>, vector<128x384xf32>
    %cst_83 = arith.constant dense<0.000000e+00> : vector<1x384xf32>
    %197 = tpu.matmul %184, %196, %cst_83 {dimension_numbers = #tpu.dot_dimension_numbers<[1], [0], [0], [1], [0, 0, 1, 1], [], []>} : vector<1x128xf32>, vector<128x384xf32>, vector<1x384xf32> -> vector<1x384xf32>
    %c0_84 = arith.constant 0 : index
    %c0_85 = arith.constant 0 : index
    %198 = vector.load %arg7[%c0_84, %c0_85] : memref<1x384xf32, #tpu.memory_space<vmem>>, vector<1x384xf32>
    %199 = arith.addf %197, %198 : vector<1x384xf32>
    %200 = vector.extract_strided_slice %195 {offsets = [0, 0], sizes = [1, 128], strides = [1, 1]} : vector<1x384xf32> to vector<1x128xf32>
    %201 = vector.extract_strided_slice %199 {offsets = [0, 0], sizes = [1, 128], strides = [1, 1]} : vector<1x384xf32> to vector<1x128xf32>
    %202 = arith.addf %200, %201 : vector<1x128xf32>
    %203 = arith.negf %202 : vector<1x128xf32>
    %204 = math.exp %203 : vector<1x128xf32>
    %cst_86 = arith.constant 1.000000e+00 : f32
    %205 = vector.broadcast %cst_86 : f32 to vector<1x128xf32>
    %206 = arith.addf %205, %204 : vector<1x128xf32>
    %207 = arith.divf %205, %206 : vector<1x128xf32>
    %208 = vector.extract_strided_slice %195 {offsets = [0, 128], sizes = [1, 128], strides = [1, 1]} : vector<1x384xf32> to vector<1x128xf32>
    %209 = vector.extract_strided_slice %199 {offsets = [0, 128], sizes = [1, 128], strides = [1, 1]} : vector<1x384xf32> to vector<1x128xf32>
    %210 = arith.addf %208, %209 : vector<1x128xf32>
    %211 = arith.negf %210 : vector<1x128xf32>
    %212 = math.exp %211 : vector<1x128xf32>
    %cst_87 = arith.constant 1.000000e+00 : f32
    %213 = vector.broadcast %cst_87 : f32 to vector<1x128xf32>
    %214 = arith.addf %213, %212 : vector<1x128xf32>
    %215 = arith.divf %213, %214 : vector<1x128xf32>
    %216 = vector.extract_strided_slice %195 {offsets = [0, 256], sizes = [1, 128], strides = [1, 1]} : vector<1x384xf32> to vector<1x128xf32>
    %217 = vector.extract_strided_slice %199 {offsets = [0, 256], sizes = [1, 128], strides = [1, 1]} : vector<1x384xf32> to vector<1x128xf32>
    %218 = arith.mulf %207, %217 : vector<1x128xf32>
    %219 = arith.addf %216, %218 : vector<1x128xf32>
    %220 = math.tanh %219 : vector<1x128xf32>
    %cst_88 = arith.constant 1.000000e+00 : f32
    %221 = vector.broadcast %cst_88 : f32 to vector<1x128xf32>
    %222 = arith.subf %221, %215 : vector<1x128xf32>
    %223 = arith.mulf %222, %220 : vector<1x128xf32>
    %224 = arith.mulf %215, %184 : vector<1x128xf32>
    %225 = arith.addf %223, %224 : vector<1x128xf32>
    %c0_89 = arith.constant 0 : index
    %c0_90 = arith.constant 0 : index
    %226 = vector.load %arg8[%c0_89, %c0_90] : memref<128x128xf32, #tpu.memory_space<vmem>>, vector<128x128xf32>
    %cst_91 = arith.constant dense<0.000000e+00> : vector<1x128xf32>
    %227 = tpu.matmul %225, %226, %cst_91 {dimension_numbers = #tpu.dot_dimension_numbers<[1], [0], [0], [1], [0, 0, 1, 1], [], []>} : vector<1x128xf32>, vector<128x128xf32>, vector<1x128xf32> -> vector<1x128xf32>
    %c0_92 = arith.constant 0 : index
    %c0_93 = arith.constant 0 : index
    %228 = vector.load %arg9[%c0_92, %c0_93] : memref<1x128xf32, #tpu.memory_space<vmem>>, vector<1x128xf32>
    %229 = arith.addf %227, %228 : vector<1x128xf32>
    %cst_94 = arith.constant dense<0xFF800000> : vector<1xf32>
    %230 = vector.multi_reduction <maximumf>, %229, %cst_94 [1] : vector<1x128xf32> to vector<1xf32>
    %231 = vector.shape_cast %230 : vector<1xf32> to vector<1x1xf32>
    %232 = vector.broadcast %231 : vector<1x1xf32> to vector<1x128xf32>
    %233 = arith.subf %229, %232 : vector<1x128xf32>
    %234 = math.exp %233 : vector<1x128xf32>
    %cst_95 = arith.constant dense<0.000000e+00> : vector<1xf32>
    %235 = vector.multi_reduction <add>, %234, %cst_95 [1] : vector<1x128xf32> to vector<1xf32>
    %236 = vector.shape_cast %235 : vector<1xf32> to vector<1x1xf32>
    %237 = math.log %236 : vector<1x1xf32>
    %238 = arith.addf %231, %237 : vector<1x1xf32>
    %239 = vector.broadcast %238 : vector<1x1xf32> to vector<1x128xf32>
    %240 = arith.subf %229, %239 : vector<1x128xf32>
    %241 = arith.index_cast %c3_i32 : i32 to index
    %c0_96 = arith.constant 0 : index
    %242 = vector.load %arg10[%241, %c0_96] : memref<8x128xf32, #tpu.memory_space<vmem>>, vector<1x128xf32>
    tpu.vector_store %arg10[%241, %c0_96], %240 {strides = array<i32>} : memref<8x128xf32, #tpu.memory_space<vmem>>, vector<1x128xf32>,
    %c1_i32_97 = arith.constant 1 : i32
    %243 = arith.cmpi slt, %185, %c1_i32_97 : i32
    %244 = arith.select %243, %225, %184 : vector<1x128xf32>
    %c4_i32 = arith.constant 4 : i32
    %245 = arith.addi %3, %c4_i32 : i32
    %246 = arith.index_cast %245 : i32 to index
    %247 = memref.load %arg1[%246] : memref<8xi32, #tpu.memory_space<smem>>
    %248 = arith.index_cast %247 : i32 to index
    %c0_98 = arith.constant 0 : index
    %249 = vector.load %arg2[%248, %c0_98] : memref<128x128xf32, #tpu.memory_space<vmem>>, vector<1x128xf32>
    %cst_99 = arith.constant 0.000000e+00 : f32
    %250 = vector.broadcast %cst_99 : f32 to vector<1x128xf32>
    %251 = arith.maximumf %249, %250 : vector<1x128xf32>
    %c0_100 = arith.constant 0 : index
    %c0_101 = arith.constant 0 : index
    %252 = vector.load %arg4[%c0_100, %c0_101] : memref<128x384xf32, #tpu.memory_space<vmem>>, vector<128x384xf32>
    %cst_102 = arith.constant dense<0.000000e+00> : vector<1x384xf32>
    %253 = tpu.matmul %251, %252, %cst_102 {dimension_numbers = #tpu.dot_dimension_numbers<[1], [0], [0], [1], [0, 0, 1, 1], [], []>} : vector<1x128xf32>, vector<128x384xf32>, vector<1x384xf32> -> vector<1x384xf32>
    %c0_103 = arith.constant 0 : index
    %c0_104 = arith.constant 0 : index
    %254 = vector.load %arg6[%c0_103, %c0_104] : memref<1x384xf32, #tpu.memory_space<vmem>>, vector<1x384xf32>
    %255 = arith.addf %253, %254 : vector<1x384xf32>
    %c0_105 = arith.constant 0 : index
    %c0_106 = arith.constant 0 : index
    %256 = vector.load %arg5[%c0_105, %c0_106] : memref<128x384xf32, #tpu.memory_space<vmem>>, vector<128x384xf32>
    %cst_107 = arith.constant dense<0.000000e+00> : vector<1x384xf32>
    %257 = tpu.matmul %244, %256, %cst_107 {dimension_numbers = #tpu.dot_dimension_numbers<[1], [0], [0], [1], [0, 0, 1, 1], [], []>} : vector<1x128xf32>, vector<128x384xf32>, vector<1x384xf32> -> vector<1x384xf32>
    %c0_108 = arith.constant 0 : index
    %c0_109 = arith.constant 0 : index
    %258 = vector.load %arg7[%c0_108, %c0_109] : memref<1x384xf32, #tpu.memory_space<vmem>>, vector<1x384xf32>
    %259 = arith.addf %257, %258 : vector<1x384xf32>
    %260 = vector.extract_strided_slice %255 {offsets = [0, 0], sizes = [1, 128], strides = [1, 1]} : vector<1x384xf32> to vector<1x128xf32>
    %261 = vector.extract_strided_slice %259 {offsets = [0, 0], sizes = [1, 128], strides = [1, 1]} : vector<1x384xf32> to vector<1x128xf32>
    %262 = arith.addf %260, %261 : vector<1x128xf32>
    %263 = arith.negf %262 : vector<1x128xf32>
    %264 = math.exp %263 : vector<1x128xf32>
    %cst_110 = arith.constant 1.000000e+00 : f32
    %265 = vector.broadcast %cst_110 : f32 to vector<1x128xf32>
    %266 = arith.addf %265, %264 : vector<1x128xf32>
    %267 = arith.divf %265, %266 : vector<1x128xf32>
    %268 = vector.extract_strided_slice %255 {offsets = [0, 128], sizes = [1, 128], strides = [1, 1]} : vector<1x384xf32> to vector<1x128xf32>
    %269 = vector.extract_strided_slice %259 {offsets = [0, 128], sizes = [1, 128], strides = [1, 1]} : vector<1x384xf32> to vector<1x128xf32>
    %270 = arith.addf %268, %269 : vector<1x128xf32>
    %271 = arith.negf %270 : vector<1x128xf32>
    %272 = math.exp %271 : vector<1x128xf32>
    %cst_111 = arith.constant 1.000000e+00 : f32
    %273 = vector.broadcast %cst_111 : f32 to vector<1x128xf32>
    %274 = arith.addf %273, %272 : vector<1x128xf32>
    %275 = arith.divf %273, %274 : vector<1x128xf32>
    %276 = vector.extract_strided_slice %255 {offsets = [0, 256], sizes = [1, 128], strides = [1, 1]} : vector<1x384xf32> to vector<1x128xf32>
    %277 = vector.extract_strided_slice %259 {offsets = [0, 256], sizes = [1, 128], strides = [1, 1]} : vector<1x384xf32> to vector<1x128xf32>
    %278 = arith.mulf %267, %277 : vector<1x128xf32>
    %279 = arith.addf %276, %278 : vector<1x128xf32>
    %280 = math.tanh %279 : vector<1x128xf32>
    %cst_112 = arith.constant 1.000000e+00 : f32
    %281 = vector.broadcast %cst_112 : f32 to vector<1x128xf32>
    %282 = arith.subf %281, %275 : vector<1x128xf32>
    %283 = arith.mulf %282, %280 : vector<1x128xf32>
    %284 = arith.mulf %275, %244 : vector<1x128xf32>
    %285 = arith.addf %283, %284 : vector<1x128xf32>
    %c0_113 = arith.constant 0 : index
    %c0_114 = arith.constant 0 : index
    %286 = vector.load %arg8[%c0_113, %c0_114] : memref<128x128xf32, #tpu.memory_space<vmem>>, vector<128x128xf32>
    %cst_115 = arith.constant dense<0.000000e+00> : vector<1x128xf32>
    %287 = tpu.matmul %285, %286, %cst_115 {dimension_numbers = #tpu.dot_dimension_numbers<[1], [0], [0], [1], [0, 0, 1, 1], [], []>} : vector<1x128xf32>, vector<128x128xf32>, vector<1x128xf32> -> vector<1x128xf32>
    %c0_116 = arith.constant 0 : index
    %c0_117 = arith.constant 0 : index
    %288 = vector.load %arg9[%c0_116, %c0_117] : memref<1x128xf32, #tpu.memory_space<vmem>>, vector<1x128xf32>
    %289 = arith.addf %287, %288 : vector<1x128xf32>
    %cst_118 = arith.constant dense<0xFF800000> : vector<1xf32>
    %290 = vector.multi_reduction <maximumf>, %289, %cst_118 [1] : vector<1x128xf32> to vector<1xf32>
    %291 = vector.shape_cast %290 : vector<1xf32> to vector<1x1xf32>
    %292 = vector.broadcast %291 : vector<1x1xf32> to vector<1x128xf32>
    %293 = arith.subf %289, %292 : vector<1x128xf32>
    %294 = math.exp %293 : vector<1x128xf32>
    %cst_119 = arith.constant dense<0.000000e+00> : vector<1xf32>
    %295 = vector.multi_reduction <add>, %294, %cst_119 [1] : vector<1x128xf32> to vector<1xf32>
    %296 = vector.shape_cast %295 : vector<1xf32> to vector<1x1xf32>
    %297 = math.log %296 : vector<1x1xf32>
    %298 = arith.addf %291, %297 : vector<1x1xf32>
    %299 = vector.broadcast %298 : vector<1x1xf32> to vector<1x128xf32>
    %300 = arith.subf %289, %299 : vector<1x128xf32>
    %301 = arith.index_cast %c4_i32 : i32 to index
    %c0_120 = arith.constant 0 : index
    %302 = vector.load %arg10[%301, %c0_120] : memref<8x128xf32, #tpu.memory_space<vmem>>, vector<1x128xf32>
    tpu.vector_store %arg10[%301, %c0_120], %300 {strides = array<i32>} : memref<8x128xf32, #tpu.memory_space<vmem>>, vector<1x128xf32>,
    %c1_i32_121 = arith.constant 1 : i32
    %303 = arith.cmpi slt, %245, %c1_i32_121 : i32
    %304 = arith.select %303, %285, %244 : vector<1x128xf32>
    %c5_i32 = arith.constant 5 : i32
    %305 = arith.addi %3, %c5_i32 : i32
    %306 = arith.index_cast %305 : i32 to index
    %307 = memref.load %arg1[%306] : memref<8xi32, #tpu.memory_space<smem>>
    %308 = arith.index_cast %307 : i32 to index
    %c0_122 = arith.constant 0 : index
    %309 = vector.load %arg2[%308, %c0_122] : memref<128x128xf32, #tpu.memory_space<vmem>>, vector<1x128xf32>
    %cst_123 = arith.constant 0.000000e+00 : f32
    %310 = vector.broadcast %cst_123 : f32 to vector<1x128xf32>
    %311 = arith.maximumf %309, %310 : vector<1x128xf32>
    %c0_124 = arith.constant 0 : index
    %c0_125 = arith.constant 0 : index
    %312 = vector.load %arg4[%c0_124, %c0_125] : memref<128x384xf32, #tpu.memory_space<vmem>>, vector<128x384xf32>
    %cst_126 = arith.constant dense<0.000000e+00> : vector<1x384xf32>
    %313 = tpu.matmul %311, %312, %cst_126 {dimension_numbers = #tpu.dot_dimension_numbers<[1], [0], [0], [1], [0, 0, 1, 1], [], []>} : vector<1x128xf32>, vector<128x384xf32>, vector<1x384xf32> -> vector<1x384xf32>
    %c0_127 = arith.constant 0 : index
    %c0_128 = arith.constant 0 : index
    %314 = vector.load %arg6[%c0_127, %c0_128] : memref<1x384xf32, #tpu.memory_space<vmem>>, vector<1x384xf32>
    %315 = arith.addf %313, %314 : vector<1x384xf32>
    %c0_129 = arith.constant 0 : index
    %c0_130 = arith.constant 0 : index
    %316 = vector.load %arg5[%c0_129, %c0_130] : memref<128x384xf32, #tpu.memory_space<vmem>>, vector<128x384xf32>
    %cst_131 = arith.constant dense<0.000000e+00> : vector<1x384xf32>
    %317 = tpu.matmul %304, %316, %cst_131 {dimension_numbers = #tpu.dot_dimension_numbers<[1], [0], [0], [1], [0, 0, 1, 1], [], []>} : vector<1x128xf32>, vector<128x384xf32>, vector<1x384xf32> -> vector<1x384xf32>
    %c0_132 = arith.constant 0 : index
    %c0_133 = arith.constant 0 : index
    %318 = vector.load %arg7[%c0_132, %c0_133] : memref<1x384xf32, #tpu.memory_space<vmem>>, vector<1x384xf32>
    %319 = arith.addf %317, %318 : vector<1x384xf32>
    %320 = vector.extract_strided_slice %315 {offsets = [0, 0], sizes = [1, 128], strides = [1, 1]} : vector<1x384xf32> to vector<1x128xf32>
    %321 = vector.extract_strided_slice %319 {offsets = [0, 0], sizes = [1, 128], strides = [1, 1]} : vector<1x384xf32> to vector<1x128xf32>
    %322 = arith.addf %320, %321 : vector<1x128xf32>
    %323 = arith.negf %322 : vector<1x128xf32>
    %324 = math.exp %323 : vector<1x128xf32>
    %cst_134 = arith.constant 1.000000e+00 : f32
    %325 = vector.broadcast %cst_134 : f32 to vector<1x128xf32>
    %326 = arith.addf %325, %324 : vector<1x128xf32>
    %327 = arith.divf %325, %326 : vector<1x128xf32>
    %328 = vector.extract_strided_slice %315 {offsets = [0, 128], sizes = [1, 128], strides = [1, 1]} : vector<1x384xf32> to vector<1x128xf32>
    %329 = vector.extract_strided_slice %319 {offsets = [0, 128], sizes = [1, 128], strides = [1, 1]} : vector<1x384xf32> to vector<1x128xf32>
    %330 = arith.addf %328, %329 : vector<1x128xf32>
    %331 = arith.negf %330 : vector<1x128xf32>
    %332 = math.exp %331 : vector<1x128xf32>
    %cst_135 = arith.constant 1.000000e+00 : f32
    %333 = vector.broadcast %cst_135 : f32 to vector<1x128xf32>
    %334 = arith.addf %333, %332 : vector<1x128xf32>
    %335 = arith.divf %333, %334 : vector<1x128xf32>
    %336 = vector.extract_strided_slice %315 {offsets = [0, 256], sizes = [1, 128], strides = [1, 1]} : vector<1x384xf32> to vector<1x128xf32>
    %337 = vector.extract_strided_slice %319 {offsets = [0, 256], sizes = [1, 128], strides = [1, 1]} : vector<1x384xf32> to vector<1x128xf32>
    %338 = arith.mulf %327, %337 : vector<1x128xf32>
    %339 = arith.addf %336, %338 : vector<1x128xf32>
    %340 = math.tanh %339 : vector<1x128xf32>
    %cst_136 = arith.constant 1.000000e+00 : f32
    %341 = vector.broadcast %cst_136 : f32 to vector<1x128xf32>
    %342 = arith.subf %341, %335 : vector<1x128xf32>
    %343 = arith.mulf %342, %340 : vector<1x128xf32>
    %344 = arith.mulf %335, %304 : vector<1x128xf32>
    %345 = arith.addf %343, %344 : vector<1x128xf32>
    %c0_137 = arith.constant 0 : index
    %c0_138 = arith.constant 0 : index
    %346 = vector.load %arg8[%c0_137, %c0_138] : memref<128x128xf32, #tpu.memory_space<vmem>>, vector<128x128xf32>
    %cst_139 = arith.constant dense<0.000000e+00> : vector<1x128xf32>
    %347 = tpu.matmul %345, %346, %cst_139 {dimension_numbers = #tpu.dot_dimension_numbers<[1], [0], [0], [1], [0, 0, 1, 1], [], []>} : vector<1x128xf32>, vector<128x128xf32>, vector<1x128xf32> -> vector<1x128xf32>
    %c0_140 = arith.constant 0 : index
    %c0_141 = arith.constant 0 : index
    %348 = vector.load %arg9[%c0_140, %c0_141] : memref<1x128xf32, #tpu.memory_space<vmem>>, vector<1x128xf32>
    %349 = arith.addf %347, %348 : vector<1x128xf32>
    %cst_142 = arith.constant dense<0xFF800000> : vector<1xf32>
    %350 = vector.multi_reduction <maximumf>, %349, %cst_142 [1] : vector<1x128xf32> to vector<1xf32>
    %351 = vector.shape_cast %350 : vector<1xf32> to vector<1x1xf32>
    %352 = vector.broadcast %351 : vector<1x1xf32> to vector<1x128xf32>
    %353 = arith.subf %349, %352 : vector<1x128xf32>
    %354 = math.exp %353 : vector<1x128xf32>
    %cst_143 = arith.constant dense<0.000000e+00> : vector<1xf32>
    %355 = vector.multi_reduction <add>, %354, %cst_143 [1] : vector<1x128xf32> to vector<1xf32>
    %356 = vector.shape_cast %355 : vector<1xf32> to vector<1x1xf32>
    %357 = math.log %356 : vector<1x1xf32>
    %358 = arith.addf %351, %357 : vector<1x1xf32>
    %359 = vector.broadcast %358 : vector<1x1xf32> to vector<1x128xf32>
    %360 = arith.subf %349, %359 : vector<1x128xf32>
    %361 = arith.index_cast %c5_i32 : i32 to index
    %c0_144 = arith.constant 0 : index
    %362 = vector.load %arg10[%361, %c0_144] : memref<8x128xf32, #tpu.memory_space<vmem>>, vector<1x128xf32>
    tpu.vector_store %arg10[%361, %c0_144], %360 {strides = array<i32>} : memref<8x128xf32, #tpu.memory_space<vmem>>, vector<1x128xf32>,
    %c1_i32_145 = arith.constant 1 : i32
    %363 = arith.cmpi slt, %305, %c1_i32_145 : i32
    %364 = arith.select %363, %345, %304 : vector<1x128xf32>
    %c6_i32 = arith.constant 6 : i32
    %365 = arith.addi %3, %c6_i32 : i32
    %366 = arith.index_cast %365 : i32 to index
    %367 = memref.load %arg1[%366] : memref<8xi32, #tpu.memory_space<smem>>
    %368 = arith.index_cast %367 : i32 to index
    %c0_146 = arith.constant 0 : index
    %369 = vector.load %arg2[%368, %c0_146] : memref<128x128xf32, #tpu.memory_space<vmem>>, vector<1x128xf32>
    %cst_147 = arith.constant 0.000000e+00 : f32
    %370 = vector.broadcast %cst_147 : f32 to vector<1x128xf32>
    %371 = arith.maximumf %369, %370 : vector<1x128xf32>
    %c0_148 = arith.constant 0 : index
    %c0_149 = arith.constant 0 : index
    %372 = vector.load %arg4[%c0_148, %c0_149] : memref<128x384xf32, #tpu.memory_space<vmem>>, vector<128x384xf32>
    %cst_150 = arith.constant dense<0.000000e+00> : vector<1x384xf32>
    %373 = tpu.matmul %371, %372, %cst_150 {dimension_numbers = #tpu.dot_dimension_numbers<[1], [0], [0], [1], [0, 0, 1, 1], [], []>} : vector<1x128xf32>, vector<128x384xf32>, vector<1x384xf32> -> vector<1x384xf32>
    %c0_151 = arith.constant 0 : index
    %c0_152 = arith.constant 0 : index
    %374 = vector.load %arg6[%c0_151, %c0_152] : memref<1x384xf32, #tpu.memory_space<vmem>>, vector<1x384xf32>
    %375 = arith.addf %373, %374 : vector<1x384xf32>
    %c0_153 = arith.constant 0 : index
    %c0_154 = arith.constant 0 : index
    %376 = vector.load %arg5[%c0_153, %c0_154] : memref<128x384xf32, #tpu.memory_space<vmem>>, vector<128x384xf32>
    %cst_155 = arith.constant dense<0.000000e+00> : vector<1x384xf32>
    %377 = tpu.matmul %364, %376, %cst_155 {dimension_numbers = #tpu.dot_dimension_numbers<[1], [0], [0], [1], [0, 0, 1, 1], [], []>} : vector<1x128xf32>, vector<128x384xf32>, vector<1x384xf32> -> vector<1x384xf32>
    %c0_156 = arith.constant 0 : index
    %c0_157 = arith.constant 0 : index
    %378 = vector.load %arg7[%c0_156, %c0_157] : memref<1x384xf32, #tpu.memory_space<vmem>>, vector<1x384xf32>
    %379 = arith.addf %377, %378 : vector<1x384xf32>
    %380 = vector.extract_strided_slice %375 {offsets = [0, 0], sizes = [1, 128], strides = [1, 1]} : vector<1x384xf32> to vector<1x128xf32>
    %381 = vector.extract_strided_slice %379 {offsets = [0, 0], sizes = [1, 128], strides = [1, 1]} : vector<1x384xf32> to vector<1x128xf32>
    %382 = arith.addf %380, %381 : vector<1x128xf32>
    %383 = arith.negf %382 : vector<1x128xf32>
    %384 = math.exp %383 : vector<1x128xf32>
    %cst_158 = arith.constant 1.000000e+00 : f32
    %385 = vector.broadcast %cst_158 : f32 to vector<1x128xf32>
    %386 = arith.addf %385, %384 : vector<1x128xf32>
    %387 = arith.divf %385, %386 : vector<1x128xf32>
    %388 = vector.extract_strided_slice %375 {offsets = [0, 128], sizes = [1, 128], strides = [1, 1]} : vector<1x384xf32> to vector<1x128xf32>
    %389 = vector.extract_strided_slice %379 {offsets = [0, 128], sizes = [1, 128], strides = [1, 1]} : vector<1x384xf32> to vector<1x128xf32>
    %390 = arith.addf %388, %389 : vector<1x128xf32>
    %391 = arith.negf %390 : vector<1x128xf32>
    %392 = math.exp %391 : vector<1x128xf32>
    %cst_159 = arith.constant 1.000000e+00 : f32
    %393 = vector.broadcast %cst_159 : f32 to vector<1x128xf32>
    %394 = arith.addf %393, %392 : vector<1x128xf32>
    %395 = arith.divf %393, %394 : vector<1x128xf32>
    %396 = vector.extract_strided_slice %375 {offsets = [0, 256], sizes = [1, 128], strides = [1, 1]} : vector<1x384xf32> to vector<1x128xf32>
    %397 = vector.extract_strided_slice %379 {offsets = [0, 256], sizes = [1, 128], strides = [1, 1]} : vector<1x384xf32> to vector<1x128xf32>
    %398 = arith.mulf %387, %397 : vector<1x128xf32>
    %399 = arith.addf %396, %398 : vector<1x128xf32>
    %400 = math.tanh %399 : vector<1x128xf32>
    %cst_160 = arith.constant 1.000000e+00 : f32
    %401 = vector.broadcast %cst_160 : f32 to vector<1x128xf32>
    %402 = arith.subf %401, %395 : vector<1x128xf32>
    %403 = arith.mulf %402, %400 : vector<1x128xf32>
    %404 = arith.mulf %395, %364 : vector<1x128xf32>
    %405 = arith.addf %403, %404 : vector<1x128xf32>
    %c0_161 = arith.constant 0 : index
    %c0_162 = arith.constant 0 : index
    %406 = vector.load %arg8[%c0_161, %c0_162] : memref<128x128xf32, #tpu.memory_space<vmem>>, vector<128x128xf32>
    %cst_163 = arith.constant dense<0.000000e+00> : vector<1x128xf32>
    %407 = tpu.matmul %405, %406, %cst_163 {dimension_numbers = #tpu.dot_dimension_numbers<[1], [0], [0], [1], [0, 0, 1, 1], [], []>} : vector<1x128xf32>, vector<128x128xf32>, vector<1x128xf32> -> vector<1x128xf32>
    %c0_164 = arith.constant 0 : index
    %c0_165 = arith.constant 0 : index
    %408 = vector.load %arg9[%c0_164, %c0_165] : memref<1x128xf32, #tpu.memory_space<vmem>>, vector<1x128xf32>
    %409 = arith.addf %407, %408 : vector<1x128xf32>
    %cst_166 = arith.constant dense<0xFF800000> : vector<1xf32>
    %410 = vector.multi_reduction <maximumf>, %409, %cst_166 [1] : vector<1x128xf32> to vector<1xf32>
    %411 = vector.shape_cast %410 : vector<1xf32> to vector<1x1xf32>
    %412 = vector.broadcast %411 : vector<1x1xf32> to vector<1x128xf32>
    %413 = arith.subf %409, %412 : vector<1x128xf32>
    %414 = math.exp %413 : vector<1x128xf32>
    %cst_167 = arith.constant dense<0.000000e+00> : vector<1xf32>
    %415 = vector.multi_reduction <add>, %414, %cst_167 [1] : vector<1x128xf32> to vector<1xf32>
    %416 = vector.shape_cast %415 : vector<1xf32> to vector<1x1xf32>
    %417 = math.log %416 : vector<1x1xf32>
    %418 = arith.addf %411, %417 : vector<1x1xf32>
    %419 = vector.broadcast %418 : vector<1x1xf32> to vector<1x128xf32>
    %420 = arith.subf %409, %419 : vector<1x128xf32>
    %421 = arith.index_cast %c6_i32 : i32 to index
    %c0_168 = arith.constant 0 : index
    %422 = vector.load %arg10[%421, %c0_168] : memref<8x128xf32, #tpu.memory_space<vmem>>, vector<1x128xf32>
    tpu.vector_store %arg10[%421, %c0_168], %420 {strides = array<i32>} : memref<8x128xf32, #tpu.memory_space<vmem>>, vector<1x128xf32>,
    %c1_i32_169 = arith.constant 1 : i32
    %423 = arith.cmpi slt, %365, %c1_i32_169 : i32
    %424 = arith.select %423, %405, %364 : vector<1x128xf32>
    %c7_i32 = arith.constant 7 : i32
    %425 = arith.addi %3, %c7_i32 : i32
    %426 = arith.index_cast %425 : i32 to index
    %427 = memref.load %arg1[%426] : memref<8xi32, #tpu.memory_space<smem>>
    %428 = arith.index_cast %427 : i32 to index
    %c0_170 = arith.constant 0 : index
    %429 = vector.load %arg2[%428, %c0_170] : memref<128x128xf32, #tpu.memory_space<vmem>>, vector<1x128xf32>
    %cst_171 = arith.constant 0.000000e+00 : f32
    %430 = vector.broadcast %cst_171 : f32 to vector<1x128xf32>
    %431 = arith.maximumf %429, %430 : vector<1x128xf32>
    %c0_172 = arith.constant 0 : index
    %c0_173 = arith.constant 0 : index
    %432 = vector.load %arg4[%c0_172, %c0_173] : memref<128x384xf32, #tpu.memory_space<vmem>>, vector<128x384xf32>
    %cst_174 = arith.constant dense<0.000000e+00> : vector<1x384xf32>
    %433 = tpu.matmul %431, %432, %cst_174 {dimension_numbers = #tpu.dot_dimension_numbers<[1], [0], [0], [1], [0, 0, 1, 1], [], []>} : vector<1x128xf32>, vector<128x384xf32>, vector<1x384xf32> -> vector<1x384xf32>
    %c0_175 = arith.constant 0 : index
    %c0_176 = arith.constant 0 : index
    %434 = vector.load %arg6[%c0_175, %c0_176] : memref<1x384xf32, #tpu.memory_space<vmem>>, vector<1x384xf32>
    %435 = arith.addf %433, %434 : vector<1x384xf32>
    %c0_177 = arith.constant 0 : index
    %c0_178 = arith.constant 0 : index
    %436 = vector.load %arg5[%c0_177, %c0_178] : memref<128x384xf32, #tpu.memory_space<vmem>>, vector<128x384xf32>
    %cst_179 = arith.constant dense<0.000000e+00> : vector<1x384xf32>
    %437 = tpu.matmul %424, %436, %cst_179 {dimension_numbers = #tpu.dot_dimension_numbers<[1], [0], [0], [1], [0, 0, 1, 1], [], []>} : vector<1x128xf32>, vector<128x384xf32>, vector<1x384xf32> -> vector<1x384xf32>
    %c0_180 = arith.constant 0 : index
    %c0_181 = arith.constant 0 : index
    %438 = vector.load %arg7[%c0_180, %c0_181] : memref<1x384xf32, #tpu.memory_space<vmem>>, vector<1x384xf32>
    %439 = arith.addf %437, %438 : vector<1x384xf32>
    %440 = vector.extract_strided_slice %435 {offsets = [0, 0], sizes = [1, 128], strides = [1, 1]} : vector<1x384xf32> to vector<1x128xf32>
    %441 = vector.extract_strided_slice %439 {offsets = [0, 0], sizes = [1, 128], strides = [1, 1]} : vector<1x384xf32> to vector<1x128xf32>
    %442 = arith.addf %440, %441 : vector<1x128xf32>
    %443 = arith.negf %442 : vector<1x128xf32>
    %444 = math.exp %443 : vector<1x128xf32>
    %cst_182 = arith.constant 1.000000e+00 : f32
    %445 = vector.broadcast %cst_182 : f32 to vector<1x128xf32>
    %446 = arith.addf %445, %444 : vector<1x128xf32>
    %447 = arith.divf %445, %446 : vector<1x128xf32>
    %448 = vector.extract_strided_slice %435 {offsets = [0, 128], sizes = [1, 128], strides = [1, 1]} : vector<1x384xf32> to vector<1x128xf32>
    %449 = vector.extract_strided_slice %439 {offsets = [0, 128], sizes = [1, 128], strides = [1, 1]} : vector<1x384xf32> to vector<1x128xf32>
    %450 = arith.addf %448, %449 : vector<1x128xf32>
    %451 = arith.negf %450 : vector<1x128xf32>
    %452 = math.exp %451 : vector<1x128xf32>
    %cst_183 = arith.constant 1.000000e+00 : f32
    %453 = vector.broadcast %cst_183 : f32 to vector<1x128xf32>
    %454 = arith.addf %453, %452 : vector<1x128xf32>
    %455 = arith.divf %453, %454 : vector<1x128xf32>
    %456 = vector.extract_strided_slice %435 {offsets = [0, 256], sizes = [1, 128], strides = [1, 1]} : vector<1x384xf32> to vector<1x128xf32>
    %457 = vector.extract_strided_slice %439 {offsets = [0, 256], sizes = [1, 128], strides = [1, 1]} : vector<1x384xf32> to vector<1x128xf32>
    %458 = arith.mulf %447, %457 : vector<1x128xf32>
    %459 = arith.addf %456, %458 : vector<1x128xf32>
    %460 = math.tanh %459 : vector<1x128xf32>
    %cst_184 = arith.constant 1.000000e+00 : f32
    %461 = vector.broadcast %cst_184 : f32 to vector<1x128xf32>
    %462 = arith.subf %461, %455 : vector<1x128xf32>
    %463 = arith.mulf %462, %460 : vector<1x128xf32>
    %464 = arith.mulf %455, %424 : vector<1x128xf32>
    %465 = arith.addf %463, %464 : vector<1x128xf32>
    %c0_185 = arith.constant 0 : index
    %c0_186 = arith.constant 0 : index
    %466 = vector.load %arg8[%c0_185, %c0_186] : memref<128x128xf32, #tpu.memory_space<vmem>>, vector<128x128xf32>
    %cst_187 = arith.constant dense<0.000000e+00> : vector<1x128xf32>
    %467 = tpu.matmul %465, %466, %cst_187 {dimension_numbers = #tpu.dot_dimension_numbers<[1], [0], [0], [1], [0, 0, 1, 1], [], []>} : vector<1x128xf32>, vector<128x128xf32>, vector<1x128xf32> -> vector<1x128xf32>
    %c0_188 = arith.constant 0 : index
    %c0_189 = arith.constant 0 : index
    %468 = vector.load %arg9[%c0_188, %c0_189] : memref<1x128xf32, #tpu.memory_space<vmem>>, vector<1x128xf32>
    %469 = arith.addf %467, %468 : vector<1x128xf32>
    %cst_190 = arith.constant dense<0xFF800000> : vector<1xf32>
    %470 = vector.multi_reduction <maximumf>, %469, %cst_190 [1] : vector<1x128xf32> to vector<1xf32>
    %471 = vector.shape_cast %470 : vector<1xf32> to vector<1x1xf32>
    %472 = vector.broadcast %471 : vector<1x1xf32> to vector<1x128xf32>
    %473 = arith.subf %469, %472 : vector<1x128xf32>
    %474 = math.exp %473 : vector<1x128xf32>
    %cst_191 = arith.constant dense<0.000000e+00> : vector<1xf32>
    %475 = vector.multi_reduction <add>, %474, %cst_191 [1] : vector<1x128xf32> to vector<1xf32>
    %476 = vector.shape_cast %475 : vector<1xf32> to vector<1x1xf32>
    %477 = math.log %476 : vector<1x1xf32>
    %478 = arith.addf %471, %477 : vector<1x1xf32>
    %479 = vector.broadcast %478 : vector<1x1xf32> to vector<1x128xf32>
    %480 = arith.subf %469, %479 : vector<1x128xf32>
    %481 = arith.index_cast %c7_i32 : i32 to index
    %c0_192 = arith.constant 0 : index
    %482 = vector.load %arg10[%481, %c0_192] : memref<8x128xf32, #tpu.memory_space<vmem>>, vector<1x128xf32>
    tpu.vector_store %arg10[%481, %c0_192], %480 {strides = array<i32>} : memref<8x128xf32, #tpu.memory_space<vmem>>, vector<1x128xf32>,
    %c1_i32_193 = arith.constant 1 : i32
    %483 = arith.cmpi slt, %425, %c1_i32_193 : i32
    %484 = arith.select %483, %465, %424 : vector<1x128xf32>
    %c8_i32_194 = arith.constant 8 : i32
    %c0_195 = arith.constant 0 : index
    %c0_196 = arith.constant 0 : index
    %485 = vector.load %arg11[%c0_195, %c0_196] : memref<1x128xf32, #tpu.memory_space<vmem>>, vector<1x128xf32>
    tpu.vector_store %arg11[%c0_195, %c0_196], %484 {strides = array<i32>} : memref<1x128xf32, #tpu.memory_space<vmem>>, vector<1x128xf32>,
    return
  }
  func.func @transform_0(%arg0: i32, %arg1: memref<8xi32, #tpu.memory_space<smem>>) -> (i32, i32) {
    %c0_i32 = arith.constant 0 : i32
    %c0_i32_0 = arith.constant 0 : i32
    %c0_i32_1 = arith.constant 0 : i32
    return %c0_i32, %c0_i32_0 : i32, i32
  }
  func.func @transform_1(%arg0: i32, %arg1: memref<8xi32, #tpu.memory_space<smem>>) -> (i32, i32) {
    %c0_i32 = arith.constant 0 : i32
    %c0_i32_0 = arith.constant 0 : i32
    %c0_i32_1 = arith.constant 0 : i32
    return %c0_i32, %c0_i32_0 : i32, i32
  }
  func.func @transform_2(%arg0: i32, %arg1: memref<8xi32, #tpu.memory_space<smem>>) -> (i32, i32) {
    %c0_i32 = arith.constant 0 : i32
    %c0_i32_0 = arith.constant 0 : i32
    %c0_i32_1 = arith.constant 0 : i32
    return %c0_i32, %c0_i32_0 : i32, i32
  }
  func.func @transform_3(%arg0: i32, %arg1: memref<8xi32, #tpu.memory_space<smem>>) -> (i32, i32) {
    %c0_i32 = arith.constant 0 : i32
    %c0_i32_0 = arith.constant 0 : i32
    %c0_i32_1 = arith.constant 0 : i32
    return %c0_i32, %c0_i32_0 : i32, i32
  }
  func.func @transform_4(%arg0: i32, %arg1: memref<8xi32, #tpu.memory_space<smem>>) -> (i32, i32) {
    %c0_i32 = arith.constant 0 : i32
    %c0_i32_0 = arith.constant 0 : i32
    %c0_i32_1 = arith.constant 0 : i32
    return %c0_i32, %c0_i32_0 : i32, i32
  }
  func.func @transform_5(%arg0: i32, %arg1: memref<8xi32, #tpu.memory_space<smem>>) -> (i32, i32) {
    %c0_i32 = arith.constant 0 : i32
    %c0_i32_0 = arith.constant 0 : i32
    %c0_i32_1 = arith.constant 0 : i32
    return %c0_i32, %c0_i32_0 : i32, i32
  }
  func.func @transform_6(%arg0: i32, %arg1: memref<8xi32, #tpu.memory_space<smem>>) -> (i32, i32) {
    %c0_i32 = arith.constant 0 : i32
    %c0_i32_0 = arith.constant 0 : i32
    %c0_i32_1 = arith.constant 0 : i32
    return %c0_i32, %c0_i32_0 : i32, i32
  }
  func.func @transform_7(%arg0: i32, %arg1: memref<8xi32, #tpu.memory_space<smem>>) -> (i32, i32) {
    %c0_i32 = arith.constant 0 : i32
    %c0_i32_0 = arith.constant 0 : i32
    %c0_i32_1 = arith.constant 0 : i32
    return %c0_i32, %c0_i32_0 : i32, i32
  }
  func.func @transform_8(%arg0: i32, %arg1: memref<8xi32, #tpu.memory_space<smem>>) -> (i32, i32) {
    %c0_i32 = arith.constant 0 : i32
    %c0_i32_0 = arith.constant 0 : i32
    return %arg0, %c0_i32 : i32, i32
  }
  func.func @transform_9(%arg0: i32, %arg1: memref<8xi32, #tpu.memory_space<smem>>) -> (i32, i32) {
    %c0_i32 = arith.constant 0 : i32
    %c0_i32_0 = arith.constant 0 : i32
    %c0_i32_1 = arith.constant 0 : i32
    return %c0_i32, %c0_i32_0 : i32, i32
  }
}

</mosaic_0001>

<llo_original>
// kernel: tpu_custom_call.1
$region0: #{tpu_custom_call.1}
  #allocation0 [shape = 'u32[]', space=smem, size = 0x4, offset = 0x4, fixed_abs, tag = 'smem constant byte address 0x4 - core index']
  #allocation1 [shape = 'u32[144,128]{1,0:T(1,128)}', space=vmem, size = 0x12000, scoped, tag = 'internal scratch']
  #allocation2 [shape = 's32[1]{0}', space=sflag, size = 0x4, scoped, tag = 'scoped memory for tpu_custom_call.1']
  #allocation3 [shape = 'u8[512]{0}', space=smem, size = 0x200, scoped, tag = 'prefetched SMEM operand 0']
  %s0 = inlined_call_operand.hbm [shape: s32[8], index: 0, kind: input, shape index: {}]
  %s1 = inlined_call_operand.hbm [shape: f32[128,128], index: 1, kind: input, shape index: {}]
  %s2 = inlined_call_operand.vmem [shape: f32[1,128], index: 2, kind: input, shape index: {}]
  %s3 = inlined_call_operand.hbm [shape: f32[128,384], index: 3, kind: input, shape index: {}]
  %s4 = inlined_call_operand.hbm [shape: f32[128,384], index: 4, kind: input, shape index: {}]
  %s5 = inlined_call_operand.vmem [shape: f32[1,384], index: 5, kind: input, shape index: {}]
  %s6 = inlined_call_operand.vmem [shape: f32[1,384], index: 6, kind: input, shape index: {}]
  %s7 = inlined_call_operand.hbm [shape: f32[128,128], index: 7, kind: input, shape index: {}]
  %s8 = inlined_call_operand.vmem [shape: f32[1,128], index: 8, kind: input, shape index: {}]
  %s9 = inlined_call_operand.hbm [shape: f32[8,128], index: 9, kind: output, shape index: {0}]
  %s10 = inlined_call_operand.hbm [shape: f32[1,128], index: 10, kind: output, shape index: {1}]
  %11 = xla_tuple %s9, %s10
  %s12 = sld [smem:[#allocation0]]
  $region70: #{tpu_custom_call.1} parent=0
    _
  %s14 = ssub.s32 1, %s12
  %s15 = scalar_select 0, %s14, %s12
  %17 = dma.hbm_to_smem %s0, 16, [#allocation3], [#allocation2]
  %18 = dma.done [#allocation2], 16
  %19 = sfence
  $region1: #{tpu_custom_call.1} parent=0
    #allocation4 [shape = 'u8[65536]{0}', space=vmem, size = 0x10000, scoped, tag = 'input window, operand 1, single buffered']
    #allocation5 [shape = 's32[1]{0}', space=sflag, size = 0x4, scoped, tag = 'scoped memory for tpu_custom_call.1']
    #allocation6 [shape = 's32[1]{0}', space=sflag, size = 0x4, scoped, tag = 'scoped memory for tpu_custom_call.1']
    #allocation7 [shape = 'u8[196608]{0}', space=vmem, size = 0x30000, scoped, tag = 'input window, operand 3, single buffered']
    #allocation8 [shape = 's32[1]{0}', space=sflag, size = 0x4, scoped, tag = 'scoped memory for tpu_custom_call.1']
    #allocation9 [shape = 'u8[196608]{0}', space=vmem, size = 0x30000, scoped, tag = 'input window, operand 4, single buffered']
    #allocation10 [shape = 'u8[65536]{0}', space=vmem, size = 0x10000, scoped, tag = 'input window, operand 7, single buffered']
    #allocation11 [shape = 's32[1]{0}', space=sflag, size = 0x4, scoped, tag = 'scoped memory for tpu_custom_call.1']
    #allocation12 [shape = 'u8[4096]{0}', space=vmem, size = 0x1000, scoped, tag = 'output window, operand 0, single buffered']
    #allocation13 [shape = 'u8[512]{0}', space=vmem, size = 0x400, scoped, tag = 'output window, operand 1, single buffered']
    #allocation14 [shape = 's32[1]{0}', space=sflag, size = 0x4, scoped, tag = 'scoped memory for tpu_custom_call.1']
    %20 = vsyncpa [#allocation5], 0
    %21 = vsyncpa [#allocation8], 0
    %22 = vsyncpa [#allocation11], 0
    %23 = vsyncpa [#allocation6], 0
    %24 = vsyncpa [#allocation14], 0
    // Predicated region
    $region2: #{tpu_custom_call.1} parent=1 // pred_check
      _
    $region3: #{tpu_custom_call.1} parent=1 // pred_check_branch
      %26 = sbr.rel (0) target = $region5
    $region4: #{tpu_custom_call.1} parent=1 // pred_region
      %s28 = ssub.s32 2048, 2048
      %29 = vsyncadd [#allocation5], %s28
      %s30 = sshll.u32 [#allocation4], 4
      %s31 = int_to_ptr.vmem [resolvable:$true] %s30
      %36 = dma.hbm_to_vmem [thread:$0]  %s1, 2048, %s31, [#allocation5], 128, 128, 8
    $region5: #{tpu_custom_call.1} parent=1 // pred_fallthru
      _
    // Predicated region
    $region6: #{tpu_custom_call.1} parent=1 // pred_check
      _
    $region7: #{tpu_custom_call.1} parent=1 // pred_check_branch
      %38 = sbr.rel (0) target = $region9
    $region8: #{tpu_custom_call.1} parent=1 // pred_region
      _
    $region9: #{tpu_custom_call.1} parent=1 // pred_fallthru
      _
    // Predicated region
    $region10: #{tpu_custom_call.1} parent=1 // pred_check
      _
    $region11: #{tpu_custom_call.1} parent=1 // pred_check_branch
      %40 = sbr.rel (0) target = $region13
    $region12: #{tpu_custom_call.1} parent=1 // pred_region
      %s42 = ssub.s32 6144, 6144
      %43 = vsyncadd [#allocation8], %s42
      %s44 = sshll.u32 [#allocation7], 4
      %s45 = int_to_ptr.vmem [resolvable:$true] %s44
      %50 = dma.hbm_to_vmem [thread:$0]  %s3, 6144, %s45, [#allocation8], 384, 384, 24
    $region13: #{tpu_custom_call.1} parent=1 // pred_fallthru
      _
    // Predicated region
    $region14: #{tpu_custom_call.1} parent=1 // pred_check
      _
    $region15: #{tpu_custom_call.1} parent=1 // pred_check_branch
      %52 = sbr.rel (0) target = $region17
    $region16: #{tpu_custom_call.1} parent=1 // pred_region
      %s54 = ssub.s32 6144, 6144
      %55 = vsyncadd [#allocation8], %s54
      %s56 = sshll.u32 [#allocation9], 4
      %s57 = int_to_ptr.vmem [resolvable:$true] %s56
      %62 = dma.hbm_to_vmem [thread:$0]  %s4, 6144, %s57, [#allocation8], 384, 384, 24
    $region17: #{tpu_custom_call.1} parent=1 // pred_fallthru
      _
    // Predicated region
    $region18: #{tpu_custom_call.1} parent=1 // pred_check
      _
    $region19: #{tpu_custom_call.1} parent=1 // pred_check_branch
      %64 = sbr.rel (0) target = $region21
    $region20: #{tpu_custom_call.1} parent=1 // pred_region
      _
    $region21: #{tpu_custom_call.1} parent=1 // pred_fallthru
      _
    // Predicated region
    $region22: #{tpu_custom_call.1} parent=1 // pred_check
      _
    $region23: #{tpu_custom_call.1} parent=1 // pred_check_branch
      %66 = sbr.rel (0) target = $region25
    $region24: #{tpu_custom_call.1} parent=1 // pred_region
      _
    $region25: #{tpu_custom_call.1} parent=1 // pred_fallthru
      _
    // Predicated region
    $region26: #{tpu_custom_call.1} parent=1 // pred_check
      _
    $region27: #{tpu_custom_call.1} parent=1 // pred_check_branch
      %68 = sbr.rel (0) target = $region29
    $region28: #{tpu_custom_call.1} parent=1 // pred_region
      %s70 = ssub.s32 2048, 2048
      %71 = vsyncadd [#allocation11], %s70
      %s72 = sshll.u32 [#allocation10], 4
      %s73 = int_to_ptr.vmem [resolvable:$true] %s72
      %78 = dma.hbm_to_vmem [thread:$0]  %s7, 2048, %s73, [#allocation11], 128, 128, 8
    $region29: #{tpu_custom_call.1} parent=1 // pred_fallthru
      _
    // Predicated region
    $region30: #{tpu_custom_call.1} parent=1 // pred_check
      _
    $region31: #{tpu_custom_call.1} parent=1 // pred_check_branch
      %80 = sbr.rel (0) target = $region33
    $region32: #{tpu_custom_call.1} parent=1 // pred_region
      _
    $region33: #{tpu_custom_call.1} parent=1 // pred_fallthru
      _
    // Predicated region
    $region34: #{tpu_custom_call.1} parent=1 // pred_check
      _
    $region35: #{tpu_custom_call.1} parent=1 // pred_check_branch
      %82 = sbr.rel (0) target = $region37
    $region36: #{tpu_custom_call.1} parent=1 // pred_region
      %83 = dma.done [#allocation5], 2048
    $region37: #{tpu_custom_call.1} parent=1 // pred_fallthru
      _
    // Predicated region
    $region38: #{tpu_custom_call.1} parent=1 // pred_check
      _
    $region39: #{tpu_custom_call.1} parent=1 // pred_check_branch
      %85 = sbr.rel (0) target = $region41
    $region40: #{tpu_custom_call.1} parent=1 // pred_region
      %86 = dma.done [#allocation8], 6144
    $region41: #{tpu_custom_call.1} parent=1 // pred_fallthru
      _
    // Predicated region
    $region42: #{tpu_custom_call.1} parent=1 // pred_check
      _
    $region43: #{tpu_custom_call.1} parent=1 // pred_check_branch
      %88 = sbr.rel (0) target = $region45
    $region44: #{tpu_custom_call.1} parent=1 // pred_region
      %89 = dma.done [#allocation8], 6144
    $region45: #{tpu_custom_call.1} parent=1 // pred_fallthru
      _
    // Predicated region
    $region46: #{tpu_custom_call.1} parent=1 // pred_check
      _
    $region47: #{tpu_custom_call.1} parent=1 // pred_check_branch
      %91 = sbr.rel (0) target = $region49
    $region48: #{tpu_custom_call.1} parent=1 // pred_region
      %92 = dma.done [#allocation11], 2048
    $region49: #{tpu_custom_call.1} parent=1 // pred_fallthru
      _
    %p93 = scmp.eq.s32.totalorder 0, 0
    // Predicated region
    $region50: #{tpu_custom_call.1} parent=1 // pred_check
      %p94 = pneg %p93
    $region51: #{tpu_custom_call.1} parent=1 // pred_check_branch
      %96 = sbr.rel (%p94) target = $region53
    $region52: #{tpu_custom_call.1} parent=1 // pred_region
      %v97 = vld [vmem:[%s2] sm:$0x1]
      %98 = vst [vmem:[#allocation13] sm:$0x1] %v97
    $region53: #{tpu_custom_call.1} parent=1 // pred_fallthru
      _
    %s99 = smul.u32 0, 8
    %v100 = vld [vmem:[#allocation13] sm:$0x1]
    %s101 = sld [smem:[#allocation3 + %s99]]
    %s102 = scalar_lea.vmem [#allocation4], %s101
    %v103 = vld [vmem:[%s102] sm:$0x1]
    %v104 = vmax.f32 %v103, 0.0
    %v105 = vld [vmem:[#allocation7] sm:$0xff]
    %v106 = vld [vmem:[#allocation7 + $0x8] sm:$0xff]
    %v107 = vld [vmem:[#allocation7 + $0x10] sm:$0xff]
    %v108 = vld [vmem:[#allocation7 + $0x18] sm:$0xff]
    %v109 = vld [vmem:[#allocation7 + $0x20] sm:$0xff]
    %v110 = vld [vmem:[#allocation7 + $0x28] sm:$0xff]
    %v111 = vld [vmem:[#allocation7 + $0x30] sm:$0xff]
    %v112 = vld [vmem:[#allocation7 + $0x38] sm:$0xff]
    %v113 = vld [vmem:[#allocation7 + $0x40] sm:$0xff]
    %v114 = vld [vmem:[#allocation7 + $0x48] sm:$0xff]
    %v115 = vld [vmem:[#allocation7 + $0x50] sm:$0xff]
    %v116 = vld [vmem:[#allocation7 + $0x58] sm:$0xff]
    %v117 = vld [vmem:[#allocation7 + $0x60] sm:$0xff]
    %v118 = vld [vmem:[#allocation7 + $0x68] sm:$0xff]
    %v119 = vld [vmem:[#allocation7 + $0x70] sm:$0xff]
    %v120 = vld [vmem:[#allocation7 + $0x78] sm:$0xff]
    %v121 = vld [vmem:[#allocation7 + $0x80] sm:$0xff]
    %v122 = vld [vmem:[#allocation7 + $0x88] sm:$0xff]
    %v123 = vld [vmem:[#allocation7 + $0x90] sm:$0xff]
    %v124 = vld [vmem:[#allocation7 + $0x98] sm:$0xff]
    %v125 = vld [vmem:[#allocation7 + $0xa0] sm:$0xff]
    %v126 = vld [vmem:[#allocation7 + $0xa8] sm:$0xff]
    %v127 = vld [vmem:[#allocation7 + $0xb0] sm:$0xff]
    %v128 = vld [vmem:[#allocation7 + $0xb8] sm:$0xff]
    %v129 = vld [vmem:[#allocation7 + $0xc0] sm:$0xff]
    %v130 = vld [vmem:[#allocation7 + $0xc8] sm:$0xff]
    %v131 = vld [vmem:[#allocation7 + $0xd0] sm:$0xff]
    %v132 = vld [vmem:[#allocation7 + $0xd8] sm:$0xff]
    %v133 = vld [vmem:[#allocation7 + $0xe0] sm:$0xff]
    %v134 = vld [vmem:[#allocation7 + $0xe8] sm:$0xff]
    %v135 = vld [vmem:[#allocation7 + $0xf0] sm:$0xff]
    %v136 = vld [vmem:[#allocation7 + $0xf8] sm:$0xff]
    %v137 = vld [vmem:[#allocation7 + $0x100] sm:$0xff]
    %v138 = vld [vmem:[#allocation7 + $0x108] sm:$0xff]
    %v139 = vld [vmem:[#allocation7 + $0x110] sm:$0xff]
    %v140 = vld [vmem:[#allocation7 + $0x118] sm:$0xff]
    %v141 = vld [vmem:[#allocation7 + $0x120] sm:$0xff]
    %v142 = vld [vmem:[#allocation7 + $0x128] sm:$0xff]
    %v143 = vld [vmem:[#allocation7 + $0x130] sm:$0xff]
    %v144 = vld [vmem:[#allocation7 + $0x138] sm:$0xff]
    %v145 = vld [vmem:[#allocation7 + $0x140] sm:$0xff]
    %v146 = vld [vmem:[#allocation7 + $0x148] sm:$0xff]
    %v147 = vld [vmem:[#allocation7 + $0x150] sm:$0xff]
    %v148 = vld [vmem:[#allocation7 + $0x158] sm:$0xff]
    %v149 = vld [vmem:[#allocation7 + $0x160] sm:$0xff]
    %v150 = vld [vmem:[#allocation7 + $0x168] sm:$0xff]
    %v151 = vld [vmem:[#allocation7 + $0x170] sm:$0xff]
    %v152 = vld [vmem:[#allocation7 + $0x178] sm:$0xff]
    %v153 = vld [vmem:[%s5] sm:$0x7]
    %v155 = vlaneseq
    %v156 = vshrl.u32 %v155, 7
    %v157 = vsub.s32 0, %v156
    %v158 = vrot.slane %v153, %v157
    %v159 = vlaneseq
    %v160 = vshrl.u32 %v159, 7
    %v161 = vsub.s32 1, %v160
    %v162 = vrot.slane %v153, %v161
    %v163 = vlaneseq
    %v164 = vshrl.u32 %v163, 7
    %v165 = vsub.s32 2, %v164
    %v166 = vrot.slane %v153, %v165
    %170 = vmatprep.subr.mxu0 %v106
    %171 = vmatpush1.msra.mxu0 %v105
    %172 = vmatprep.subr.mxu0 %v109
    %173 = vmatpush1.msra.mxu0 %v108
    %174 = vmatprep.subr.mxu0 %v112
    %175 = vmatpush1.msra.mxu0 %v111
    %176 = vmatprep.subr.mxu0 %v115
    %177 = vmatpush1.msra.mxu0 %v114
    %178 = vmatprep.subr.mxu0 %v118
    %179 = vmatpush1.msra.mxu0 %v117
    %180 = vmatprep.subr.mxu0 %v121
    %181 = vmatpush1.msra.mxu0 %v120
    %182 = vmatprep.subr.mxu0 %v124
    %183 = vmatpush1.msra.mxu0 %v123
    %184 = vmatprep.subr.mxu0 %v127
    %185 = vmatpush1.msra.mxu0 %v126
    %186 = vmatprep.subr.mxu0 %v130
    %187 = vmatpush1.msra.mxu0 %v129
    %188 = vmatprep.subr.mxu0 %v133
    %189 = vmatpush1.msra.mxu0 %v132
    %190 = vmatprep.subr.mxu0 %v136
    %191 = vmatpush1.msra.mxu0 %v135
    %192 = vmatprep.subr.mxu0 %v139
    %193 = vmatpush1.msra.mxu0 %v138
    %194 = vmatprep.subr.mxu0 %v142
    %195 = vmatpush1.msra.mxu0 %v141
    %196 = vmatprep.subr.mxu0 %v145
    %197 = vmatpush1.msra.mxu0 %v144
    %198 = vmatprep.subr.mxu0 %v148
    %199 = vmatpush1.msra.mxu0 %v147
    %200 = vmatprep.subr.mxu0 %v151
    %201 = vmatpush1.msra.mxu0 %v150
    %202 = vmatprep.subr.mxu0 0.0
    %203 = vmatpush1.msra.mxu0 0.0
    %204 = vmatprep.subr.mxu0 0.0
    %205 = vmatpush1.msra.mxu0 0.0
    %206 = vmatprep.subr.mxu0 0.0
    %207 = vmatpush1.msra.mxu0 0.0
    %208 = vmatprep.subr.mxu0 0.0
    %209 = vmatpush1.msra.mxu0 0.0
    %210 = vmatprep.subr.mxu0 0.0
    %211 = vmatpush1.msra.mxu0 0.0
    %212 = vmatprep.subr.mxu0 0.0
    %213 = vmatpush1.msra.mxu0 0.0
    %214 = vmatprep.subr.mxu0 0.0
    %215 = vmatpush1.msra.mxu0 0.0
    %216 = vmatprep.subr.mxu0 0.0
    %217 = vmatpush1.msra.mxu0 0.0
    %218 = vmatprep.subr.mxu0 0.0
    %219 = vmatpush1.msra.mxu0 0.0
    %220 = vmatprep.subr.mxu0 0.0
    %221 = vmatpush1.msra.mxu0 0.0
    %222 = vmatprep.subr.mxu0 0.0
    %223 = vmatpush1.msra.mxu0 0.0
    %224 = vmatprep.subr.mxu0 0.0
    %225 = vmatpush1.msra.mxu0 0.0
    %226 = vmatprep.subr.mxu0 0.0
    %227 = vmatpush1.msra.mxu0 0.0
    %228 = vmatprep.subr.mxu0 0.0
    %229 = vmatpush1.msra.mxu0 0.0
    %230 = vmatprep.subr.mxu0 0.0
    %231 = vmatpush1.msra.mxu0 0.0
    %232 = vmatprep.subr.mxu0 0.0
    %233 = vmatpush1.msra.mxu0 0.0
    %234 = vmatprep.mubr.f32.mxu0 0.0
    %235 = vmatmul.mubr.f32.gmra.mrb[0].mxu0 %v104
    %v236 = vpop.f32.mrb[0].mxu0
    %v237 = vadd.f32 %v158, %v236
    %v238 = vpop.f32.mrb[0].mxu0
    %v239 = vadd.f32 %v162, %v238
    %240 = vdwg.mxu0
    %241 = vmatprep.subr.mxu0 0.0
    %242 = vmatpush1.msra.mxu0 %v107
    %243 = vmatprep.subr.mxu0 0.0
    %244 = vmatpush1.msra.mxu0 %v110
    %245 = vmatprep.subr.mxu0 0.0
    %246 = vmatpush1.msra.mxu0 %v113
    %247 = vmatprep.subr.mxu0 0.0
    %248 = vmatpush1.msra.mxu0 %v116
    %249 = vmatprep.subr.mxu0 0.0
    %250 = vmatpush1.msra.mxu0 %v119
    %251 = vmatprep.subr.mxu0 0.0
    %252 = vmatpush1.msra.mxu0 %v122
    %253 = vmatprep.subr.mxu0 0.0
    %254 = vmatpush1.msra.mxu0 %v125
    %255 = vmatprep.subr.mxu0 0.0
    %256 = vmatpush1.msra.mxu0 %v128
    %257 = vmatprep.subr.mxu0 0.0
    %258 = vmatpush1.msra.mxu0 %v131
    %259 = vmatprep.subr.mxu0 0.0
    %260 = vmatpush1.msra.mxu0 %v134
    %261 = vmatprep.subr.mxu0 0.0
    %262 = vmatpush1.msra.mxu0 %v137
    %263 = vmatprep.subr.mxu0 0.0
    %264 = vmatpush1.msra.mxu0 %v140
    %265 = vmatprep.subr.mxu0 0.0
    %266 = vmatpush1.msra.mxu0 %v143
    %267 = vmatprep.subr.mxu0 0.0
    %268 = vmatpush1.msra.mxu0 %v146
    %269 = vmatprep.subr.mxu0 0.0
    %270 = vmatpush1.msra.mxu0 %v149
    %271 = vmatprep.subr.mxu0 0.0
    %272 = vmatpush1.msra.mxu0 %v152
    %273 = vmatprep.subr.mxu0 0.0
    %274 = vmatpush1.msra.mxu0 0.0
    %275 = vmatprep.subr.mxu0 0.0
    %276 = vmatpush1.msra.mxu0 0.0
    %277 = vmatprep.subr.mxu0 0.0
    %278 = vmatpush1.msra.mxu0 0.0
    %279 = vmatprep.subr.mxu0 0.0
    %280 = vmatpush1.msra.mxu0 0.0
    %281 = vmatprep.subr.mxu0 0.0
    %282 = vmatpush1.msra.mxu0 0.0
    %283 = vmatprep.subr.mxu0 0.0
    %284 = vmatpush1.msra.mxu0 0.0
    %285 = vmatprep.subr.mxu0 0.0
    %286 = vmatpush1.msra.mxu0 0.0
    %287 = vmatprep.subr.mxu0 0.0
    %288 = vmatpush1.msra.mxu0 0.0
    %289 = vmatprep.subr.mxu0 0.0
    %290 = vmatpush1.msra.mxu0 0.0
    %291 = vmatprep.subr.mxu0 0.0
    %292 = vmatpush1.msra.mxu0 0.0
    %293 = vmatprep.subr.mxu0 0.0
    %294 = vmatpush1.msra.mxu0 0.0
    %295 = vmatprep.subr.mxu0 0.0
    %296 = vmatpush1.msra.mxu0 0.0
    %297 = vmatprep.subr.mxu0 0.0
    %298 = vmatpush1.msra.mxu0 0.0
    %299 = vmatprep.subr.mxu0 0.0
    %300 = vmatpush1.msra.mxu0 0.0
    %301 = vmatprep.subr.mxu0 0.0
    %302 = vmatpush1.msra.mxu0 0.0
    %303 = vmatprep.subr.mxu0 0.0
    %304 = vmatpush1.msra.mxu0 0.0
    %305 = vmatprep.mubr.f32.mxu0 0.0
    %306 = vmatmul.mubr.f32.gmra.mrb[0].mxu0 %v104
    %v307 = vpop.f32.mrb[0].mxu0
    %v308 = vadd.f32 %v166, %v307
    %v309 = vpop.f32.mrb[0].mxu0
    %310 = vdwg.mxu0
    %v311 = vld [vmem:[#allocation9] sm:$0xff]
    %v312 = vld [vmem:[#allocation9 + $0x8] sm:$0xff]
    %v313 = vld [vmem:[#allocation9 + $0x10] sm:$0xff]
    %v314 = vld [vmem:[#allocation9 + $0x18] sm:$0xff]
    %v315 = vld [vmem:[#allocation9 + $0x20] sm:$0xff]
    %v316 = vld [vmem:[#allocation9 + $0x28] sm:$0xff]
    %v317 = vld [vmem:[#allocation9 + $0x30] sm:$0xff]
    %v318 = vld [vmem:[#allocation9 + $0x38] sm:$0xff]
    %v319 = vld [vmem:[#allocation9 + $0x40] sm:$0xff]
    %v320 = vld [vmem:[#allocation9 + $0x48] sm:$0xff]
    %v321 = vld [vmem:[#allocation9 + $0x50] sm:$0xff]
    %v322 = vld [vmem:[#allocation9 + $0x58] sm:$0xff]
    %v323 = vld [vmem:[#allocation9 + $0x60] sm:$0xff]
    %v324 = vld [vmem:[#allocation9 + $0x68] sm:$0xff]
    %v325 = vld [vmem:[#allocation9 + $0x70] sm:$0xff]
    %v326 = vld [vmem:[#allocation9 + $0x78] sm:$0xff]
    %v327 = vld [vmem:[#allocation9 + $0x80] sm:$0xff]
    %v328 = vld [vmem:[#allocation9 + $0x88] sm:$0xff]
    %v329 = vld [vmem:[#allocation9 + $0x90] sm:$0xff]
    %v330 = vld [vmem:[#allocation9 + $0x98] sm:$0xff]
    %v331 = vld [vmem:[#allocation9 + $0xa0] sm:$0xff]
    %v332 = vld [vmem:[#allocation9 + $0xa8] sm:$0xff]
    %v333 = vld [vmem:[#allocation9 + $0xb0] sm:$0xff]
    %v334 = vld [vmem:[#allocation9 + $0xb8] sm:$0xff]
    %v335 = vld [vmem:[#allocation9 + $0xc0] sm:$0xff]
    %v336 = vld [vmem:[#allocation9 + $0xc8] sm:$0xff]
    %v337 = vld [vmem:[#allocation9 + $0xd0] sm:$0xff]
    %v338 = vld [vmem:[#allocation9 + $0xd8] sm:$0xff]
    %v339 = vld [vmem:[#allocation9 + $0xe0] sm:$0xff]
    %v340 = vld [vmem:[#allocation9 + $0xe8] sm:$0xff]
    %v341 = vld [vmem:[#allocation9 + $0xf0] sm:$0xff]
    %v342 = vld [vmem:[#allocation9 + $0xf8] sm:$0xff]
    %v343 = vld [vmem:[#allocation9 + $0x100] sm:$0xff]
    %v344 = vld [vmem:[#allocation9 + $0x108] sm:$0xff]
    %v345 = vld [vmem:[#allocation9 + $0x110] sm:$0xff]
    %v346 = vld [vmem:[#allocation9 + $0x118] sm:$0xff]
    %v347 = vld [vmem:[#allocation9 + $0x120] sm:$0xff]
    %v348 = vld [vmem:[#allocation9 + $0x128] sm:$0xff]
    %v349 = vld [vmem:[#allocation9 + $0x130] sm:$0xff]
    %v350 = vld [vmem:[#allocation9 + $0x138] sm:$0xff]
    %v351 = vld [vmem:[#allocation9 + $0x140] sm:$0xff]
    %v352 = vld [vmem:[#allocation9 + $0x148] sm:$0xff]
    %v353 = vld [vmem:[#allocation9 + $0x150] sm:$0xff]
    %v354 = vld [vmem:[#allocation9 + $0x158] sm:$0xff]
    %v355 = vld [vmem:[#allocation9 + $0x160] sm:$0xff]
    %v356 = vld [vmem:[#allocation9 + $0x168] sm:$0xff]
    %v357 = vld [vmem:[#allocation9 + $0x170] sm:$0xff]
    %v358 = vld [vmem:[#allocation9 + $0x178] sm:$0xff]
    %v359 = vld [vmem:[%s6] sm:$0x7]
    %v361 = vlaneseq
    %v362 = vshrl.u32 %v361, 7
    %v363 = vsub.s32 0, %v362
    %v364 = vrot.slane %v359, %v363
    %v365 = vlaneseq
    %v366 = vshrl.u32 %v365, 7
    %v367 = vsub.s32 1, %v366
    %v368 = vrot.slane %v359, %v367
    %v369 = vlaneseq
    %v370 = vshrl.u32 %v369, 7
    %v371 = vsub.s32 2, %v370
    %v372 = vrot.slane %v359, %v371
    %376 = vmatprep.subr.mxu0 %v312
    %377 = vmatpush1.msra.mxu0 %v311
    %378 = vmatprep.subr.mxu0 %v315
    %379 = vmatpush1.msra.mxu0 %v314
    %380 = vmatprep.subr.mxu0 %v318
    %381 = vmatpush1.msra.mxu0 %v317
    %382 = vmatprep.subr.mxu0 %v321
    %383 = vmatpush1.msra.mxu0 %v320
    %384 = vmatprep.subr.mxu0 %v324
    %385 = vmatpush1.msra.mxu0 %v323
    %386 = vmatprep.subr.mxu0 %v327
    %387 = vmatpush1.msra.mxu0 %v326
    %388 = vmatprep.subr.mxu0 %v330
    %389 = vmatpush1.msra.mxu0 %v329
    %390 = vmatprep.subr.mxu0 %v333
    %391 = vmatpush1.msra.mxu0 %v332
    %392 = vmatprep.subr.mxu0 %v336
    %393 = vmatpush1.msra.mxu0 %v335
    %394 = vmatprep.subr.mxu0 %v339
    %395 = vmatpush1.msra.mxu0 %v338
    %396 = vmatprep.subr.mxu0 %v342
    %397 = vmatpush1.msra.mxu0 %v341
    %398 = vmatprep.subr.mxu0 %v345
    %399 = vmatpush1.msra.mxu0 %v344
    %400 = vmatprep.subr.mxu0 %v348
    %401 = vmatpush1.msra.mxu0 %v347
    %402 = vmatprep.subr.mxu0 %v351
    %403 = vmatpush1.msra.mxu0 %v350
    %404 = vmatprep.subr.mxu0 %v354
    %405 = vmatpush1.msra.mxu0 %v353
    %406 = vmatprep.subr.mxu0 %v357
    %407 = vmatpush1.msra.mxu0 %v356
    %408 = vmatprep.subr.mxu0 0.0
    %409 = vmatpush1.msra.mxu0 0.0
    %410 = vmatprep.subr.mxu0 0.0
    %411 = vmatpush1.msra.mxu0 0.0
    %412 = vmatprep.subr.mxu0 0.0
    %413 = vmatpush1.msra.mxu0 0.0
    %414 = vmatprep.subr.mxu0 0.0
    %415 = vmatpush1.msra.mxu0 0.0
    %416 = vmatprep.subr.mxu0 0.0
    %417 = vmatpush1.msra.mxu0 0.0
    %418 = vmatprep.subr.mxu0 0.0
    %419 = vmatpush1.msra.mxu0 0.0
    %420 = vmatprep.subr.mxu0 0.0
    %421 = vmatpush1.msra.mxu0 0.0
    %422 = vmatprep.subr.mxu0 0.0
    %423 = vmatpush1.msra.mxu0 0.0
    %424 = vmatprep.subr.mxu0 0.0
    %425 = vmatpush1.msra.mxu0 0.0
    %426 = vmatprep.subr.mxu0 0.0
    %427 = vmatpush1.msra.mxu0 0.0
    %428 = vmatprep.subr.mxu0 0.0
    %429 = vmatpush1.msra.mxu0 0.0
    %430 = vmatprep.subr.mxu0 0.0
    %431 = vmatpush1.msra.mxu0 0.0
    %432 = vmatprep.subr.mxu0 0.0
    %433 = vmatpush1.msra.mxu0 0.0
    %434 = vmatprep.subr.mxu0 0.0
    %435 = vmatpush1.msra.mxu0 0.0
    %436 = vmatprep.subr.mxu0 0.0
    %437 = vmatpush1.msra.mxu0 0.0
    %438 = vmatprep.subr.mxu0 0.0
    %439 = vmatpush1.msra.mxu0 0.0
    %440 = vmatprep.mubr.f32.mxu0 0.0
    %441 = vmatmul.mubr.f32.gmra.mrb[0].mxu0 %v100
    %v442 = vpop.f32.mrb[0].mxu0
    %v443 = vadd.f32 %v364, %v442
    %v444 = vpop.f32.mrb[0].mxu0
    %v445 = vadd.f32 %v368, %v444
    %446 = vdwg.mxu0
    %447 = vmatprep.subr.mxu0 0.0
    %448 = vmatpush1.msra.mxu0 %v313
    %449 = vmatprep.subr.mxu0 0.0
    %450 = vmatpush1.msra.mxu0 %v316
    %451 = vmatprep.subr.mxu0 0.0
    %452 = vmatpush1.msra.mxu0 %v319
    %453 = vmatprep.subr.mxu0 0.0
    %454 = vmatpush1.msra.mxu0 %v322
    %455 = vmatprep.subr.mxu0 0.0
    %456 = vmatpush1.msra.mxu0 %v325
    %457 = vmatprep.subr.mxu0 0.0
    %458 = vmatpush1.msra.mxu0 %v328
    %459 = vmatprep.subr.mxu0 0.0
    %460 = vmatpush1.msra.mxu0 %v331
    %461 = vmatprep.subr.mxu0 0.0
    %462 = vmatpush1.msra.mxu0 %v334
    %463 = vmatprep.subr.mxu0 0.0
    %464 = vmatpush1.msra.mxu0 %v337
    %465 = vmatprep.subr.mxu0 0.0
    %466 = vmatpush1.msra.mxu0 %v340
    %467 = vmatprep.subr.mxu0 0.0
    %468 = vmatpush1.msra.mxu0 %v343
    %469 = vmatprep.subr.mxu0 0.0
    %470 = vmatpush1.msra.mxu0 %v346
    %471 = vmatprep.subr.mxu0 0.0
    %472 = vmatpush1.msra.mxu0 %v349
    %473 = vmatprep.subr.mxu0 0.0
    %474 = vmatpush1.msra.mxu0 %v352
    %475 = vmatprep.subr.mxu0 0.0
    %476 = vmatpush1.msra.mxu0 %v355
    %477 = vmatprep.subr.mxu0 0.0
    %478 = vmatpush1.msra.mxu0 %v358
    %479 = vmatprep.subr.mxu0 0.0
    %480 = vmatpush1.msra.mxu0 0.0
    %481 = vmatprep.subr.mxu0 0.0
    %482 = vmatpush1.msra.mxu0 0.0
    %483 = vmatprep.subr.mxu0 0.0
    %484 = vmatpush1.msra.mxu0 0.0
    %485 = vmatprep.subr.mxu0 0.0
    %486 = vmatpush1.msra.mxu0 0.0
    %487 = vmatprep.subr.mxu0 0.0
    %488 = vmatpush1.msra.mxu0 0.0
    %489 = vmatprep.subr.mxu0 0.0
    %490 = vmatpush1.msra.mxu0 0.0
    %491 = vmatprep.subr.mxu0 0.0
    %492 = vmatpush1.msra.mxu0 0.0
    %493 = vmatprep.subr.mxu0 0.0
    %494 = vmatpush1.msra.mxu0 0.0
    %495 = vmatprep.subr.mxu0 0.0
    %496 = vmatpush1.msra.mxu0 0.0
    %497 = vmatprep.subr.mxu0 0.0
    %498 = vmatpush1.msra.mxu0 0.0
    %499 = vmatprep.subr.mxu0 0.0
    %500 = vmatpush1.msra.mxu0 0.0
    %501 = vmatprep.subr.mxu0 0.0
    %502 = vmatpush1.msra.mxu0 0.0
    %503 = vmatprep.subr.mxu0 0.0
    %504 = vmatpush1.msra.mxu0 0.0
    %505 = vmatprep.subr.mxu0 0.0
    %506 = vmatpush1.msra.mxu0 0.0
    %507 = vmatprep.subr.mxu0 0.0
    %508 = vmatpush1.msra.mxu0 0.0
    %509 = vmatprep.subr.mxu0 0.0
    %510 = vmatpush1.msra.mxu0 0.0
    %511 = vmatprep.mubr.f32.mxu0 0.0
    %512 = vmatmul.mubr.f32.gmra.mrb[0].mxu0 %v100
    %v513 = vpop.f32.mrb[0].mxu0
    %v514 = vadd.f32 %v372, %v513
    %v515 = vpop.f32.mrb[0].mxu0
    %516 = vdwg.mxu0
    %v517 = vadd.f32 %v237, %v443
    %v518 = vxor.u32 %v517, 2147483648
    %v519 = vmul.f32 %v518, 1.442695
    %v520 = vpow.pop %v519
    %v521 = vadd.f32 %v520, 1.0
    %v522 = vrcp.pop %v521
    %v523 = vmul.f32 1.0, %v522
    %v524 = vadd.f32 %v239, %v445
    %v525 = vxor.u32 %v524, 2147483648
    %v526 = vmul.f32 %v525, 1.442695
    %v527 = vpow.pop %v526
    %v528 = vadd.f32 %v527, 1.0
    %v529 = vrcp.pop %v528
    %v530 = vmul.f32 1.0, %v529
    %v531 = vmul.f32 %v523, %v514
    %v532 = vadd.f32 %v308, %v531
    %v533 = vtanh.pop %v532
    %v534 = vsub.f32 1.0, %v530
    %v535 = vmul.f32 %v534, %v533
    %v536 = vmul.f32 %v530, %v100
    %v537 = vadd.f32 %v535, %v536
    %v538 = vld [vmem:[#allocation10] sm:$0xff]
    %v539 = vld [vmem:[#allocation10 + $0x8] sm:$0xff]
    %v540 = vld [vmem:[#allocation10 + $0x10] sm:$0xff]
    %v541 = vld [vmem:[#allocation10 + $0x18] sm:$0xff]
    %v542 = vld [vmem:[#allocation10 + $0x20] sm:$0xff]
    %v543 = vld [vmem:[#allocation10 + $0x28] sm:$0xff]
    %v544 = vld [vmem:[#allocation10 + $0x30] sm:$0xff]
    %v545 = vld [vmem:[#allocation10 + $0x38] sm:$0xff]
    %v546 = vld [vmem:[#allocation10 + $0x40] sm:$0xff]
    %v547 = vld [vmem:[#allocation10 + $0x48] sm:$0xff]
    %v548 = vld [vmem:[#allocation10 + $0x50] sm:$0xff]
    %v549 = vld [vmem:[#allocation10 + $0x58] sm:$0xff]
    %v550 = vld [vmem:[#allocation10 + $0x60] sm:$0xff]
    %v551 = vld [vmem:[#allocation10 + $0x68] sm:$0xff]
    %v552 = vld [vmem:[#allocation10 + $0x70] sm:$0xff]
    %v553 = vld [vmem:[#allocation10 + $0x78] sm:$0xff]
    %v554 = vld [vmem:[%s8] sm:$0x1]
    %555 = vmatprep.subr.mxu0 0.0
    %556 = vmatpush1.msra.mxu0 %v538
    %557 = vmatprep.subr.mxu0 0.0
    %558 = vmatpush1.msra.mxu0 %v539
    %559 = vmatprep.subr.mxu0 0.0
    %560 = vmatpush1.msra.mxu0 %v540
    %561 = vmatprep.subr.mxu0 0.0
    %562 = vmatpush1.msra.mxu0 %v541
    %563 = vmatprep.subr.mxu0 0.0
    %564 = vmatpush1.msra.mxu0 %v542
    %565 = vmatprep.subr.mxu0 0.0
    %566 = vmatpush1.msra.mxu0 %v543
    %567 = vmatprep.subr.mxu0 0.0
    %568 = vmatpush1.msra.mxu0 %v544
    %569 = vmatprep.subr.mxu0 0.0
    %570 = vmatpush1.msra.mxu0 %v545
    %571 = vmatprep.subr.mxu0 0.0
    %572 = vmatpush1.msra.mxu0 %v546
    %573 = vmatprep.subr.mxu0 0.0
    %574 = vmatpush1.msra.mxu0 %v547
    %575 = vmatprep.subr.mxu0 0.0
    %576 = vmatpush1.msra.mxu0 %v548
    %577 = vmatprep.subr.mxu0 0.0
    %578 = vmatpush1.msra.mxu0 %v549
    %579 = vmatprep.subr.mxu0 0.0
    %580 = vmatpush1.msra.mxu0 %v550
    %581 = vmatprep.subr.mxu0 0.0
    %582 = vmatpush1.msra.mxu0 %v551
    %583 = vmatprep.subr.mxu0 0.0
    %584 = vmatpush1.msra.mxu0 %v552
    %585 = vmatprep.subr.mxu0 0.0
    %586 = vmatpush1.msra.mxu0 %v553
    %587 = vmatprep.subr.mxu0 0.0
    %588 = vmatpush1.msra.mxu0 0.0
    %589 = vmatprep.subr.mxu0 0.0
    %590 = vmatpush1.msra.mxu0 0.0
    %591 = vmatprep.subr.mxu0 0.0
    %592 = vmatpush1.msra.mxu0 0.0
    %593 = vmatprep.subr.mxu0 0.0
    %594 = vmatpush1.msra.mxu0 0.0
    %595 = vmatprep.subr.mxu0 0.0
    %596 = vmatpush1.msra.mxu0 0.0
    %597 = vmatprep.subr.mxu0 0.0
    %598 = vmatpush1.msra.mxu0 0.0
    %599 = vmatprep.subr.mxu0 0.0
    %600 = vmatpush1.msra.mxu0 0.0
    %601 = vmatprep.subr.mxu0 0.0
    %602 = vmatpush1.msra.mxu0 0.0
    %603 = vmatprep.subr.mxu0 0.0
    %604 = vmatpush1.msra.mxu0 0.0
    %605 = vmatprep.subr.mxu0 0.0
    %606 = vmatpush1.msra.mxu0 0.0
    %607 = vmatprep.subr.mxu0 0.0
    %608 = vmatpush1.msra.mxu0 0.0
    %609 = vmatprep.subr.mxu0 0.0
    %610 = vmatpush1.msra.mxu0 0.0
    %611 = vmatprep.subr.mxu0 0.0
    %612 = vmatpush1.msra.mxu0 0.0
    %613 = vmatprep.subr.mxu0 0.0
    %614 = vmatpush1.msra.mxu0 0.0
    %615 = vmatprep.subr.mxu0 0.0
    %616 = vmatpush1.msra.mxu0 0.0
    %617 = vmatprep.subr.mxu0 0.0
    %618 = vmatpush1.msra.mxu0 0.0
    %619 = vmatprep.mubr.f32.mxu0 0.0
    %620 = vmatmul.mubr.f32.gmra.mrb[0].mxu0 %v537
    %v621 = vpop.f32.mrb[0].mxu0
    %v622 = vadd.f32 %v554, %v621
    %v623 = vpop.f32.mrb[0].mxu0
    %624 = vdwg.mxu0
    %vm625 = vcmask 1040384
    %v626 = vsel %vm625, %v622, -inf
    %627 = vmax.xlane.f32.xlu0 %v626
    %v628 = vpop.xlane.xlu0 %627
    %v629 = vsub.f32 %v622, %v628
    %v630 = vmul.f32 %v629, 1.442695
    %v631 = vpow.pop %v630
    %v632 = vsel %vm625, %v631, 0.0
    %633 = vadd.xlane.f32.xlu0 %v632
    %v634 = vpop.xlane.xlu0 %633
    %v635 = vlog2.pop %v634
    %v636 = vmul.f32 %v635, 0.6931472
    %v637 = vadd.f32 %v628, %v636
    %v638 = vsub.f32 %v622, %v637
    %639 = vst [vmem:[#allocation12] sm:$0x1] %v638
    %p640 = scmp.lt.s32.totalorder %s99, 1
    %s641 = scalar_select %p640, 1, 0
    %v642 = vstv %s641
    %vm643 = vcmp.eq.s32.totalorder %v642, 1
    %v644 = vsel %vm643, %v537, %v100
    %s645 = sadd.s32 %s99, 1
    %s646 = sld [smem:[#allocation3 + %s645]]
    %s647 = scalar_lea.vmem [#allocation4], %s646
    %v648 = vld [vmem:[%s647] sm:$0x1]
    %v649 = vmax.f32 %v648, 0.0
    %v650 = vld [vmem:[#allocation7] sm:$0xff]
    %v651 = vld [vmem:[#allocation7 + $0x8] sm:$0xff]
    %v652 = vld [vmem:[#allocation7 + $0x10] sm:$0xff]
    %v653 = vld [vmem:[#allocation7 + $0x18] sm:$0xff]
    %v654 = vld [vmem:[#allocation7 + $0x20] sm:$0xff]
    %v655 = vld [vmem:[#allocation7 + $0x28] sm:$0xff]
    %v656 = vld [vmem:[#allocation7 + $0x30] sm:$0xff]
    %v657 = vld [vmem:[#allocation7 + $0x38] sm:$0xff]
    %v658 = vld [vmem:[#allocation7 + $0x40] sm:$0xff]
    %v659 = vld [vmem:[#allocation7 + $0x48] sm:$0xff]
    %v660 = vld [vmem:[#allocation7 + $0x50] sm:$0xff]
    %v661 = vld [vmem:[#allocation7 + $0x58] sm:$0xff]
    %v662 = vld [vmem:[#allocation7 + $0x60] sm:$0xff]
    %v663 = vld [vmem:[#allocation7 + $0x68] sm:$0xff]
    %v664 = vld [vmem:[#allocation7 + $0x70] sm:$0xff]
    %v665 = vld [vmem:[#allocation7 + $0x78] sm:$0xff]
    %v666 = vld [vmem:[#allocation7 + $0x80] sm:$0xff]
    %v667 = vld [vmem:[#allocation7 + $0x88] sm:$0xff]
    %v668 = vld [vmem:[#allocation7 + $0x90] sm:$0xff]
    %v669 = vld [vmem:[#allocation7 + $0x98] sm:$0xff]
    %v670 = vld [vmem:[#allocation7 + $0xa0] sm:$0xff]
    %v671 = vld [vmem:[#allocation7 + $0xa8] sm:$0xff]
    %v672 = vld [vmem:[#allocation7 + $0xb0] sm:$0xff]
    %v673 = vld [vmem:[#allocation7 + $0xb8] sm:$0xff]
    %v674 = vld [vmem:[#allocation7 + $0xc0] sm:$0xff]
    %v675 = vld [vmem:[#allocation7 + $0xc8] sm:$0xff]
    %v676 = vld [vmem:[#allocation7 + $0xd0] sm:$0xff]
    %v677 = vld [vmem:[#allocation7 + $0xd8] sm:$0xff]
    %v678 = vld [vmem:[#allocation7 + $0xe0] sm:$0xff]
    %v679 = vld [vmem:[#allocation7 + $0xe8] sm:$0xff]
    %v680 = vld [vmem:[#allocation7 + $0xf0] sm:$0xff]
    %v681 = vld [vmem:[#allocation7 + $0xf8] sm:$0xff]
    %v682 = vld [vmem:[#allocation7 + $0x100] sm:$0xff]
    %v683 = vld [vmem:[#allocation7 + $0x108] sm:$0xff]
    %v684 = vld [vmem:[#allocation7 + $0x110] sm:$0xff]
    %v685 = vld [vmem:[#allocation7 + $0x118] sm:$0xff]
    %v686 = vld [vmem:[#allocation7 + $0x120] sm:$0xff]
    %v687 = vld [vmem:[#allocation7 + $0x128] sm:$0xff]
    %v688 = vld [vmem:[#allocation7 + $0x130] sm:$0xff]
    %v689 = vld [vmem:[#allocation7 + $0x138] sm:$0xff]
    %v690 = vld [vmem:[#allocation7 + $0x140] sm:$0xff]
    %v691 = vld [vmem:[#allocation7 + $0x148] sm:$0xff]
    %v692 = vld [vmem:[#allocation7 + $0x150] sm:$0xff]
    %v693 = vld [vmem:[#allocation7 + $0x158] sm:$0xff]
    %v694 = vld [vmem:[#allocation7 + $0x160] sm:$0xff]
    %v695 = vld [vmem:[#allocation7 + $0x168] sm:$0xff]
    %v696 = vld [vmem:[#allocation7 + $0x170] sm:$0xff]
    %v697 = vld [vmem:[#allocation7 + $0x178] sm:$0xff]
    %v698 = vld [vmem:[%s5] sm:$0x7]
    %v700 = vlaneseq
    %v701 = vshrl.u32 %v700, 7
    %v702 = vsub.s32 0, %v701
    %v703 = vrot.slane %v698, %v702
    %v704 = vlaneseq
    %v705 = vshrl.u32 %v704, 7
    %v706 = vsub.s32 1, %v705
    %v707 = vrot.slane %v698, %v706
    %v708 = vlaneseq
    %v709 = vshrl.u32 %v708, 7
    %v710 = vsub.s32 2, %v709
    %v711 = vrot.slane %v698, %v710
    %715 = vmatprep.subr.mxu0 %v651
    %716 = vmatpush1.msra.mxu0 %v650
    %717 = vmatprep.subr.mxu0 %v654
    %718 = vmatpush1.msra.mxu0 %v653
    %719 = vmatprep.subr.mxu0 %v657
    %720 = vmatpush1.msra.mxu0 %v656
    %721 = vmatprep.subr.mxu0 %v660
    %722 = vmatpush1.msra.mxu0 %v659
    %723 = vmatprep.subr.mxu0 %v663
    %724 = vmatpush1.msra.mxu0 %v662
    %725 = vmatprep.subr.mxu0 %v666
    %726 = vmatpush1.msra.mxu0 %v665
    %727 = vmatprep.subr.mxu0 %v669
    %728 = vmatpush1.msra.mxu0 %v668
    %729 = vmatprep.subr.mxu0 %v672
    %730 = vmatpush1.msra.mxu0 %v671
    %731 = vmatprep.subr.mxu0 %v675
    %732 = vmatpush1.msra.mxu0 %v674
    %733 = vmatprep.subr.mxu0 %v678
    %734 = vmatpush1.msra.mxu0 %v677
    %735 = vmatprep.subr.mxu0 %v681
    %736 = vmatpush1.msra.mxu0 %v680
    %737 = vmatprep.subr.mxu0 %v684
    %738 = vmatpush1.msra.mxu0 %v683
    %739 = vmatprep.subr.mxu0 %v687
    %740 = vmatpush1.msra.mxu0 %v686
    %741 = vmatprep.subr.mxu0 %v690
    %742 = vmatpush1.msra.mxu0 %v689
    %743 = vmatprep.subr.mxu0 %v693
    %744 = vmatpush1.msra.mxu0 %v692
    %745 = vmatprep.subr.mxu0 %v696
    %746 = vmatpush1.msra.mxu0 %v695
    %747 = vmatprep.subr.mxu0 0.0
    %748 = vmatpush1.msra.mxu0 0.0
    %749 = vmatprep.subr.mxu0 0.0
    %750 = vmatpush1.msra.mxu0 0.0
    %751 = vmatprep.subr.mxu0 0.0
    %752 = vmatpush1.msra.mxu0 0.0
    %753 = vmatprep.subr.mxu0 0.0
    %754 = vmatpush1.msra.mxu0 0.0
    %755 = vmatprep.subr.mxu0 0.0
    %756 = vmatpush1.msra.mxu0 0.0
    %757 = vmatprep.subr.mxu0 0.0
    %758 = vmatpush1.msra.mxu0 0.0
    %759 = vmatprep.subr.mxu0 0.0
    %760 = vmatpush1.msra.mxu0 0.0
    %761 = vmatprep.subr.mxu0 0.0
    %762 = vmatpush1.msra.mxu0 0.0
    %763 = vmatprep.subr.mxu0 0.0
    %764 = vmatpush1.msra.mxu0 0.0
    %765 = vmatprep.subr.mxu0 0.0
    %766 = vmatpush1.msra.mxu0 0.0
    %767 = vmatprep.subr.mxu0 0.0
    %768 = vmatpush1.msra.mxu0 0.0
    %769 = vmatprep.subr.mxu0 0.0
    %770 = vmatpush1.msra.mxu0 0.0
    %771 = vmatprep.subr.mxu0 0.0
    %772 = vmatpush1.msra.mxu0 0.0
    %773 = vmatprep.subr.mxu0 0.0
    %774 = vmatpush1.msra.mxu0 0.0
    %775 = vmatprep.subr.mxu0 0.0
    %776 = vmatpush1.msra.mxu0 0.0
    %777 = vmatprep.subr.mxu0 0.0
    %778 = vmatpush1.msra.mxu0 0.0
    %779 = vmatprep.mubr.f32.mxu0 0.0
    %780 = vmatmul.mubr.f32.gmra.mrb[0].mxu0 %v649
    %v781 = vpop.f32.mrb[0].mxu0
    %v782 = vadd.f32 %v703, %v781
    %v783 = vpop.f32.mrb[0].mxu0
    %v784 = vadd.f32 %v707, %v783
    %785 = vdwg.mxu0
    %786 = vmatprep.subr.mxu0 0.0
    %787 = vmatpush1.msra.mxu0 %v652
    %788 = vmatprep.subr.mxu0 0.0
    %789 = vmatpush1.msra.mxu0 %v655
    %790 = vmatprep.subr.mxu0 0.0
    %791 = vmatpush1.msra.mxu0 %v658
    %792 = vmatprep.subr.mxu0 0.0
    %793 = vmatpush1.msra.mxu0 %v661
    %794 = vmatprep.subr.mxu0 0.0
    %795 = vmatpush1.msra.mxu0 %v664
    %796 = vmatprep.subr.mxu0 0.0
    %797 = vmatpush1.msra.mxu0 %v667
    %798 = vmatprep.subr.mxu0 0.0
    %799 = vmatpush1.msra.mxu0 %v670
    %800 = vmatprep.subr.mxu0 0.0
    %801 = vmatpush1.msra.mxu0 %v673
    %802 = vmatprep.subr.mxu0 0.0
    %803 = vmatpush1.msra.mxu0 %v676
    %804 = vmatprep.subr.mxu0 0.0
    %805 = vmatpush1.msra.mxu0 %v679
    %806 = vmatprep.subr.mxu0 0.0
    %807 = vmatpush1.msra.mxu0 %v682
    %808 = vmatprep.subr.mxu0 0.0
    %809 = vmatpush1.msra.mxu0 %v685
    %810 = vmatprep.subr.mxu0 0.0
    %811 = vmatpush1.msra.mxu0 %v688
    %812 = vmatprep.subr.mxu0 0.0
    %813 = vmatpush1.msra.mxu0 %v691
    %814 = vmatprep.subr.mxu0 0.0
    %815 = vmatpush1.msra.mxu0 %v694
    %816 = vmatprep.subr.mxu0 0.0
    %817 = vmatpush1.msra.mxu0 %v697
    %818 = vmatprep.subr.mxu0 0.0
    %819 = vmatpush1.msra.mxu0 0.0
    %820 = vmatprep.subr.mxu0 0.0
    %821 = vmatpush1.msra.mxu0 0.0
    %822 = vmatprep.subr.mxu0 0.0
    %823 = vmatpush1.msra.mxu0 0.0
    %824 = vmatprep.subr.mxu0 0.0
    %825 = vmatpush1.msra.mxu0 0.0
    %826 = vmatprep.subr.mxu0 0.0
    %827 = vmatpush1.msra.mxu0 0.0
    %828 = vmatprep.subr.mxu0 0.0
    %829 = vmatpush1.msra.mxu0 0.0
    %830 = vmatprep.subr.mxu0 0.0
    %831 = vmatpush1.msra.mxu0 0.0
    %832 = vmatprep.subr.mxu0 0.0
    %833 = vmatpush1.msra.mxu0 0.0
    %834 = vmatprep.subr.mxu0 0.0
    %835 = vmatpush1.msra.mxu0 0.0
    %836 = vmatprep.subr.mxu0 0.0
    %837 = vmatpush1.msra.mxu0 0.0
    %838 = vmatprep.subr.mxu0 0.0
    %839 = vmatpush1.msra.mxu0 0.0
    %840 = vmatprep.subr.mxu0 0.0
    %841 = vmatpush1.msra.mxu0 0.0
    %842 = vmatprep.subr.mxu0 0.0
    %843 = vmatpush1.msra.mxu0 0.0
    %844 = vmatprep.subr.mxu0 0.0
    %845 = vmatpush1.msra.mxu0 0.0
    %846 = vmatprep.subr.mxu0 0.0
    %847 = vmatpush1.msra.mxu0 0.0
    %848 = vmatprep.subr.mxu0 0.0
    %849 = vmatpush1.msra.mxu0 0.0
    %850 = vmatprep.mubr.f32.mxu0 0.0
    %851 = vmatmul.mubr.f32.gmra.mrb[0].mxu0 %v649
    %v852 = vpop.f32.mrb[0].mxu0
    %v853 = vadd.f32 %v711, %v852
    %v854 = vpop.f32.mrb[0].mxu0
    %855 = vdwg.mxu0
    %v856 = vld [vmem:[#allocation9] sm:$0xff]
    %v857 = vld [vmem:[#allocation9 + $0x8] sm:$0xff]
    %v858 = vld [vmem:[#allocation9 + $0x10] sm:$0xff]
    %v859 = vld [vmem:[#allocation9 + $0x18] sm:$0xff]
    %v860 = vld [vmem:[#allocation9 + $0x20] sm:$0xff]
    %v861 = vld [vmem:[#allocation9 + $0x28] sm:$0xff]
    %v862 = vld [vmem:[#allocation9 + $0x30] sm:$0xff]
    %v863 = vld [vmem:[#allocation9 + $0x38] sm:$0xff]
    %v864 = vld [vmem:[#allocation9 + $0x40] sm:$0xff]
    %v865 = vld [vmem:[#allocation9 + $0x48] sm:$0xff]
    %v866 = vld [vmem:[#allocation9 + $0x50] sm:$0xff]
    %v867 = vld [vmem:[#allocation9 + $0x58] sm:$0xff]
    %v868 = vld [vmem:[#allocation9 + $0x60] sm:$0xff]
    %v869 = vld [vmem:[#allocation9 + $0x68] sm:$0xff]
    %v870 = vld [vmem:[#allocation9 + $0x70] sm:$0xff]
    %v871 = vld [vmem:[#allocation9 + $0x78] sm:$0xff]
    %v872 = vld [vmem:[#allocation9 + $0x80] sm:$0xff]
    %v873 = vld [vmem:[#allocation9 + $0x88] sm:$0xff]
    %v874 = vld [vmem:[#allocation9 + $0x90] sm:$0xff]
    %v875 = vld [vmem:[#allocation9 + $0x98] sm:$0xff]
    %v876 = vld [vmem:[#allocation9 + $0xa0] sm:$0xff]
    %v877 = vld [vmem:[#allocation9 + $0xa8] sm:$0xff]
    %v878 = vld [vmem:[#allocation9 + $0xb0] sm:$0xff]
    %v879 = vld [vmem:[#allocation9 + $0xb8] sm:$0xff]
    %v880 = vld [vmem:[#allocation9 + $0xc0] sm:$0xff]
    %v881 = vld [vmem:[#allocation9 + $0xc8] sm:$0xff]
    %v882 = vld [vmem:[#allocation9 + $0xd0] sm:$0xff]
    %v883 = vld [vmem:[#allocation9 + $0xd8] sm:$0xff]
    %v884 = vld [vmem:[#allocation9 + $0xe0] sm:$0xff]
    %v885 = vld [vmem:[#allocation9 + $0xe8] sm:$0xff]
    %v886 = vld [vmem:[#allocation9 + $0xf0] sm:$0xff]
    %v887 = vld [vmem:[#allocation9 + $0xf8] sm:$0xff]
    %v888 = vld [vmem:[#allocation9 + $0x100] sm:$0xff]
    %v889 = vld [vmem:[#allocation9 + $0x108] sm:$0xff]
    %v890 = vld [vmem:[#allocation9 + $0x110] sm:$0xff]
    %v891 = vld [vmem:[#allocation9 + $0x118] sm:$0xff]
    %v892 = vld [vmem:[#allocation9 + $0x120] sm:$0xff]
    %v893 = vld [vmem:[#allocation9 + $0x128] sm:$0xff]
    %v894 = vld [vmem:[#allocation9 + $0x130] sm:$0xff]
    %v895 = vld [vmem:[#allocation9 + $0x138] sm:$0xff]
    %v896 = vld [vmem:[#allocation9 + $0x140] sm:$0xff]
    %v897 = vld [vmem:[#allocation9 + $0x148] sm:$0xff]
    %v898 = vld [vmem:[#allocation9 + $0x150] sm:$0xff]
    %v899 = vld [vmem:[#allocation9 + $0x158] sm:$0xff]
    %v900 = vld [vmem:[#allocation9 + $0x160] sm:$0xff]
    %v901 = vld [vmem:[#allocation9 + $0x168] sm:$0xff]
    %v902 = vld [vmem:[#allocation9 + $0x170] sm:$0xff]
    %v903 = vld [vmem:[#allocation9 + $0x178] sm:$0xff]
    %v904 = vld [vmem:[%s6] sm:$0x7]
    %v906 = vlaneseq
    %v907 = vshrl.u32 %v906, 7
    %v908 = vsub.s32 0, %v907
    %v909 = vrot.slane %v904, %v908
    %v910 = vlaneseq
    %v911 = vshrl.u32 %v910, 7
    %v912 = vsub.s32 1, %v911
    %v913 = vrot.slane %v904, %v912
    %v914 = vlaneseq
    %v915 = vshrl.u32 %v914, 7
    %v916 = vsub.s32 2, %v915
    %v917 = vrot.slane %v904, %v916
    %921 = vmatprep.subr.mxu0 %v857
    %922 = vmatpush1.msra.mxu0 %v856
    %923 = vmatprep.subr.mxu0 %v860
    %924 = vmatpush1.msra.mxu0 %v859
    %925 = vmatprep.subr.mxu0 %v863
    %926 = vmatpush1.msra.mxu0 %v862
    %927 = vmatprep.subr.mxu0 %v866
    %928 = vmatpush1.msra.mxu0 %v865
    %929 = vmatprep.subr.mxu0 %v869
    %930 = vmatpush1.msra.mxu0 %v868
    %931 = vmatprep.subr.mxu0 %v872
    %932 = vmatpush1.msra.mxu0 %v871
    %933 = vmatprep.subr.mxu0 %v875
    %934 = vmatpush1.msra.mxu0 %v874
    %935 = vmatprep.subr.mxu0 %v878
    %936 = vmatpush1.msra.mxu0 %v877
    %937 = vmatprep.subr.mxu0 %v881
    %938 = vmatpush1.msra.mxu0 %v880
    %939 = vmatprep.subr.mxu0 %v884
    %940 = vmatpush1.msra.mxu0 %v883
    %941 = vmatprep.subr.mxu0 %v887
    %942 = vmatpush1.msra.mxu0 %v886
    %943 = vmatprep.subr.mxu0 %v890
    %944 = vmatpush1.msra.mxu0 %v889
    %945 = vmatprep.subr.mxu0 %v893
    %946 = vmatpush1.msra.mxu0 %v892
    %947 = vmatprep.subr.mxu0 %v896
    %948 = vmatpush1.msra.mxu0 %v895
    %949 = vmatprep.subr.mxu0 %v899
    %950 = vmatpush1.msra.mxu0 %v898
    %951 = vmatprep.subr.mxu0 %v902
    %952 = vmatpush1.msra.mxu0 %v901
    %953 = vmatprep.subr.mxu0 0.0
    %954 = vmatpush1.msra.mxu0 0.0
    %955 = vmatprep.subr.mxu0 0.0
    %956 = vmatpush1.msra.mxu0 0.0
    %957 = vmatprep.subr.mxu0 0.0
    %958 = vmatpush1.msra.mxu0 0.0
    %959 = vmatprep.subr.mxu0 0.0
    %960 = vmatpush1.msra.mxu0 0.0
    %961 = vmatprep.subr.mxu0 0.0
    %962 = vmatpush1.msra.mxu0 0.0
    %963 = vmatprep.subr.mxu0 0.0
    %964 = vmatpush1.msra.mxu0 0.0
    %965 = vmatprep.subr.mxu0 0.0
    %966 = vmatpush1.msra.mxu0 0.0
    %967 = vmatprep.subr.mxu0 0.0
    %968 = vmatpush1.msra.mxu0 0.0
    %969 = vmatprep.subr.mxu0 0.0
    %970 = vmatpush1.msra.mxu0 0.0
    %971 = vmatprep.subr.mxu0 0.0
    %972 = vmatpush1.msra.mxu0 0.0
    %973 = vmatprep.subr.mxu0 0.0
    %974 = vmatpush1.msra.mxu0 0.0
    %975 = vmatprep.subr.mxu0 0.0
    %976 = vmatpush1.msra.mxu0 0.0
    %977 = vmatprep.subr.mxu0 0.0
    %978 = vmatpush1.msra.mxu0 0.0
    %979 = vmatprep.subr.mxu0 0.0
    %980 = vmatpush1.msra.mxu0 0.0
    %981 = vmatprep.subr.mxu0 0.0
    %982 = vmatpush1.msra.mxu0 0.0
    %983 = vmatprep.subr.mxu0 0.0
    %984 = vmatpush1.msra.mxu0 0.0
    %985 = vmatprep.mubr.f32.mxu0 0.0
    %986 = vmatmul.mubr.f32.gmra.mrb[0].mxu0 %v644
    %v987 = vpop.f32.mrb[0].mxu0
    %v988 = vadd.f32 %v909, %v987
    %v989 = vpop.f32.mrb[0].mxu0
    %v990 = vadd.f32 %v913, %v989
    %991 = vdwg.mxu0
    %992 = vmatprep.subr.mxu0 0.0
    %993 = vmatpush1.msra.mxu0 %v858
    %994 = vmatprep.subr.mxu0 0.0
    %995 = vmatpush1.msra.mxu0 %v861
    %996 = vmatprep.subr.mxu0 0.0
    %997 = vmatpush1.msra.mxu0 %v864
    %998 = vmatprep.subr.mxu0 0.0
    %999 = vmatpush1.msra.mxu0 %v867
    %1000 = vmatprep.subr.mxu0 0.0
    %1001 = vmatpush1.msra.mxu0 %v870
    %1002 = vmatprep.subr.mxu0 0.0
    %1003 = vmatpush1.msra.mxu0 %v873
    %1004 = vmatprep.subr.mxu0 0.0
    %1005 = vmatpush1.msra.mxu0 %v876
    %1006 = vmatprep.subr.mxu0 0.0
    %1007 = vmatpush1.msra.mxu0 %v879
    %1008 = vmatprep.subr.mxu0 0.0
    %1009 = vmatpush1.msra.mxu0 %v882
    %1010 = vmatprep.subr.mxu0 0.0
    %1011 = vmatpush1.msra.mxu0 %v885
    %1012 = vmatprep.subr.mxu0 0.0
    %1013 = vmatpush1.msra.mxu0 %v888
    %1014 = vmatprep.subr.mxu0 0.0
    %1015 = vmatpush1.msra.mxu0 %v891
    %1016 = vmatprep.subr.mxu0 0.0
    %1017 = vmatpush1.msra.mxu0 %v894
    %1018 = vmatprep.subr.mxu0 0.0
    %1019 = vmatpush1.msra.mxu0 %v897
    %1020 = vmatprep.subr.mxu0 0.0
    %1021 = vmatpush1.msra.mxu0 %v900
    %1022 = vmatprep.subr.mxu0 0.0
    %1023 = vmatpush1.msra.mxu0 %v903
    %1024 = vmatprep.subr.mxu0 0.0
    %1025 = vmatpush1.msra.mxu0 0.0
    %1026 = vmatprep.subr.mxu0 0.0
    %1027 = vmatpush1.msra.mxu0 0.0
    %1028 = vmatprep.subr.mxu0 0.0
    %1029 = vmatpush1.msra.mxu0 0.0
    %1030 = vmatprep.subr.mxu0 0.0
    %1031 = vmatpush1.msra.mxu0 0.0
    %1032 = vmatprep.subr.mxu0 0.0
    %1033 = vmatpush1.msra.mxu0 0.0
    %1034 = vmatprep.subr.mxu0 0.0
    %1035 = vmatpush1.msra.mxu0 0.0
    %1036 = vmatprep.subr.mxu0 0.0
    %1037 = vmatpush1.msra.mxu0 0.0
    %1038 = vmatprep.subr.mxu0 0.0
    %1039 = vmatpush1.msra.mxu0 0.0
    %1040 = vmatprep.subr.mxu0 0.0
    %1041 = vmatpush1.msra.mxu0 0.0
    %1042 = vmatprep.subr.mxu0 0.0
    %1043 = vmatpush1.msra.mxu0 0.0
    %1044 = vmatprep.subr.mxu0 0.0
    %1045 = vmatpush1.msra.mxu0 0.0
    %1046 = vmatprep.subr.mxu0 0.0
    %1047 = vmatpush1.msra.mxu0 0.0
    %1048 = vmatprep.subr.mxu0 0.0
    %1049 = vmatpush1.msra.mxu0 0.0
    %1050 = vmatprep.subr.mxu0 0.0
    %1051 = vmatpush1.msra.mxu0 0.0
    %1052 = vmatprep.subr.mxu0 0.0
    %1053 = vmatpush1.msra.mxu0 0.0
    %1054 = vmatprep.subr.mxu0 0.0
    %1055 = vmatpush1.msra.mxu0 0.0
    %1056 = vmatprep.mubr.f32.mxu0 0.0
    %1057 = vmatmul.mubr.f32.gmra.mrb[0].mxu0 %v644
    %v1058 = vpop.f32.mrb[0].mxu0
    %v1059 = vadd.f32 %v917, %v1058
    %v1060 = vpop.f32.mrb[0].mxu0
    %1061 = vdwg.mxu0
    %v1062 = vadd.f32 %v782, %v988
    %v1063 = vxor.u32 %v1062, 2147483648
    %v1064 = vmul.f32 %v1063, 1.442695
    %v1065 = vpow.pop %v1064
    %v1066 = vadd.f32 %v1065, 1.0
    %v1067 = vrcp.pop %v1066
    %v1068 = vmul.f32 1.0, %v1067
    %v1069 = vadd.f32 %v784, %v990
    %v1070 = vxor.u32 %v1069, 2147483648
    %v1071 = vmul.f32 %v1070, 1.442695
    %v1072 = vpow.pop %v1071
    %v1073 = vadd.f32 %v1072, 1.0
    %v1074 = vrcp.pop %v1073
    %v1075 = vmul.f32 1.0, %v1074
    %v1076 = vmul.f32 %v1068, %v1059
    %v1077 = vadd.f32 %v853, %v1076
    %v1078 = vtanh.pop %v1077
    %v1079 = vsub.f32 1.0, %v1075
    %v1080 = vmul.f32 %v1079, %v1078
    %v1081 = vmul.f32 %v1075, %v644
    %v1082 = vadd.f32 %v1080, %v1081
    %v1083 = vld [vmem:[#allocation10] sm:$0xff]
    %v1084 = vld [vmem:[#allocation10 + $0x8] sm:$0xff]
    %v1085 = vld [vmem:[#allocation10 + $0x10] sm:$0xff]
    %v1086 = vld [vmem:[#allocation10 + $0x18] sm:$0xff]
    %v1087 = vld [vmem:[#allocation10 + $0x20] sm:$0xff]
    %v1088 = vld [vmem:[#allocation10 + $0x28] sm:$0xff]
    %v1089 = vld [vmem:[#allocation10 + $0x30] sm:$0xff]
    %v1090 = vld [vmem:[#allocation10 + $0x38] sm:$0xff]
    %v1091 = vld [vmem:[#allocation10 + $0x40] sm:$0xff]
    %v1092 = vld [vmem:[#allocation10 + $0x48] sm:$0xff]
    %v1093 = vld [vmem:[#allocation10 + $0x50] sm:$0xff]
    %v1094 = vld [vmem:[#allocation10 + $0x58] sm:$0xff]
    %v1095 = vld [vmem:[#allocation10 + $0x60] sm:$0xff]
    %v1096 = vld [vmem:[#allocation10 + $0x68] sm:$0xff]
    %v1097 = vld [vmem:[#allocation10 + $0x70] sm:$0xff]
    %v1098 = vld [vmem:[#allocation10 + $0x78] sm:$0xff]
    %v1099 = vld [vmem:[%s8] sm:$0x1]
    %1100 = vmatprep.subr.mxu0 0.0
    %1101 = vmatpush1.msra.mxu0 %v1083
    %1102 = vmatprep.subr.mxu0 0.0
    %1103 = vmatpush1.msra.mxu0 %v1084
    %1104 = vmatprep.subr.mxu0 0.0
    %1105 = vmatpush1.msra.mxu0 %v1085
    %1106 = vmatprep.subr.mxu0 0.0
    %1107 = vmatpush1.msra.mxu0 %v1086
    %1108 = vmatprep.subr.mxu0 0.0
    %1109 = vmatpush1.msra.mxu0 %v1087
    %1110 = vmatprep.subr.mxu0 0.0
    %1111 = vmatpush1.msra.mxu0 %v1088
    %1112 = vmatprep.subr.mxu0 0.0
    %1113 = vmatpush1.msra.mxu0 %v1089
    %1114 = vmatprep.subr.mxu0 0.0
    %1115 = vmatpush1.msra.mxu0 %v1090
    %1116 = vmatprep.subr.mxu0 0.0
    %1117 = vmatpush1.msra.mxu0 %v1091
    %1118 = vmatprep.subr.mxu0 0.0
    %1119 = vmatpush1.msra.mxu0 %v1092
    %1120 = vmatprep.subr.mxu0 0.0
    %1121 = vmatpush1.msra.mxu0 %v1093
    %1122 = vmatprep.subr.mxu0 0.0
    %1123 = vmatpush1.msra.mxu0 %v1094
    %1124 = vmatprep.subr.mxu0 0.0
    %1125 = vmatpush1.msra.mxu0 %v1095
    %1126 = vmatprep.subr.mxu0 0.0
    %1127 = vmatpush1.msra.mxu0 %v1096
    %1128 = vmatprep.subr.mxu0 0.0
    %1129 = vmatpush1.msra.mxu0 %v1097
    %1130 = vmatprep.subr.mxu0 0.0
    %1131 = vmatpush1.msra.mxu0 %v1098
    %1132 = vmatprep.subr.mxu0 0.0
    %1133 = vmatpush1.msra.mxu0 0.0
    %1134 = vmatprep.subr.mxu0 0.0
    %1135 = vmatpush1.msra.mxu0 0.0
    %1136 = vmatprep.subr.mxu0 0.0
    %1137 = vmatpush1.msra.mxu0 0.0
    %1138 = vmatprep.subr.mxu0 0.0
    %1139 = vmatpush1.msra.mxu0 0.0
    %1140 = vmatprep.subr.mxu0 0.0
    %1141 = vmatpush1.msra.mxu0 0.0
    %1142 = vmatprep.subr.mxu0 0.0
    %1143 = vmatpush1.msra.mxu0 0.0
    %1144 = vmatprep.subr.mxu0 0.0
    %1145 = vmatpush1.msra.mxu0 0.0
    %1146 = vmatprep.subr.mxu0 0.0
    %1147 = vmatpush1.msra.mxu0 0.0
    %1148 = vmatprep.subr.mxu0 0.0
    %1149 = vmatpush1.msra.mxu0 0.0
    %1150 = vmatprep.subr.mxu0 0.0
    %1151 = vmatpush1.msra.mxu0 0.0
    %1152 = vmatprep.subr.mxu0 0.0
    %1153 = vmatpush1.msra.mxu0 0.0
    %1154 = vmatprep.subr.mxu0 0.0
    %1155 = vmatpush1.msra.mxu0 0.0
    %1156 = vmatprep.subr.mxu0 0.0
    %1157 = vmatpush1.msra.mxu0 0.0
    %1158 = vmatprep.subr.mxu0 0.0
    %1159 = vmatpush1.msra.mxu0 0.0
    %1160 = vmatprep.subr.mxu0 0.0
    %1161 = vmatpush1.msra.mxu0 0.0
    %1162 = vmatprep.subr.mxu0 0.0
    %1163 = vmatpush1.msra.mxu0 0.0
    %1164 = vmatprep.mubr.f32.mxu0 0.0
    %1165 = vmatmul.mubr.f32.gmra.mrb[0].mxu0 %v1082
    %v1166 = vpop.f32.mrb[0].mxu0
    %v1167 = vadd.f32 %v1099, %v1166
    %v1168 = vpop.f32.mrb[0].mxu0
    %1169 = vdwg.mxu0
    %v1170 = vsel %vm625, %v1167, -inf
    %1171 = vmax.xlane.f32.xlu0 %v1170
    %v1172 = vpop.xlane.xlu0 %1171
    %v1173 = vsub.f32 %v1167, %v1172
    %v1174 = vmul.f32 %v1173, 1.442695
    %v1175 = vpow.pop %v1174
    %v1176 = vsel %vm625, %v1175, 0.0
    %1177 = vadd.xlane.f32.xlu0 %v1176
    %v1178 = vpop.xlane.xlu0 %1177
    %v1179 = vlog2.pop %v1178
    %v1180 = vmul.f32 %v1179, 0.6931472
    %v1181 = vadd.f32 %v1172, %v1180
    %v1182 = vsub.f32 %v1167, %v1181
    %1183 = vst [vmem:[#allocation12 + $0x1] sm:$0x1] %v1182
    %p1184 = scmp.lt.s32.totalorder %s645, 1
    %s1185 = scalar_select %p1184, 1, 0
    %v1186 = vstv %s1185
    %vm1187 = vcmp.eq.s32.totalorder %v1186, 1
    %v1188 = vsel %vm1187, %v1082, %v644
    %s1189 = sadd.s32 %s99, 2
    %s1190 = sld [smem:[#allocation3 + %s1189]]
    %s1191 = scalar_lea.vmem [#allocation4], %s1190
    %v1192 = vld [vmem:[%s1191] sm:$0x1]
    %v1193 = vmax.f32 %v1192, 0.0
    %v1194 = vld [vmem:[#allocation7] sm:$0xff]
    %v1195 = vld [vmem:[#allocation7 + $0x8] sm:$0xff]
    %v1196 = vld [vmem:[#allocation7 + $0x10] sm:$0xff]
    %v1197 = vld [vmem:[#allocation7 + $0x18] sm:$0xff]
    %v1198 = vld [vmem:[#allocation7 + $0x20] sm:$0xff]
    %v1199 = vld [vmem:[#allocation7 + $0x28] sm:$0xff]
    %v1200 = vld [vmem:[#allocation7 + $0x30] sm:$0xff]
    %v1201 = vld [vmem:[#allocation7 + $0x38] sm:$0xff]
    %v1202 = vld [vmem:[#allocation7 + $0x40] sm:$0xff]
    %v1203 = vld [vmem:[#allocation7 + $0x48] sm:$0xff]
    %v1204 = vld [vmem:[#allocation7 + $0x50] sm:$0xff]
    %v1205 = vld [vmem:[#allocation7 + $0x58] sm:$0xff]
    %v1206 = vld [vmem:[#allocation7 + $0x60] sm:$0xff]
    %v1207 = vld [vmem:[#allocation7 + $0x68] sm:$0xff]
    %v1208 = vld [vmem:[#allocation7 + $0x70] sm:$0xff]
    %v1209 = vld [vmem:[#allocation7 + $0x78] sm:$0xff]
    %v1210 = vld [vmem:[#allocation7 + $0x80] sm:$0xff]
    %v1211 = vld [vmem:[#allocation7 + $0x88] sm:$0xff]
    %v1212 = vld [vmem:[#allocation7 + $0x90] sm:$0xff]
    %v1213 = vld [vmem:[#allocation7 + $0x98] sm:$0xff]
    %v1214 = vld [vmem:[#allocation7 + $0xa0] sm:$0xff]
    %v1215 = vld [vmem:[#allocation7 + $0xa8] sm:$0xff]
    %v1216 = vld [vmem:[#allocation7 + $0xb0] sm:$0xff]
    %v1217 = vld [vmem:[#allocation7 + $0xb8] sm:$0xff]
    %v1218 = vld [vmem:[#allocation7 + $0xc0] sm:$0xff]
    %v1219 = vld [vmem:[#allocation7 + $0xc8] sm:$0xff]
    %v1220 = vld [vmem:[#allocation7 + $0xd0] sm:$0xff]
    %v1221 = vld [vmem:[#allocation7 + $0xd8] sm:$0xff]
    %v1222 = vld [vmem:[#allocation7 + $0xe0] sm:$0xff]
    %v1223 = vld [vmem:[#allocation7 + $0xe8] sm:$0xff]
    %v1224 = vld [vmem:[#allocation7 + $0xf0] sm:$0xff]
    %v1225 = vld [vmem:[#allocation7 + $0xf8] sm:$0xff]
    %v1226 = vld [vmem:[#allocation7 + $0x100] sm:$0xff]
    %v1227 = vld [vmem:[#allocation7 + $0x108] sm:$0xff]
    %v1228 = vld [vmem:[#allocation7 + $0x110] sm:$0xff]
    %v1229 = vld [vmem:[#allocation7 + $0x118] sm:$0xff]
    %v1230 = vld [vmem:[#allocation7 + $0x120] sm:$0xff]
    %v1231 = vld [vmem:[#allocation7 + $0x128] sm:$0xff]
    %v1232 = vld [vmem:[#allocation7 + $0x130] sm:$0xff]
    %v1233 = vld [vmem:[#allocation7 + $0x138] sm:$0xff]
    %v1234 = vld [vmem:[#allocation7 + $0x140] sm:$0xff]
    %v1235 = vld [vmem:[#allocation7 + $0x148] sm:$0xff]
    %v1236 = vld [vmem:[#allocation7 + $0x150] sm:$0xff]
    %v1237 = vld [vmem:[#allocation7 + $0x158] sm:$0xff]
    %v1238 = vld [vmem:[#allocation7 + $0x160] sm:$0xff]
    %v1239 = vld [vmem:[#allocation7 + $0x168] sm:$0xff]
    %v1240 = vld [vmem:[#allocation7 + $0x170] sm:$0xff]
    %v1241 = vld [vmem:[#allocation7 + $0x178] sm:$0xff]
    %v1242 = vld [vmem:[%s5] sm:$0x7]
    %v1244 = vlaneseq
    %v1245 = vshrl.u32 %v1244, 7
    %v1246 = vsub.s32 0, %v1245
    %v1247 = vrot.slane %v1242, %v1246
    %v1248 = vlaneseq
    %v1249 = vshrl.u32 %v1248, 7
    %v1250 = vsub.s32 1, %v1249
    %v1251 = vrot.slane %v1242, %v1250
    %v1252 = vlaneseq
    %v1253 = vshrl.u32 %v1252, 7
    %v1254 = vsub.s32 2, %v1253
    %v1255 = vrot.slane %v1242, %v1254
    %1259 = vmatprep.subr.mxu0 %v1195
    %1260 = vmatpush1.msra.mxu0 %v1194
    %1261 = vmatprep.subr.mxu0 %v1198
    %1262 = vmatpush1.msra.mxu0 %v1197
    %1263 = vmatprep.subr.mxu0 %v1201
    %1264 = vmatpush1.msra.mxu0 %v1200
    %1265 = vmatprep.subr.mxu0 %v1204
    %1266 = vmatpush1.msra.mxu0 %v1203
    %1267 = vmatprep.subr.mxu0 %v1207
    %1268 = vmatpush1.msra.mxu0 %v1206
    %1269 = vmatprep.subr.mxu0 %v1210
    %1270 = vmatpush1.msra.mxu0 %v1209
    %1271 = vmatprep.subr.mxu0 %v1213
    %1272 = vmatpush1.msra.mxu0 %v1212
    %1273 = vmatprep.subr.mxu0 %v1216
    %1274 = vmatpush1.msra.mxu0 %v1215
    %1275 = vmatprep.subr.mxu0 %v1219
    %1276 = vmatpush1.msra.mxu0 %v1218
    %1277 = vmatprep.subr.mxu0 %v1222
    %1278 = vmatpush1.msra.mxu0 %v1221
    %1279 = vmatprep.subr.mxu0 %v1225
    %1280 = vmatpush1.msra.mxu0 %v1224
    %1281 = vmatprep.subr.mxu0 %v1228
    %1282 = vmatpush1.msra.mxu0 %v1227
    %1283 = vmatprep.subr.mxu0 %v1231
    %1284 = vmatpush1.msra.mxu0 %v1230
    %1285 = vmatprep.subr.mxu0 %v1234
    %1286 = vmatpush1.msra.mxu0 %v1233
    %1287 = vmatprep.subr.mxu0 %v1237
    %1288 = vmatpush1.msra.mxu0 %v1236
    %1289 = vmatprep.subr.mxu0 %v1240
    %1290 = vmatpush1.msra.mxu0 %v1239
    %1291 = vmatprep.subr.mxu0 0.0
    %1292 = vmatpush1.msra.mxu0 0.0
    %1293 = vmatprep.subr.mxu0 0.0
    %1294 = vmatpush1.msra.mxu0 0.0
    %1295 = vmatprep.subr.mxu0 0.0
    %1296 = vmatpush1.msra.mxu0 0.0
    %1297 = vmatprep.subr.mxu0 0.0
    %1298 = vmatpush1.msra.mxu0 0.0
    %1299 = vmatprep.subr.mxu0 0.0
    %1300 = vmatpush1.msra.mxu0 0.0
    %1301 = vmatprep.subr.mxu0 0.0
    %1302 = vmatpush1.msra.mxu0 0.0
    %1303 = vmatprep.subr.mxu0 0.0
    %1304 = vmatpush1.msra.mxu0 0.0
    %1305 = vmatprep.subr.mxu0 0.0
    %1306 = vmatpush1.msra.mxu0 0.0
    %1307 = vmatprep.subr.mxu0 0.0
    %1308 = vmatpush1.msra.mxu0 0.0
    %1309 = vmatprep.subr.mxu0 0.0
    %1310 = vmatpush1.msra.mxu0 0.0
    %1311 = vmatprep.subr.mxu0 0.0
    %1312 = vmatpush1.msra.mxu0 0.0
    %1313 = vmatprep.subr.mxu0 0.0
    %1314 = vmatpush1.msra.mxu0 0.0
    %1315 = vmatprep.subr.mxu0 0.0
    %1316 = vmatpush1.msra.mxu0 0.0
    %1317 = vmatprep.subr.mxu0 0.0
    %1318 = vmatpush1.msra.mxu0 0.0
    %1319 = vmatprep.subr.mxu0 0.0
    %1320 = vmatpush1.msra.mxu0 0.0
    %1321 = vmatprep.subr.mxu0 0.0
    %1322 = vmatpush1.msra.mxu0 0.0
    %1323 = vmatprep.mubr.f32.mxu0 0.0
    %1324 = vmatmul.mubr.f32.gmra.mrb[0].mxu0 %v1193
    %v1325 = vpop.f32.mrb[0].mxu0
    %v1326 = vadd.f32 %v1247, %v1325
    %v1327 = vpop.f32.mrb[0].mxu0
    %v1328 = vadd.f32 %v1251, %v1327
    %1329 = vdwg.mxu0
    %1330 = vmatprep.subr.mxu0 0.0
    %1331 = vmatpush1.msra.mxu0 %v1196
    %1332 = vmatprep.subr.mxu0 0.0
    %1333 = vmatpush1.msra.mxu0 %v1199
    %1334 = vmatprep.subr.mxu0 0.0
    %1335 = vmatpush1.msra.mxu0 %v1202
    %1336 = vmatprep.subr.mxu0 0.0
    %1337 = vmatpush1.msra.mxu0 %v1205
    %1338 = vmatprep.subr.mxu0 0.0
    %1339 = vmatpush1.msra.mxu0 %v1208
    %1340 = vmatprep.subr.mxu0 0.0
    %1341 = vmatpush1.msra.mxu0 %v1211
    %1342 = vmatprep.subr.mxu0 0.0
    %1343 = vmatpush1.msra.mxu0 %v1214
    %1344 = vmatprep.subr.mxu0 0.0
    %1345 = vmatpush1.msra.mxu0 %v1217
    %1346 = vmatprep.subr.mxu0 0.0
    %1347 = vmatpush1.msra.mxu0 %v1220
    %1348 = vmatprep.subr.mxu0 0.0
    %1349 = vmatpush1.msra.mxu0 %v1223
    %1350 = vmatprep.subr.mxu0 0.0
    %1351 = vmatpush1.msra.mxu0 %v1226
    %1352 = vmatprep.subr.mxu0 0.0
    %1353 = vmatpush1.msra.mxu0 %v1229
    %1354 = vmatprep.subr.mxu0 0.0
    %1355 = vmatpush1.msra.mxu0 %v1232
    %1356 = vmatprep.subr.mxu0 0.0
    %1357 = vmatpush1.msra.mxu0 %v1235
    %1358 = vmatprep.subr.mxu0 0.0
    %1359 = vmatpush1.msra.mxu0 %v1238
    %1360 = vmatprep.subr.mxu0 0.0
    %1361 = vmatpush1.msra.mxu0 %v1241
    %1362 = vmatprep.subr.mxu0 0.0
    %1363 = vmatpush1.msra.mxu0 0.0
    %1364 = vmatprep.subr.mxu0 0.0
    %1365 = vmatpush1.msra.mxu0 0.0
    %1366 = vmatprep.subr.mxu0 0.0
    %1367 = vmatpush1.msra.mxu0 0.0
    %1368 = vmatprep.subr.mxu0 0.0
    %1369 = vmatpush1.msra.mxu0 0.0
    %1370 = vmatprep.subr.mxu0 0.0
    %1371 = vmatpush1.msra.mxu0 0.0
    %1372 = vmatprep.subr.mxu0 0.0
    %1373 = vmatpush1.msra.mxu0 0.0
    %1374 = vmatprep.subr.mxu0 0.0
    %1375 = vmatpush1.msra.mxu0 0.0
    %1376 = vmatprep.subr.mxu0 0.0
    %1377 = vmatpush1.msra.mxu0 0.0
    %1378 = vmatprep.subr.mxu0 0.0
    %1379 = vmatpush1.msra.mxu0 0.0
    %1380 = vmatprep.subr.mxu0 0.0
    %1381 = vmatpush1.msra.mxu0 0.0
    %1382 = vmatprep.subr.mxu0 0.0
    %1383 = vmatpush1.msra.mxu0 0.0
    %1384 = vmatprep.subr.mxu0 0.0
    %1385 = vmatpush1.msra.mxu0 0.0
    %1386 = vmatprep.subr.mxu0 0.0
    %1387 = vmatpush1.msra.mxu0 0.0
    %1388 = vmatprep.subr.mxu0 0.0
    %1389 = vmatpush1.msra.mxu0 0.0
    %1390 = vmatprep.subr.mxu0 0.0
    %1391 = vmatpush1.msra.mxu0 0.0
    %1392 = vmatprep.subr.mxu0 0.0
    %1393 = vmatpush1.msra.mxu0 0.0
    %1394 = vmatprep.mubr.f32.mxu0 0.0
    %1395 = vmatmul.mubr.f32.gmra.mrb[0].mxu0 %v1193
    %v1396 = vpop.f32.mrb[0].mxu0
    %v1397 = vadd.f32 %v1255, %v1396
    %v1398 = vpop.f32.mrb[0].mxu0
    %1399 = vdwg.mxu0
    %v1400 = vld [vmem:[#allocation9] sm:$0xff]
    %v1401 = vld [vmem:[#allocation9 + $0x8] sm:$0xff]
    %v1402 = vld [vmem:[#allocation9 + $0x10] sm:$0xff]
    %v1403 = vld [vmem:[#allocation9 + $0x18] sm:$0xff]
    %v1404 = vld [vmem:[#allocation9 + $0x20] sm:$0xff]
    %v1405 = vld [vmem:[#allocation9 + $0x28] sm:$0xff]
    %v1406 = vld [vmem:[#allocation9 + $0x30] sm:$0xff]
    %v1407 = vld [vmem:[#allocation9 + $0x38] sm:$0xff]
    %v1408 = vld [vmem:[#allocation9 + $0x40] sm:$0xff]
    %v1409 = vld [vmem:[#allocation9 + $0x48] sm:$0xff]
    %v1410 = vld [vmem:[#allocation9 + $0x50] sm:$0xff]
    %v1411 = vld [vmem:[#allocation9 + $0x58] sm:$0xff]
    %v1412 = vld [vmem:[#allocation9 + $0x60] sm:$0xff]
    %v1413 = vld [vmem:[#allocation9 + $0x68] sm:$0xff]
    %v1414 = vld [vmem:[#allocation9 + $0x70] sm:$0xff]
    %v1415 = vld [vmem:[#allocation9 + $0x78] sm:$0xff]
    %v1416 = vld [vmem:[#allocation9 + $0x80] sm:$0xff]
    %v1417 = vld [vmem:[#allocation9 + $0x88] sm:$0xff]
    %v1418 = vld [vmem:[#allocation9 + $0x90] sm:$0xff]
    %v1419 = vld [vmem:[#allocation9 + $0x98] sm:$0xff]
    %v1420 = vld [vmem:[#allocation9 + $0xa0] sm:$0xff]
    %v1421 = vld [vmem:[#allocation9 + $0xa8] sm:$0xff]
    %v1422 = vld [vmem:[#allocation9 + $0xb0] sm:$0xff]
    %v1423 = vld [vmem:[#allocation9 + $0xb8] sm:$0xff]
    %v1424 = vld [vmem:[#allocation9 + $0xc0] sm:$0xff]
    %v1425 = vld [vmem:[#allocation9 + $0xc8] sm:$0xff]
    %v1426 = vld [vmem:[#allocation9 + $0xd0] sm:$0xff]
    %v1427 = vld [vmem:[#allocation9 + $0xd8] sm:$0xff]
    %v1428 = vld [vmem:[#allocation9 + $0xe0] sm:$0xff]
    %v1429 = vld [vmem:[#allocation9 + $0xe8] sm:$0xff]
    %v1430 = vld [vmem:[#allocation9 + $0xf0] sm:$0xff]
    %v1431 = vld [vmem:[#allocation9 + $0xf8] sm:$0xff]
    %v1432 = vld [vmem:[#allocation9 + $0x100] sm:$0xff]
    %v1433 = vld [vmem:[#allocation9 + $0x108] sm:$0xff]
    %v1434 = vld [vmem:[#allocation9 + $0x110] sm:$0xff]
    %v1435 = vld [vmem:[#allocation9 + $0x118] sm:$0xff]
    %v1436 = vld [vmem:[#allocation9 + $0x120] sm:$0xff]
    %v1437 = vld [vmem:[#allocation9 + $0x128] sm:$0xff]
    %v1438 = vld [vmem:[#allocation9 + $0x130] sm:$0xff]
    %v1439 = vld [vmem:[#allocation9 + $0x138] sm:$0xff]
    %v1440 = vld [vmem:[#allocation9 + $0x140] sm:$0xff]
    %v1441 = vld [vmem:[#allocation9 + $0x148] sm:$0xff]
    %v1442 = vld [vmem:[#allocation9 + $0x150] sm:$0xff]
    %v1443 = vld [vmem:[#allocation9 + $0x158] sm:$0xff]
    %v1444 = vld [vmem:[#allocation9 + $0x160] sm:$0xff]
    %v1445 = vld [vmem:[#allocation9 + $0x168] sm:$0xff]
    %v1446 = vld [vmem:[#allocation9 + $0x170] sm:$0xff]
    %v1447 = vld [vmem:[#allocation9 + $0x178] sm:$0xff]
    %v1448 = vld [vmem:[%s6] sm:$0x7]
    %v1450 = vlaneseq
    %v1451 = vshrl.u32 %v1450, 7
    %v1452 = vsub.s32 0, %v1451
    %v1453 = vrot.slane %v1448, %v1452
    %v1454 = vlaneseq
    %v1455 = vshrl.u32 %v1454, 7
    %v1456 = vsub.s32 1, %v1455
    %v1457 = vrot.slane %v1448, %v1456
    %v1458 = vlaneseq
    %v1459 = vshrl.u32 %v1458, 7
    %v1460 = vsub.s32 2, %v1459
    %v1461 = vrot.slane %v1448, %v1460
    %1465 = vmatprep.subr.mxu0 %v1401
    %1466 = vmatpush1.msra.mxu0 %v1400
    %1467 = vmatprep.subr.mxu0 %v1404
    %1468 = vmatpush1.msra.mxu0 %v1403
    %1469 = vmatprep.subr.mxu0 %v1407
    %1470 = vmatpush1.msra.mxu0 %v1406
    %1471 = vmatprep.subr.mxu0 %v1410
    %1472 = vmatpush1.msra.mxu0 %v1409
    %1473 = vmatprep.subr.mxu0 %v1413
    %1474 = vmatpush1.msra.mxu0 %v1412
    %1475 = vmatprep.subr.mxu0 %v1416
    %1476 = vmatpush1.msra.mxu0 %v1415
    %1477 = vmatprep.subr.mxu0 %v1419
    %1478 = vmatpush1.msra.mxu0 %v1418
    %1479 = vmatprep.subr.mxu0 %v1422
    %1480 = vmatpush1.msra.mxu0 %v1421
    %1481 = vmatprep.subr.mxu0 %v1425
    %1482 = vmatpush1.msra.mxu0 %v1424
    %1483 = vmatprep.subr.mxu0 %v1428
    %1484 = vmatpush1.msra.mxu0 %v1427
    %1485 = vmatprep.subr.mxu0 %v1431
    %1486 = vmatpush1.msra.mxu0 %v1430
    %1487 = vmatprep.subr.mxu0 %v1434
    %1488 = vmatpush1.msra.mxu0 %v1433
    %1489 = vmatprep.subr.mxu0 %v1437
    %1490 = vmatpush1.msra.mxu0 %v1436
    %1491 = vmatprep.subr.mxu0 %v1440
    %1492 = vmatpush1.msra.mxu0 %v1439
    %1493 = vmatprep.subr.mxu0 %v1443
    %1494 = vmatpush1.msra.mxu0 %v1442
    %1495 = vmatprep.subr.mxu0 %v1446
    %1496 = vmatpush1.msra.mxu0 %v1445
    %1497 = vmatprep.subr.mxu0 0.0
    %1498 = vmatpush1.msra.mxu0 0.0
    %1499 = vmatprep.subr.mxu0 0.0
    %1500 = vmatpush1.msra.mxu0 0.0
    %1501 = vmatprep.subr.mxu0 0.0
    %1502 = vmatpush1.msra.mxu0 0.0
    %1503 = vmatprep.subr.mxu0 0.0
    %1504 = vmatpush1.msra.mxu0 0.0
    %1505 = vmatprep.subr.mxu0 0.0
    %1506 = vmatpush1.msra.mxu0 0.0
    %1507 = vmatprep.subr.mxu0 0.0
    %1508 = vmatpush1.msra.mxu0 0.0
    %1509 = vmatprep.subr.mxu0 0.0
    %1510 = vmatpush1.msra.mxu0 0.0
    %1511 = vmatprep.subr.mxu0 0.0
    %1512 = vmatpush1.msra.mxu0 0.0
    %1513 = vmatprep.subr.mxu0 0.0
    %1514 = vmatpush1.msra.mxu0 0.0
    %1515 = vmatprep.subr.mxu0 0.0
    %1516 = vmatpush1.msra.mxu0 0.0
    %1517 = vmatprep.subr.mxu0 0.0
    %1518 = vmatpush1.msra.mxu0 0.0
    %1519 = vmatprep.subr.mxu0 0.0
    %1520 = vmatpush1.msra.mxu0 0.0
    %1521 = vmatprep.subr.mxu0 0.0
    %1522 = vmatpush1.msra.mxu0 0.0
    %1523 = vmatprep.subr.mxu0 0.0
    %1524 = vmatpush1.msra.mxu0 0.0
    %1525 = vmatprep.subr.mxu0 0.0
    %1526 = vmatpush1.msra.mxu0 0.0
    %1527 = vmatprep.subr.mxu0 0.0
    %1528 = vmatpush1.msra.mxu0 0.0
    %1529 = vmatprep.mubr.f32.mxu0 0.0
    %1530 = vmatmul.mubr.f32.gmra.mrb[0].mxu0 %v1188
    %v1531 = vpop.f32.mrb[0].mxu0
    %v1532 = vadd.f32 %v1453, %v1531
    %v1533 = vpop.f32.mrb[0].mxu0
    %v1534 = vadd.f32 %v1457, %v1533
    %1535 = vdwg.mxu0
    %1536 = vmatprep.subr.mxu0 0.0
    %1537 = vmatpush1.msra.mxu0 %v1402
    %1538 = vmatprep.subr.mxu0 0.0
    %1539 = vmatpush1.msra.mxu0 %v1405
    %1540 = vmatprep.subr.mxu0 0.0
    %1541 = vmatpush1.msra.mxu0 %v1408
    %1542 = vmatprep.subr.mxu0 0.0
    %1543 = vmatpush1.msra.mxu0 %v1411
    %1544 = vmatprep.subr.mxu0 0.0
    %1545 = vmatpush1.msra.mxu0 %v1414
    %1546 = vmatprep.subr.mxu0 0.0
    %1547 = vmatpush1.msra.mxu0 %v1417
    %1548 = vmatprep.subr.mxu0 0.0
    %1549 = vmatpush1.msra.mxu0 %v1420
    %1550 = vmatprep.subr.mxu0 0.0
    %1551 = vmatpush1.msra.mxu0 %v1423
    %1552 = vmatprep.subr.mxu0 0.0
    %1553 = vmatpush1.msra.mxu0 %v1426
    %1554 = vmatprep.subr.mxu0 0.0
    %1555 = vmatpush1.msra.mxu0 %v1429
    %1556 = vmatprep.subr.mxu0 0.0
    %1557 = vmatpush1.msra.mxu0 %v1432
    %1558 = vmatprep.subr.mxu0 0.0
    %1559 = vmatpush1.msra.mxu0 %v1435
    %1560 = vmatprep.subr.mxu0 0.0
    %1561 = vmatpush1.msra.mxu0 %v1438
    %1562 = vmatprep.subr.mxu0 0.0
    %1563 = vmatpush1.msra.mxu0 %v1441
    %1564 = vmatprep.subr.mxu0 0.0
    %1565 = vmatpush1.msra.mxu0 %v1444
    %1566 = vmatprep.subr.mxu0 0.0
    %1567 = vmatpush1.msra.mxu0 %v1447
    %1568 = vmatprep.subr.mxu0 0.0
    %1569 = vmatpush1.msra.mxu0 0.0
    %1570 = vmatprep.subr.mxu0 0.0
    %1571 = vmatpush1.msra.mxu0 0.0
    %1572 = vmatprep.subr.mxu0 0.0
    %1573 = vmatpush1.msra.mxu0 0.0
    %1574 = vmatprep.subr.mxu0 0.0
    %1575 = vmatpush1.msra.mxu0 0.0
    %1576 = vmatprep.subr.mxu0 0.0
    %1577 = vmatpush1.msra.mxu0 0.0
    %1578 = vmatprep.subr.mxu0 0.0
    %1579 = vmatpush1.msra.mxu0 0.0
    %1580 = vmatprep.subr.mxu0 0.0
    %1581 = vmatpush1.msra.mxu0 0.0
    %1582 = vmatprep.subr.mxu0 0.0
    %1583 = vmatpush1.msra.mxu0 0.0
    %1584 = vmatprep.subr.mxu0 0.0
    %1585 = vmatpush1.msra.mxu0 0.0
    %1586 = vmatprep.subr.mxu0 0.0
    %1587 = vmatpush1.msra.mxu0 0.0
    %1588 = vmatprep.subr.mxu0 0.0
    %1589 = vmatpush1.msra.mxu0 0.0
    %1590 = vmatprep.subr.mxu0 0.0
    %1591 = vmatpush1.msra.mxu0 0.0
    %1592 = vmatprep.subr.mxu0 0.0
    %1593 = vmatpush1.msra.mxu0 0.0
    %1594 = vmatprep.subr.mxu0 0.0
    %1595 = vmatpush1.msra.mxu0 0.0
    %1596 = vmatprep.subr.mxu0 0.0
    %1597 = vmatpush1.msra.mxu0 0.0
    %1598 = vmatprep.subr.mxu0 0.0
    %1599 = vmatpush1.msra.mxu0 0.0
    %1600 = vmatprep.mubr.f32.mxu0 0.0
    %1601 = vmatmul.mubr.f32.gmra.mrb[0].mxu0 %v1188
    %v1602 = vpop.f32.mrb[0].mxu0
    %v1603 = vadd.f32 %v1461, %v1602
    %v1604 = vpop.f32.mrb[0].mxu0
    %1605 = vdwg.mxu0
    %v1606 = vadd.f32 %v1326, %v1532
    %v1607 = vxor.u32 %v1606, 2147483648
    %v1608 = vmul.f32 %v1607, 1.442695
    %v1609 = vpow.pop %v1608
    %v1610 = vadd.f32 %v1609, 1.0
    %v1611 = vrcp.pop %v1610
    %v1612 = vmul.f32 1.0, %v1611
    %v1613 = vadd.f32 %v1328, %v1534
    %v1614 = vxor.u32 %v1613, 2147483648
    %v1615 = vmul.f32 %v1614, 1.442695
    %v1616 = vpow.pop %v1615
    %v1617 = vadd.f32 %v1616, 1.0
    %v1618 = vrcp.pop %v1617
    %v1619 = vmul.f32 1.0, %v1618
    %v1620 = vmul.f32 %v1612, %v1603
    %v1621 = vadd.f32 %v1397, %v1620
    %v1622 = vtanh.pop %v1621
    %v1623 = vsub.f32 1.0, %v1619
    %v1624 = vmul.f32 %v1623, %v1622
    %v1625 = vmul.f32 %v1619, %v1188
    %v1626 = vadd.f32 %v1624, %v1625
    %v1627 = vld [vmem:[#allocation10] sm:$0xff]
    %v1628 = vld [vmem:[#allocation10 + $0x8] sm:$0xff]
    %v1629 = vld [vmem:[#allocation10 + $0x10] sm:$0xff]
    %v1630 = vld [vmem:[#allocation10 + $0x18] sm:$0xff]
    %v1631 = vld [vmem:[#allocation10 + $0x20] sm:$0xff]
    %v1632 = vld [vmem:[#allocation10 + $0x28] sm:$0xff]
    %v1633 = vld [vmem:[#allocation10 + $0x30] sm:$0xff]
    %v1634 = vld [vmem:[#allocation10 + $0x38] sm:$0xff]
    %v1635 = vld [vmem:[#allocation10 + $0x40] sm:$0xff]
    %v1636 = vld [vmem:[#allocation10 + $0x48] sm:$0xff]
    %v1637 = vld [vmem:[#allocation10 + $0x50] sm:$0xff]
    %v1638 = vld [vmem:[#allocation10 + $0x58] sm:$0xff]
    %v1639 = vld [vmem:[#allocation10 + $0x60] sm:$0xff]
    %v1640 = vld [vmem:[#allocation10 + $0x68] sm:$0xff]
    %v1641 = vld [vmem:[#allocation10 + $0x70] sm:$0xff]
    %v1642 = vld [vmem:[#allocation10 + $0x78] sm:$0xff]
    %v1643 = vld [vmem:[%s8] sm:$0x1]
    %1644 = vmatprep.subr.mxu0 0.0
    %1645 = vmatpush1.msra.mxu0 %v1627
    %1646 = vmatprep.subr.mxu0 0.0
    %1647 = vmatpush1.msra.mxu0 %v1628
    %1648 = vmatprep.subr.mxu0 0.0
    %1649 = vmatpush1.msra.mxu0 %v1629
    %1650 = vmatprep.subr.mxu0 0.0
    %1651 = vmatpush1.msra.mxu0 %v1630
    %1652 = vmatprep.subr.mxu0 0.0
    %1653 = vmatpush1.msra.mxu0 %v1631
    %1654 = vmatprep.subr.mxu0 0.0
    %1655 = vmatpush1.msra.mxu0 %v1632
    %1656 = vmatprep.subr.mxu0 0.0
    %1657 = vmatpush1.msra.mxu0 %v1633
    %1658 = vmatprep.subr.mxu0 0.0
    %1659 = vmatpush1.msra.mxu0 %v1634
    %1660 = vmatprep.subr.mxu0 0.0
    %1661 = vmatpush1.msra.mxu0 %v1635
    %1662 = vmatprep.subr.mxu0 0.0
    %1663 = vmatpush1.msra.mxu0 %v1636
    %1664 = vmatprep.subr.mxu0 0.0
    %1665 = vmatpush1.msra.mxu0 %v1637
    %1666 = vmatprep.subr.mxu0 0.0
    %1667 = vmatpush1.msra.mxu0 %v1638
    %1668 = vmatprep.subr.mxu0 0.0
    %1669 = vmatpush1.msra.mxu0 %v1639
    %1670 = vmatprep.subr.mxu0 0.0
    %1671 = vmatpush1.msra.mxu0 %v1640
    %1672 = vmatprep.subr.mxu0 0.0
    %1673 = vmatpush1.msra.mxu0 %v1641
    %1674 = vmatprep.subr.mxu0 0.0
    %1675 = vmatpush1.msra.mxu0 %v1642
    %1676 = vmatprep.subr.mxu0 0.0
    %1677 = vmatpush1.msra.mxu0 0.0
    %1678 = vmatprep.subr.mxu0 0.0
    %1679 = vmatpush1.msra.mxu0 0.0
    %1680 = vmatprep.subr.mxu0 0.0
    %1681 = vmatpush1.msra.mxu0 0.0
    %1682 = vmatprep.subr.mxu0 0.0
    %1683 = vmatpush1.msra.mxu0 0.0
    %1684 = vmatprep.subr.mxu0 0.0
    %1685 = vmatpush1.msra.mxu0 0.0
    %1686 = vmatprep.subr.mxu0 0.0
    %1687 = vmatpush1.msra.mxu0 0.0
    %1688 = vmatprep.subr.mxu0 0.0
    %1689 = vmatpush1.msra.mxu0 0.0
    %1690 = vmatprep.subr.mxu0 0.0
    %1691 = vmatpush1.msra.mxu0 0.0
    %1692 = vmatprep.subr.mxu0 0.0
    %1693 = vmatpush1.msra.mxu0 0.0
    %1694 = vmatprep.subr.mxu0 0.0
    %1695 = vmatpush1.msra.mxu0 0.0
    %1696 = vmatprep.subr.mxu0 0.0
    %1697 = vmatpush1.msra.mxu0 0.0
    %1698 = vmatprep.subr.mxu0 0.0
    %1699 = vmatpush1.msra.mxu0 0.0
    %1700 = vmatprep.subr.mxu0 0.0
    %1701 = vmatpush1.msra.mxu0 0.0
    %1702 = vmatprep.subr.mxu0 0.0
    %1703 = vmatpush1.msra.mxu0 0.0
    %1704 = vmatprep.subr.mxu0 0.0
    %1705 = vmatpush1.msra.mxu0 0.0
    %1706 = vmatprep.subr.mxu0 0.0
    %1707 = vmatpush1.msra.mxu0 0.0
    %1708 = vmatprep.mubr.f32.mxu0 0.0
    %1709 = vmatmul.mubr.f32.gmra.mrb[0].mxu0 %v1626
    %v1710 = vpop.f32.mrb[0].mxu0
    %v1711 = vadd.f32 %v1643, %v1710
    %v1712 = vpop.f32.mrb[0].mxu0
    %1713 = vdwg.mxu0
    %v1714 = vsel %vm625, %v1711, -inf
    %1715 = vmax.xlane.f32.xlu0 %v1714
    %v1716 = vpop.xlane.xlu0 %1715
    %v1717 = vsub.f32 %v1711, %v1716
    %v1718 = vmul.f32 %v1717, 1.442695
    %v1719 = vpow.pop %v1718
    %v1720 = vsel %vm625, %v1719, 0.0
    %1721 = vadd.xlane.f32.xlu0 %v1720
    %v1722 = vpop.xlane.xlu0 %1721
    %v1723 = vlog2.pop %v1722
    %v1724 = vmul.f32 %v1723, 0.6931472
    %v1725 = vadd.f32 %v1716, %v1724
    %v1726 = vsub.f32 %v1711, %v1725
    %1727 = vst [vmem:[#allocation12 + $0x2] sm:$0x1] %v1726
    %p1728 = scmp.lt.s32.totalorder %s1189, 1
    %s1729 = scalar_select %p1728, 1, 0
    %v1730 = vstv %s1729
    %vm1731 = vcmp.eq.s32.totalorder %v1730, 1
    %v1732 = vsel %vm1731, %v1626, %v1188
    %s1733 = sadd.s32 %s99, 3
    %s1734 = sld [smem:[#allocation3 + %s1733]]
    %s1735 = scalar_lea.vmem [#allocation4], %s1734
    %v1736 = vld [vmem:[%s1735] sm:$0x1]
    %v1737 = vmax.f32 %v1736, 0.0
    %v1738 = vld [vmem:[#allocation7] sm:$0xff]
    %v1739 = vld [vmem:[#allocation7 + $0x8] sm:$0xff]
    %v1740 = vld [vmem:[#allocation7 + $0x10] sm:$0xff]
    %v1741 = vld [vmem:[#allocation7 + $0x18] sm:$0xff]
    %v1742 = vld [vmem:[#allocation7 + $0x20] sm:$0xff]
    %v1743 = vld [vmem:[#allocation7 + $0x28] sm:$0xff]
    %v1744 = vld [vmem:[#allocation7 + $0x30] sm:$0xff]
    %v1745 = vld [vmem:[#allocation7 + $0x38] sm:$0xff]
    %v1746 = vld [vmem:[#allocation7 + $0x40] sm:$0xff]
    %v1747 = vld [vmem:[#allocation7 + $0x48] sm:$0xff]
    %v1748 = vld [vmem:[#allocation7 + $0x50] sm:$0xff]
    %v1749 = vld [vmem:[#allocation7 + $0x58] sm:$0xff]
    %v1750 = vld [vmem:[#allocation7 + $0x60] sm:$0xff]
    %v1751 = vld [vmem:[#allocation7 + $0x68] sm:$0xff]
    %v1752 = vld [vmem:[#allocation7 + $0x70] sm:$0xff]
    %v1753 = vld [vmem:[#allocation7 + $0x78] sm:$0xff]
    %v1754 = vld [vmem:[#allocation7 + $0x80] sm:$0xff]
    %v1755 = vld [vmem:[#allocation7 + $0x88] sm:$0xff]
    %v1756 = vld [vmem:[#allocation7 + $0x90] sm:$0xff]
    %v1757 = vld [vmem:[#allocation7 + $0x98] sm:$0xff]
    %v1758 = vld [vmem:[#allocation7 + $0xa0] sm:$0xff]
    %v1759 = vld [vmem:[#allocation7 + $0xa8] sm:$0xff]
    %v1760 = vld [vmem:[#allocation7 + $0xb0] sm:$0xff]
    %v1761 = vld [vmem:[#allocation7 + $0xb8] sm:$0xff]
    %v1762 = vld [vmem:[#allocation7 + $0xc0] sm:$0xff]
    %v1763 = vld [vmem:[#allocation7 + $0xc8] sm:$0xff]
    %v1764 = vld [vmem:[#allocation7 + $0xd0] sm:$0xff]
    %v1765 = vld [vmem:[#allocation7 + $0xd8] sm:$0xff]
    %v1766 = vld [vmem:[#allocation7 + $0xe0] sm:$0xff]
    %v1767 = vld [vmem:[#allocation7 + $0xe8] sm:$0xff]
    %v1768 = vld [vmem:[#allocation7 + $0xf0] sm:$0xff]
    %v1769 = vld [vmem:[#allocation7 + $0xf8] sm:$0xff]
    %v1770 = vld [vmem:[#allocation7 + $0x100] sm:$0xff]
    %v1771 = vld [vmem:[#allocation7 + $0x108] sm:$0xff]
    %v1772 = vld [vmem:[#allocation7 + $0x110] sm:$0xff]
    %v1773 = vld [vmem:[#allocation7 + $0x118] sm:$0xff]
    %v1774 = vld [vmem:[#allocation7 + $0x120] sm:$0xff]
    %v1775 = vld [vmem:[#allocation7 + $0x128] sm:$0xff]
    %v1776 = vld [vmem:[#allocation7 + $0x130] sm:$0xff]
    %v1777 = vld [vmem:[#allocation7 + $0x138] sm:$0xff]
    %v1778 = vld [vmem:[#allocation7 + $0x140] sm:$0xff]
    %v1779 = vld [vmem:[#allocation7 + $0x148] sm:$0xff]
    %v1780 = vld [vmem:[#allocation7 + $0x150] sm:$0xff]
    %v1781 = vld [vmem:[#allocation7 + $0x158] sm:$0xff]
    %v1782 = vld [vmem:[#allocation7 + $0x160] sm:$0xff]
    %v1783 = vld [vmem:[#allocation7 + $0x168] sm:$0xff]
    %v1784 = vld [vmem:[#allocation7 + $0x170] sm:$0xff]
    %v1785 = vld [vmem:[#allocation7 + $0x178] sm:$0xff]
    %v1786 = vld [vmem:[%s5] sm:$0x7]
    %v1788 = vlaneseq
    %v1789 = vshrl.u32 %v1788, 7
    %v1790 = vsub.s32 0, %v1789
    %v1791 = vrot.slane %v1786, %v1790
    %v1792 = vlaneseq
    %v1793 = vshrl.u32 %v1792, 7
    %v1794 = vsub.s32 1, %v1793
    %v1795 = vrot.slane %v1786, %v1794
    %v1796 = vlaneseq
    %v1797 = vshrl.u32 %v1796, 7
    %v1798 = vsub.s32 2, %v1797
    %v1799 = vrot.slane %v1786, %v1798
    %1803 = vmatprep.subr.mxu0 %v1739
    %1804 = vmatpush1.msra.mxu0 %v1738
    %1805 = vmatprep.subr.mxu0 %v1742
    %1806 = vmatpush1.msra.mxu0 %v1741
    %1807 = vmatprep.subr.mxu0 %v1745
    %1808 = vmatpush1.msra.mxu0 %v1744
    %1809 = vmatprep.subr.mxu0 %v1748
    %1810 = vmatpush1.msra.mxu0 %v1747
    %1811 = vmatprep.subr.mxu0 %v1751
    %1812 = vmatpush1.msra.mxu0 %v1750
    %1813 = vmatprep.subr.mxu0 %v1754
    %1814 = vmatpush1.msra.mxu0 %v1753
    %1815 = vmatprep.subr.mxu0 %v1757
    %1816 = vmatpush1.msra.mxu0 %v1756
    %1817 = vmatprep.subr.mxu0 %v1760
    %1818 = vmatpush1.msra.mxu0 %v1759
    %1819 = vmatprep.subr.mxu0 %v1763
    %1820 = vmatpush1.msra.mxu0 %v1762
    %1821 = vmatprep.subr.mxu0 %v1766
    %1822 = vmatpush1.msra.mxu0 %v1765
    %1823 = vmatprep.subr.mxu0 %v1769
    %1824 = vmatpush1.msra.mxu0 %v1768
    %1825 = vmatprep.subr.mxu0 %v1772
    %1826 = vmatpush1.msra.mxu0 %v1771
    %1827 = vmatprep.subr.mxu0 %v1775
    %1828 = vmatpush1.msra.mxu0 %v1774
    %1829 = vmatprep.subr.mxu0 %v1778
    %1830 = vmatpush1.msra.mxu0 %v1777
    %1831 = vmatprep.subr.mxu0 %v1781
    %1832 = vmatpush1.msra.mxu0 %v1780
    %1833 = vmatprep.subr.mxu0 %v1784
    %1834 = vmatpush1.msra.mxu0 %v1783
    %1835 = vmatprep.subr.mxu0 0.0
    %1836 = vmatpush1.msra.mxu0 0.0
    %1837 = vmatprep.subr.mxu0 0.0
    %1838 = vmatpush1.msra.mxu0 0.0
    %1839 = vmatprep.subr.mxu0 0.0
    %1840 = vmatpush1.msra.mxu0 0.0
    %1841 = vmatprep.subr.mxu0 0.0
    %1842 = vmatpush1.msra.mxu0 0.0
    %1843 = vmatprep.subr.mxu0 0.0
    %1844 = vmatpush1.msra.mxu0 0.0
    %1845 = vmatprep.subr.mxu0 0.0
    %1846 = vmatpush1.msra.mxu0 0.0
    %1847 = vmatprep.subr.mxu0 0.0
    %1848 = vmatpush1.msra.mxu0 0.0
    %1849 = vmatprep.subr.mxu0 0.0
    %1850 = vmatpush1.msra.mxu0 0.0
    %1851 = vmatprep.subr.mxu0 0.0
    %1852 = vmatpush1.msra.mxu0 0.0
    %1853 = vmatprep.subr.mxu0 0.0
    %1854 = vmatpush1.msra.mxu0 0.0
    %1855 = vmatprep.subr.mxu0 0.0
    %1856 = vmatpush1.msra.mxu0 0.0
    %1857 = vmatprep.subr.mxu0 0.0
    %1858 = vmatpush1.msra.mxu0 0.0
    %1859 = vmatprep.subr.mxu0 0.0
    %1860 = vmatpush1.msra.mxu0 0.0
    %1861 = vmatprep.subr.mxu0 0.0
    %1862 = vmatpush1.msra.mxu0 0.0
    %1863 = vmatprep.subr.mxu0 0.0
    %1864 = vmatpush1.msra.mxu0 0.0
    %1865 = vmatprep.subr.mxu0 0.0
    %1866 = vmatpush1.msra.mxu0 0.0
    %1867 = vmatprep.mubr.f32.mxu0 0.0
    %1868 = vmatmul.mubr.f32.gmra.mrb[0].mxu0 %v1737
    %v1869 = vpop.f32.mrb[0].mxu0
    %v1870 = vadd.f32 %v1791, %v1869
    %v1871 = vpop.f32.mrb[0].mxu0
    %v1872 = vadd.f32 %v1795, %v1871
    %1873 = vdwg.mxu0
    %1874 = vmatprep.subr.mxu0 0.0
    %1875 = vmatpush1.msra.mxu0 %v1740
    %1876 = vmatprep.subr.mxu0 0.0
    %1877 = vmatpush1.msra.mxu0 %v1743
    %1878 = vmatprep.subr.mxu0 0.0
    %1879 = vmatpush1.msra.mxu0 %v1746
    %1880 = vmatprep.subr.mxu0 0.0
    %1881 = vmatpush1.msra.mxu0 %v1749
    %1882 = vmatprep.subr.mxu0 0.0
    %1883 = vmatpush1.msra.mxu0 %v1752
    %1884 = vmatprep.subr.mxu0 0.0
    %1885 = vmatpush1.msra.mxu0 %v1755
    %1886 = vmatprep.subr.mxu0 0.0
    %1887 = vmatpush1.msra.mxu0 %v1758
    %1888 = vmatprep.subr.mxu0 0.0
    %1889 = vmatpush1.msra.mxu0 %v1761
    %1890 = vmatprep.subr.mxu0 0.0
    %1891 = vmatpush1.msra.mxu0 %v1764
    %1892 = vmatprep.subr.mxu0 0.0
    %1893 = vmatpush1.msra.mxu0 %v1767
    %1894 = vmatprep.subr.mxu0 0.0
    %1895 = vmatpush1.msra.mxu0 %v1770
    %1896 = vmatprep.subr.mxu0 0.0
    %1897 = vmatpush1.msra.mxu0 %v1773
    %1898 = vmatprep.subr.mxu0 0.0
    %1899 = vmatpush1.msra.mxu0 %v1776
    %1900 = vmatprep.subr.mxu0 0.0
    %1901 = vmatpush1.msra.mxu0 %v1779
    %1902 = vmatprep.subr.mxu0 0.0
    %1903 = vmatpush1.msra.mxu0 %v1782
    %1904 = vmatprep.subr.mxu0 0.0
    %1905 = vmatpush1.msra.mxu0 %v1785
    %1906 = vmatprep.subr.mxu0 0.0
    %1907 = vmatpush1.msra.mxu0 0.0
    %1908 = vmatprep.subr.mxu0 0.0
    %1909 = vmatpush1.msra.mxu0 0.0
    %1910 = vmatprep.subr.mxu0 0.0
    %1911 = vmatpush1.msra.mxu0 0.0
    %1912 = vmatprep.subr.mxu0 0.0
    %1913 = vmatpush1.msra.mxu0 0.0
    %1914 = vmatprep.subr.mxu0 0.0
    %1915 = vmatpush1.msra.mxu0 0.0
    %1916 = vmatprep.subr.mxu0 0.0
    %1917 = vmatpush1.msra.mxu0 0.0
    %1918 = vmatprep.subr.mxu0 0.0
    %1919 = vmatpush1.msra.mxu0 0.0
    %1920 = vmatprep.subr.mxu0 0.0
    %1921 = vmatpush1.msra.mxu0 0.0
    %1922 = vmatprep.subr.mxu0 0.0
    %1923 = vmatpush1.msra.mxu0 0.0
    %1924 = vmatprep.subr.mxu0 0.0
    %1925 = vmatpush1.msra.mxu0 0.0
    %1926 = vmatprep.subr.mxu0 0.0
    %1927 = vmatpush1.msra.mxu0 0.0
    %1928 = vmatprep.subr.mxu0 0.0
    %1929 = vmatpush1.msra.mxu0 0.0
    %1930 = vmatprep.subr.mxu0 0.0
    %1931 = vmatpush1.msra.mxu0 0.0
    %1932 = vmatprep.subr.mxu0 0.0
    %1933 = vmatpush1.msra.mxu0 0.0
    %1934 = vmatprep.subr.mxu0 0.0
    %1935 = vmatpush1.msra.mxu0 0.0
    %1936 = vmatprep.subr.mxu0 0.0
    %1937 = vmatpush1.msra.mxu0 0.0
    %1938 = vmatprep.mubr.f32.mxu0 0.0
    %1939 = vmatmul.mubr.f32.gmra.mrb[0].mxu0 %v1737
    %v1940 = vpop.f32.mrb[0].mxu0
    %v1941 = vadd.f32 %v1799, %v1940
    %v1942 = vpop.f32.mrb[0].mxu0
    %1943 = vdwg.mxu0
    %v1944 = vld [vmem:[#allocation9] sm:$0xff]
    %v1945 = vld [vmem:[#allocation9 + $0x8] sm:$0xff]
    %v1946 = vld [vmem:[#allocation9 + $0x10] sm:$0xff]
    %v1947 = vld [vmem:[#allocation9 + $0x18] sm:$0xff]
    %v1948 = vld [vmem:[#allocation9 + $0x20] sm:$0xff]
    %v1949 = vld [vmem:[#allocation9 + $0x28] sm:$0xff]
    %v1950 = vld [vmem:[#allocation9 + $0x30] sm:$0xff]
    %v1951 = vld [vmem:[#allocation9 + $0x38] sm:$0xff]
    %v1952 = vld [vmem:[#allocation9 + $0x40] sm:$0xff]
    %v1953 = vld [vmem:[#allocation9 + $0x48] sm:$0xff]
    %v1954 = vld [vmem:[#allocation9 + $0x50] sm:$0xff]
    %v1955 = vld [vmem:[#allocation9 + $0x58] sm:$0xff]
    %v1956 = vld [vmem:[#allocation9 + $0x60] sm:$0xff]
    %v1957 = vld [vmem:[#allocation9 + $0x68] sm:$0xff]
    %v1958 = vld [vmem:[#allocation9 + $0x70] sm:$0xff]
    %v1959 = vld [vmem:[#allocation9 + $0x78] sm:$0xff]
    %v1960 = vld [vmem:[#allocation9 + $0x80] sm:$0xff]
    %v1961 = vld [vmem:[#allocation9 + $0x88] sm:$0xff]
    %v1962 = vld [vmem:[#allocation9 + $0x90] sm:$0xff]
    %v1963 = vld [vmem:[#allocation9 + $0x98] sm:$0xff]
    %v1964 = vld [vmem:[#allocation9 + $0xa0] sm:$0xff]
    %v1965 = vld [vmem:[#allocation9 + $0xa8] sm:$0xff]
    %v1966 = vld [vmem:[#allocation9 + $0xb0] sm:$0xff]
    %v1967 = vld [vmem:[#allocation9 + $0xb8] sm:$0xff]
    %v1968 = vld [vmem:[#allocation9 + $0xc0] sm:$0xff]
    %v1969 = vld [vmem:[#allocation9 + $0xc8] sm:$0xff]
    %v1970 = vld [vmem:[#allocation9 + $0xd0] sm:$0xff]
    %v1971 = vld [vmem:[#allocation9 + $0xd8] sm:$0xff]
    %v1972 = vld [vmem:[#allocation9 + $0xe0] sm:$0xff]
    %v1973 = vld [vmem:[#allocation9 + $0xe8] sm:$0xff]
    %v1974 = vld [vmem:[#allocation9 + $0xf0] sm:$0xff]
    %v1975 = vld [vmem:[#allocation9 + $0xf8] sm:$0xff]
    %v1976 = vld [vmem:[#allocation9 + $0x100] sm:$0xff]
    %v1977 = vld [vmem:[#allocation9 + $0x108] sm:$0xff]
    %v1978 = vld [vmem:[#allocation9 + $0x110] sm:$0xff]
    %v1979 = vld [vmem:[#allocation9 + $0x118] sm:$0xff]
    %v1980 = vld [vmem:[#allocation9 + $0x120] sm:$0xff]
    %v1981 = vld [vmem:[#allocation9 + $0x128] sm:$0xff]
    %v1982 = vld [vmem:[#allocation9 + $0x130] sm:$0xff]
    %v1983 = vld [vmem:[#allocation9 + $0x138] sm:$0xff]
    %v1984 = vld [vmem:[#allocation9 + $0x140] sm:$0xff]
    %v1985 = vld [vmem:[#allocation9 + $0x148] sm:$0xff]
    %v1986 = vld [vmem:[#allocation9 + $0x150] sm:$0xff]
    %v1987 = vld [vmem:[#allocation9 + $0x158] sm:$0xff]
    %v1988 = vld [vmem:[#allocation9 + $0x160] sm:$0xff]
    %v1989 = vld [vmem:[#allocation9 + $0x168] sm:$0xff]
    %v1990 = vld [vmem:[#allocation9 + $0x170] sm:$0xff]
    %v1991 = vld [vmem:[#allocation9 + $0x178] sm:$0xff]
    %v1992 = vld [vmem:[%s6] sm:$0x7]
    %v1994 = vlaneseq
    %v1995 = vshrl.u32 %v1994, 7
    %v1996 = vsub.s32 0, %v1995
    %v1997 = vrot.slane %v1992, %v1996
    %v1998 = vlaneseq
    %v1999 = vshrl.u32 %v1998, 7
    %v2000 = vsub.s32 1, %v1999
    %v2001 = vrot.slane %v1992, %v2000
    %v2002 = vlaneseq
    %v2003 = vshrl.u32 %v2002, 7
    %v2004 = vsub.s32 2, %v2003
    %v2005 = vrot.slane %v1992, %v2004
    %2009 = vmatprep.subr.mxu0 %v1945
    %2010 = vmatpush1.msra.mxu0 %v1944
    %2011 = vmatprep.subr.mxu0 %v1948
    %2012 = vmatpush1.msra.mxu0 %v1947
    %2013 = vmatprep.subr.mxu0 %v1951
    %2014 = vmatpush1.msra.mxu0 %v1950
    %2015 = vmatprep.subr.mxu0 %v1954
    %2016 = vmatpush1.msra.mxu0 %v1953
    %2017 = vmatprep.subr.mxu0 %v1957
    %2018 = vmatpush1.msra.mxu0 %v1956
    %2019 = vmatprep.subr.mxu0 %v1960
    %2020 = vmatpush1.msra.mxu0 %v1959
    %2021 = vmatprep.subr.mxu0 %v1963
    %2022 = vmatpush1.msra.mxu0 %v1962
    %2023 = vmatprep.subr.mxu0 %v1966
    %2024 = vmatpush1.msra.mxu0 %v1965
    %2025 = vmatprep.subr.mxu0 %v1969
    %2026 = vmatpush1.msra.mxu0 %v1968
    %2027 = vmatprep.subr.mxu0 %v1972
    %2028 = vmatpush1.msra.mxu0 %v1971
    %2029 = vmatprep.subr.mxu0 %v1975
    %2030 = vmatpush1.msra.mxu0 %v1974
    %2031 = vmatprep.subr.mxu0 %v1978
    %2032 = vmatpush1.msra.mxu0 %v1977
    %2033 = vmatprep.subr.mxu0 %v1981
    %2034 = vmatpush1.msra.mxu0 %v1980
    %2035 = vmatprep.subr.mxu0 %v1984
    %2036 = vmatpush1.msra.mxu0 %v1983
    %2037 = vmatprep.subr.mxu0 %v1987
    %2038 = vmatpush1.msra.mxu0 %v1986
    %2039 = vmatprep.subr.mxu0 %v1990
    %2040 = vmatpush1.msra.mxu0 %v1989
    %2041 = vmatprep.subr.mxu0 0.0
    %2042 = vmatpush1.msra.mxu0 0.0
    %2043 = vmatprep.subr.mxu0 0.0
    %2044 = vmatpush1.msra.mxu0 0.0
    %2045 = vmatprep.subr.mxu0 0.0
    %2046 = vmatpush1.msra.mxu0 0.0
    %2047 = vmatprep.subr.mxu0 0.0
    %2048 = vmatpush1.msra.mxu0 0.0
    %2049 = vmatprep.subr.mxu0 0.0
    %2050 = vmatpush1.msra.mxu0 0.0
    %2051 = vmatprep.subr.mxu0 0.0
    %2052 = vmatpush1.msra.mxu0 0.0
    %2053 = vmatprep.subr.mxu0 0.0
    %2054 = vmatpush1.msra.mxu0 0.0
    %2055 = vmatprep.subr.mxu0 0.0
    %2056 = vmatpush1.msra.mxu0 0.0
    %2057 = vmatprep.subr.mxu0 0.0
    %2058 = vmatpush1.msra.mxu0 0.0
    %2059 = vmatprep.subr.mxu0 0.0
    %2060 = vmatpush1.msra.mxu0 0.0
    %2061 = vmatprep.subr.mxu0 0.0
    %2062 = vmatpush1.msra.mxu0 0.0
    %2063 = vmatprep.subr.mxu0 0.0
    %2064 = vmatpush1.msra.mxu0 0.0
    %2065 = vmatprep.subr.mxu0 0.0
    %2066 = vmatpush1.msra.mxu0 0.0
    %2067 = vmatprep.subr.mxu0 0.0
    %2068 = vmatpush1.msra.mxu0 0.0
    %2069 = vmatprep.subr.mxu0 0.0
    %2070 = vmatpush1.msra.mxu0 0.0
    %2071 = vmatprep.subr.mxu0 0.0
    %2072 = vmatpush1.msra.mxu0 0.0
    %2073 = vmatprep.mubr.f32.mxu0 0.0
    %2074 = vmatmul.mubr.f32.gmra.mrb[0].mxu0 %v1732
    %v2075 = vpop.f32.mrb[0].mxu0
    %v2076 = vadd.f32 %v1997, %v2075
    %v2077 = vpop.f32.mrb[0].mxu0
    %v2078 = vadd.f32 %v2001, %v2077
    %2079 = vdwg.mxu0
    %2080 = vmatprep.subr.mxu0 0.0
    %2081 = vmatpush1.msra.mxu0 %v1946
    %2082 = vmatprep.subr.mxu0 0.0
    %2083 = vmatpush1.msra.mxu0 %v1949
    %2084 = vmatprep.subr.mxu0 0.0
    %2085 = vmatpush1.msra.mxu0 %v1952
    %2086 = vmatprep.subr.mxu0 0.0
    %2087 = vmatpush1.msra.mxu0 %v1955
    %2088 = vmatprep.subr.mxu0 0.0
    %2089 = vmatpush1.msra.mxu0 %v1958
    %2090 = vmatprep.subr.mxu0 0.0
    %2091 = vmatpush1.msra.mxu0 %v1961
    %2092 = vmatprep.subr.mxu0 0.0
    %2093 = vmatpush1.msra.mxu0 %v1964
    %2094 = vmatprep.subr.mxu0 0.0
    %2095 = vmatpush1.msra.mxu0 %v1967
    %2096 = vmatprep.subr.mxu0 0.0
    %2097 = vmatpush1.msra.mxu0 %v1970
    %2098 = vmatprep.subr.mxu0 0.0
    %2099 = vmatpush1.msra.mxu0 %v1973
    %2100 = vmatprep.subr.mxu0 0.0
    %2101 = vmatpush1.msra.mxu0 %v1976
    %2102 = vmatprep.subr.mxu0 0.0
    %2103 = vmatpush1.msra.mxu0 %v1979
    %2104 = vmatprep.subr.mxu0 0.0
    %2105 = vmatpush1.msra.mxu0 %v1982
    %2106 = vmatprep.subr.mxu0 0.0
    %2107 = vmatpush1.msra.mxu0 %v1985
    %2108 = vmatprep.subr.mxu0 0.0
    %2109 = vmatpush1.msra.mxu0 %v1988
    %2110 = vmatprep.subr.mxu0 0.0
    %2111 = vmatpush1.msra.mxu0 %v1991
    %2112 = vmatprep.subr.mxu0 0.0
    %2113 = vmatpush1.msra.mxu0 0.0
    %2114 = vmatprep.subr.mxu0 0.0
    %2115 = vmatpush1.msra.mxu0 0.0
    %2116 = vmatprep.subr.mxu0 0.0
    %2117 = vmatpush1.msra.mxu0 0.0
    %2118 = vmatprep.subr.mxu0 0.0
    %2119 = vmatpush1.msra.mxu0 0.0
    %2120 = vmatprep.subr.mxu0 0.0
    %2121 = vmatpush1.msra.mxu0 0.0
    %2122 = vmatprep.subr.mxu0 0.0
    %2123 = vmatpush1.msra.mxu0 0.0
    %2124 = vmatprep.subr.mxu0 0.0
    %2125 = vmatpush1.msra.mxu0 0.0
    %2126 = vmatprep.subr.mxu0 0.0
    %2127 = vmatpush1.msra.mxu0 0.0
    %2128 = vmatprep.subr.mxu0 0.0
    %2129 = vmatpush1.msra.mxu0 0.0
    %2130 = vmatprep.subr.mxu0 0.0
    %2131 = vmatpush1.msra.mxu0 0.0
    %2132 = vmatprep.subr.mxu0 0.0
    %2133 = vmatpush1.msra.mxu0 0.0
    %2134 = vmatprep.subr.mxu0 0.0
    %2135 = vmatpush1.msra.mxu0 0.0
    %2136 = vmatprep.subr.mxu0 0.0
    %2137 = vmatpush1.msra.mxu0 0.0
    %2138 = vmatprep.subr.mxu0 0.0
    %2139 = vmatpush1.msra.mxu0 0.0
    %2140 = vmatprep.subr.mxu0 0.0
    %2141 = vmatpush1.msra.mxu0 0.0
    %2142 = vmatprep.subr.mxu0 0.0
    %2143 = vmatpush1.msra.mxu0 0.0
    %2144 = vmatprep.mubr.f32.mxu0 0.0
    %2145 = vmatmul.mubr.f32.gmra.mrb[0].mxu0 %v1732
    %v2146 = vpop.f32.mrb[0].mxu0
    %v2147 = vadd.f32 %v2005, %v2146
    %v2148 = vpop.f32.mrb[0].mxu0
    %2149 = vdwg.mxu0
    %v2150 = vadd.f32 %v1870, %v2076
    %v2151 = vxor.u32 %v2150, 2147483648
    %v2152 = vmul.f32 %v2151, 1.442695
    %v2153 = vpow.pop %v2152
    %v2154 = vadd.f32 %v2153, 1.0
    %v2155 = vrcp.pop %v2154
    %v2156 = vmul.f32 1.0, %v2155
    %v2157 = vadd.f32 %v1872, %v2078
    %v2158 = vxor.u32 %v2157, 2147483648
    %v2159 = vmul.f32 %v2158, 1.442695
    %v2160 = vpow.pop %v2159
    %v2161 = vadd.f32 %v2160, 1.0
    %v2162 = vrcp.pop %v2161
    %v2163 = vmul.f32 1.0, %v2162
    %v2164 = vmul.f32 %v2156, %v2147
    %v2165 = vadd.f32 %v1941, %v2164
    %v2166 = vtanh.pop %v2165
    %v2167 = vsub.f32 1.0, %v2163
    %v2168 = vmul.f32 %v2167, %v2166
    %v2169 = vmul.f32 %v2163, %v1732
    %v2170 = vadd.f32 %v2168, %v2169
    %v2171 = vld [vmem:[#allocation10] sm:$0xff]
    %v2172 = vld [vmem:[#allocation10 + $0x8] sm:$0xff]
    %v2173 = vld [vmem:[#allocation10 + $0x10] sm:$0xff]
    %v2174 = vld [vmem:[#allocation10 + $0x18] sm:$0xff]
    %v2175 = vld [vmem:[#allocation10 + $0x20] sm:$0xff]
    %v2176 = vld [vmem:[#allocation10 + $0x28] sm:$0xff]
    %v2177 = vld [vmem:[#allocation10 + $0x30] sm:$0xff]
    %v2178 = vld [vmem:[#allocation10 + $0x38] sm:$0xff]
    %v2179 = vld [vmem:[#allocation10 + $0x40] sm:$0xff]
    %v2180 = vld [vmem:[#allocation10 + $0x48] sm:$0xff]
    %v2181 = vld [vmem:[#allocation10 + $0x50] sm:$0xff]
    %v2182 = vld [vmem:[#allocation10 + $0x58] sm:$0xff]
    %v2183 = vld [vmem:[#allocation10 + $0x60] sm:$0xff]
    %v2184 = vld [vmem:[#allocation10 + $0x68] sm:$0xff]
    %v2185 = vld [vmem:[#allocation10 + $0x70] sm:$0xff]
    %v2186 = vld [vmem:[#allocation10 + $0x78] sm:$0xff]
    %v2187 = vld [vmem:[%s8] sm:$0x1]
    %2188 = vmatprep.subr.mxu0 0.0
    %2189 = vmatpush1.msra.mxu0 %v2171
    %2190 = vmatprep.subr.mxu0 0.0
    %2191 = vmatpush1.msra.mxu0 %v2172
    %2192 = vmatprep.subr.mxu0 0.0
    %2193 = vmatpush1.msra.mxu0 %v2173
    %2194 = vmatprep.subr.mxu0 0.0
    %2195 = vmatpush1.msra.mxu0 %v2174
    %2196 = vmatprep.subr.mxu0 0.0
    %2197 = vmatpush1.msra.mxu0 %v2175
    %2198 = vmatprep.subr.mxu0 0.0
    %2199 = vmatpush1.msra.mxu0 %v2176
    %2200 = vmatprep.subr.mxu0 0.0
    %2201 = vmatpush1.msra.mxu0 %v2177
    %2202 = vmatprep.subr.mxu0 0.0
    %2203 = vmatpush1.msra.mxu0 %v2178
    %2204 = vmatprep.subr.mxu0 0.0
    %2205 = vmatpush1.msra.mxu0 %v2179
    %2206 = vmatprep.subr.mxu0 0.0
    %2207 = vmatpush1.msra.mxu0 %v2180
    %2208 = vmatprep.subr.mxu0 0.0
    %2209 = vmatpush1.msra.mxu0 %v2181
    %2210 = vmatprep.subr.mxu0 0.0
    %2211 = vmatpush1.msra.mxu0 %v2182
    %2212 = vmatprep.subr.mxu0 0.0
    %2213 = vmatpush1.msra.mxu0 %v2183
    %2214 = vmatprep.subr.mxu0 0.0
    %2215 = vmatpush1.msra.mxu0 %v2184
    %2216 = vmatprep.subr.mxu0 0.0
    %2217 = vmatpush1.msra.mxu0 %v2185
    %2218 = vmatprep.subr.mxu0 0.0
    %2219 = vmatpush1.msra.mxu0 %v2186
    %2220 = vmatprep.subr.mxu0 0.0
    %2221 = vmatpush1.msra.mxu0 0.0
    %2222 = vmatprep.subr.mxu0 0.0
    %2223 = vmatpush1.msra.mxu0 0.0
    %2224 = vmatprep.subr.mxu0 0.0
    %2225 = vmatpush1.msra.mxu0 0.0
    %2226 = vmatprep.subr.mxu0 0.0
    %2227 = vmatpush1.msra.mxu0 0.0
    %2228 = vmatprep.subr.mxu0 0.0
    %2229 = vmatpush1.msra.mxu0 0.0
    %2230 = vmatprep.subr.mxu0 0.0
    %2231 = vmatpush1.msra.mxu0 0.0
    %2232 = vmatprep.subr.mxu0 0.0
    %2233 = vmatpush1.msra.mxu0 0.0
    %2234 = vmatprep.subr.mxu0 0.0
    %2235 = vmatpush1.msra.mxu0 0.0
    %2236 = vmatprep.subr.mxu0 0.0
    %2237 = vmatpush1.msra.mxu0 0.0
    %2238 = vmatprep.subr.mxu0 0.0
    %2239 = vmatpush1.msra.mxu0 0.0
    %2240 = vmatprep.subr.mxu0 0.0
    %2241 = vmatpush1.msra.mxu0 0.0
    %2242 = vmatprep.subr.mxu0 0.0
    %2243 = vmatpush1.msra.mxu0 0.0
    %2244 = vmatprep.subr.mxu0 0.0
    %2245 = vmatpush1.msra.mxu0 0.0
    %2246 = vmatprep.subr.mxu0 0.0
    %2247 = vmatpush1.msra.mxu0 0.0
    %2248 = vmatprep.subr.mxu0 0.0
    %2249 = vmatpush1.msra.mxu0 0.0
    %2250 = vmatprep.subr.mxu0 0.0
    %2251 = vmatpush1.msra.mxu0 0.0
    %2252 = vmatprep.mubr.f32.mxu0 0.0
    %2253 = vmatmul.mubr.f32.gmra.mrb[0].mxu0 %v2170
    %v2254 = vpop.f32.mrb[0].mxu0
    %v2255 = vadd.f32 %v2187, %v2254
    %v2256 = vpop.f32.mrb[0].mxu0
    %2257 = vdwg.mxu0
    %v2258 = vsel %vm625, %v2255, -inf
    %2259 = vmax.xlane.f32.xlu0 %v2258
    %v2260 = vpop.xlane.xlu0 %2259
    %v2261 = vsub.f32 %v2255, %v2260
    %v2262 = vmul.f32 %v2261, 1.442695
    %v2263 = vpow.pop %v2262
    %v2264 = vsel %vm625, %v2263, 0.0
    %2265 = vadd.xlane.f32.xlu0 %v2264
    %v2266 = vpop.xlane.xlu0 %2265
    %v2267 = vlog2.pop %v2266
    %v2268 = vmul.f32 %v2267, 0.6931472
    %v2269 = vadd.f32 %v2260, %v2268
    %v2270 = vsub.f32 %v2255, %v2269
    %2271 = vst [vmem:[#allocation12 + $0x3] sm:$0x1] %v2270
    %p2272 = scmp.lt.s32.totalorder %s1733, 1
    %s2273 = scalar_select %p2272, 1, 0
    %v2274 = vstv %s2273
    %vm2275 = vcmp.eq.s32.totalorder %v2274, 1
    %v2276 = vsel %vm2275, %v2170, %v1732
    %s2277 = sadd.s32 %s99, 4
    %s2278 = sld [smem:[#allocation3 + %s2277]]
    %s2279 = scalar_lea.vmem [#allocation4], %s2278
    %v2280 = vld [vmem:[%s2279] sm:$0x1]
    %v2281 = vmax.f32 %v2280, 0.0
    %v2282 = vld [vmem:[#allocation7] sm:$0xff]
    %v2283 = vld [vmem:[#allocation7 + $0x8] sm:$0xff]
    %v2284 = vld [vmem:[#allocation7 + $0x10] sm:$0xff]
    %v2285 = vld [vmem:[#allocation7 + $0x18] sm:$0xff]
    %v2286 = vld [vmem:[#allocation7 + $0x20] sm:$0xff]
    %v2287 = vld [vmem:[#allocation7 + $0x28] sm:$0xff]
    %v2288 = vld [vmem:[#allocation7 + $0x30] sm:$0xff]
    %v2289 = vld [vmem:[#allocation7 + $0x38] sm:$0xff]
    %v2290 = vld [vmem:[#allocation7 + $0x40] sm:$0xff]
    %v2291 = vld [vmem:[#allocation7 + $0x48] sm:$0xff]
    %v2292 = vld [vmem:[#allocation7 + $0x50] sm:$0xff]
    %v2293 = vld [vmem:[#allocation7 + $0x58] sm:$0xff]
    %v2294 = vld [vmem:[#allocation7 + $0x60] sm:$0xff]
    %v2295 = vld [vmem:[#allocation7 + $0x68] sm:$0xff]
    %v2296 = vld [vmem:[#allocation7 + $0x70] sm:$0xff]
    %v2297 = vld [vmem:[#allocation7 + $0x78] sm:$0xff]
    %v2298 = vld [vmem:[#allocation7 + $0x80] sm:$0xff]
    %v2299 = vld [vmem:[#allocation7 + $0x88] sm:$0xff]
    %v2300 = vld [vmem:[#allocation7 + $0x90] sm:$0xff]
    %v2301 = vld [vmem:[#allocation7 + $0x98] sm:$0xff]
    %v2302 = vld [vmem:[#allocation7 + $0xa0] sm:$0xff]
    %v2303 = vld [vmem:[#allocation7 + $0xa8] sm:$0xff]
    %v2304 = vld [vmem:[#allocation7 + $0xb0] sm:$0xff]
    %v2305 = vld [vmem:[#allocation7 + $0xb8] sm:$0xff]
    %v2306 = vld [vmem:[#allocation7 + $0xc0] sm:$0xff]
    %v2307 = vld [vmem:[#allocation7 + $0xc8] sm:$0xff]
    %v2308 = vld [vmem:[#allocation7 + $0xd0] sm:$0xff]
    %v2309 = vld [vmem:[#allocation7 + $0xd8] sm:$0xff]
    %v2310 = vld [vmem:[#allocation7 + $0xe0] sm:$0xff]
    %v2311 = vld [vmem:[#allocation7 + $0xe8] sm:$0xff]
    %v2312 = vld [vmem:[#allocation7 + $0xf0] sm:$0xff]
    %v2313 = vld [vmem:[#allocation7 + $0xf8] sm:$0xff]
    %v2314 = vld [vmem:[#allocation7 + $0x100] sm:$0xff]
    %v2315 = vld [vmem:[#allocation7 + $0x108] sm:$0xff]
    %v2316 = vld [vmem:[#allocation7 + $0x110] sm:$0xff]
    %v2317 = vld [vmem:[#allocation7 + $0x118] sm:$0xff]
    %v2318 = vld [vmem:[#allocation7 + $0x120] sm:$0xff]
    %v2319 = vld [vmem:[#allocation7 + $0x128] sm:$0xff]
    %v2320 = vld [vmem:[#allocation7 + $0x130] sm:$0xff]
    %v2321 = vld [vmem:[#allocation7 + $0x138] sm:$0xff]
    %v2322 = vld [vmem:[#allocation7 + $0x140] sm:$0xff]
    %v2323 = vld [vmem:[#allocation7 + $0x148] sm:$0xff]
    %v2324 = vld [vmem:[#allocation7 + $0x150] sm:$0xff]
    %v2325 = vld [vmem:[#allocation7 + $0x158] sm:$0xff]
    %v2326 = vld [vmem:[#allocation7 + $0x160] sm:$0xff]
    %v2327 = vld [vmem:[#allocation7 + $0x168] sm:$0xff]
    %v2328 = vld [vmem:[#allocation7 + $0x170] sm:$0xff]
    %v2329 = vld [vmem:[#allocation7 + $0x178] sm:$0xff]
    %v2330 = vld [vmem:[%s5] sm:$0x7]
    %v2332 = vlaneseq
    %v2333 = vshrl.u32 %v2332, 7
    %v2334 = vsub.s32 0, %v2333
    %v2335 = vrot.slane %v2330, %v2334
    %v2336 = vlaneseq
    %v2337 = vshrl.u32 %v2336, 7
    %v2338 = vsub.s32 1, %v2337
    %v2339 = vrot.slane %v2330, %v2338
    %v2340 = vlaneseq
    %v2341 = vshrl.u32 %v2340, 7
    %v2342 = vsub.s32 2, %v2341
    %v2343 = vrot.slane %v2330, %v2342
    %2347 = vmatprep.subr.mxu0 %v2283
    %2348 = vmatpush1.msra.mxu0 %v2282
    %2349 = vmatprep.subr.mxu0 %v2286
    %2350 = vmatpush1.msra.mxu0 %v2285
    %2351 = vmatprep.subr.mxu0 %v2289
    %2352 = vmatpush1.msra.mxu0 %v2288
    %2353 = vmatprep.subr.mxu0 %v2292
    %2354 = vmatpush1.msra.mxu0 %v2291
    %2355 = vmatprep.subr.mxu0 %v2295
    %2356 = vmatpush1.msra.mxu0 %v2294
    %2357 = vmatprep.subr.mxu0 %v2298
    %2358 = vmatpush1.msra.mxu0 %v2297
    %2359 = vmatprep.subr.mxu0 %v2301
    %2360 = vmatpush1.msra.mxu0 %v2300
    %2361 = vmatprep.subr.mxu0 %v2304
    %2362 = vmatpush1.msra.mxu0 %v2303
    %2363 = vmatprep.subr.mxu0 %v2307
    %2364 = vmatpush1.msra.mxu0 %v2306
    %2365 = vmatprep.subr.mxu0 %v2310
    %2366 = vmatpush1.msra.mxu0 %v2309
    %2367 = vmatprep.subr.mxu0 %v2313
    %2368 = vmatpush1.msra.mxu0 %v2312
    %2369 = vmatprep.subr.mxu0 %v2316
    %2370 = vmatpush1.msra.mxu0 %v2315
    %2371 = vmatprep.subr.mxu0 %v2319
    %2372 = vmatpush1.msra.mxu0 %v2318
    %2373 = vmatprep.subr.mxu0 %v2322
    %2374 = vmatpush1.msra.mxu0 %v2321
    %2375 = vmatprep.subr.mxu0 %v2325
    %2376 = vmatpush1.msra.mxu0 %v2324
    %2377 = vmatprep.subr.mxu0 %v2328
    %2378 = vmatpush1.msra.mxu0 %v2327
    %2379 = vmatprep.subr.mxu0 0.0
    %2380 = vmatpush1.msra.mxu0 0.0
    %2381 = vmatprep.subr.mxu0 0.0
    %2382 = vmatpush1.msra.mxu0 0.0
    %2383 = vmatprep.subr.mxu0 0.0
    %2384 = vmatpush1.msra.mxu0 0.0
    %2385 = vmatprep.subr.mxu0 0.0
    %2386 = vmatpush1.msra.mxu0 0.0
    %2387 = vmatprep.subr.mxu0 0.0
    %2388 = vmatpush1.msra.mxu0 0.0
    %2389 = vmatprep.subr.mxu0 0.0
    %2390 = vmatpush1.msra.mxu0 0.0
    %2391 = vmatprep.subr.mxu0 0.0
    %2392 = vmatpush1.msra.mxu0 0.0
    %2393 = vmatprep.subr.mxu0 0.0
    %2394 = vmatpush1.msra.mxu0 0.0
    %2395 = vmatprep.subr.mxu0 0.0
    %2396 = vmatpush1.msra.mxu0 0.0
    %2397 = vmatprep.subr.mxu0 0.0
    %2398 = vmatpush1.msra.mxu0 0.0
    %2399 = vmatprep.subr.mxu0 0.0
    %2400 = vmatpush1.msra.mxu0 0.0
    %2401 = vmatprep.subr.mxu0 0.0
    %2402 = vmatpush1.msra.mxu0 0.0
    %2403 = vmatprep.subr.mxu0 0.0
    %2404 = vmatpush1.msra.mxu0 0.0
    %2405 = vmatprep.subr.mxu0 0.0
    %2406 = vmatpush1.msra.mxu0 0.0
    %2407 = vmatprep.subr.mxu0 0.0
    %2408 = vmatpush1.msra.mxu0 0.0
    %2409 = vmatprep.subr.mxu0 0.0
    %2410 = vmatpush1.msra.mxu0 0.0
    %2411 = vmatprep.mubr.f32.mxu0 0.0
    %2412 = vmatmul.mubr.f32.gmra.mrb[0].mxu0 %v2281
    %v2413 = vpop.f32.mrb[0].mxu0
    %v2414 = vadd.f32 %v2335, %v2413
    %v2415 = vpop.f32.mrb[0].mxu0
    %v2416 = vadd.f32 %v2339, %v2415
    %2417 = vdwg.mxu0
    %2418 = vmatprep.subr.mxu0 0.0
    %2419 = vmatpush1.msra.mxu0 %v2284
    %2420 = vmatprep.subr.mxu0 0.0
    %2421 = vmatpush1.msra.mxu0 %v2287
    %2422 = vmatprep.subr.mxu0 0.0
    %2423 = vmatpush1.msra.mxu0 %v2290
    %2424 = vmatprep.subr.mxu0 0.0
    %2425 = vmatpush1.msra.mxu0 %v2293
    %2426 = vmatprep.subr.mxu0 0.0
    %2427 = vmatpush1.msra.mxu0 %v2296
    %2428 = vmatprep.subr.mxu0 0.0
    %2429 = vmatpush1.msra.mxu0 %v2299
    %2430 = vmatprep.subr.mxu0 0.0
    %2431 = vmatpush1.msra.mxu0 %v2302
    %2432 = vmatprep.subr.mxu0 0.0
    %2433 = vmatpush1.msra.mxu0 %v2305
    %2434 = vmatprep.subr.mxu0 0.0
    %2435 = vmatpush1.msra.mxu0 %v2308
    %2436 = vmatprep.subr.mxu0 0.0
    %2437 = vmatpush1.msra.mxu0 %v2311
    %2438 = vmatprep.subr.mxu0 0.0
    %2439 = vmatpush1.msra.mxu0 %v2314
    %2440 = vmatprep.subr.mxu0 0.0
    %2441 = vmatpush1.msra.mxu0 %v2317
    %2442 = vmatprep.subr.mxu0 0.0
    %2443 = vmatpush1.msra.mxu0 %v2320
    %2444 = vmatprep.subr.mxu0 0.0
    %2445 = vmatpush1.msra.mxu0 %v2323
    %2446 = vmatprep.subr.mxu0 0.0
    %2447 = vmatpush1.msra.mxu0 %v2326
    %2448 = vmatprep.subr.mxu0 0.0
    %2449 = vmatpush1.msra.mxu0 %v2329
    %2450 = vmatprep.subr.mxu0 0.0
    %2451 = vmatpush1.msra.mxu0 0.0
    %2452 = vmatprep.subr.mxu0 0.0
    %2453 = vmatpush1.msra.mxu0 0.0
    %2454 = vmatprep.subr.mxu0 0.0
    %2455 = vmatpush1.msra.mxu0 0.0
    %2456 = vmatprep.subr.mxu0 0.0
    %2457 = vmatpush1.msra.mxu0 0.0
    %2458 = vmatprep.subr.mxu0 0.0
    %2459 = vmatpush1.msra.mxu0 0.0
    %2460 = vmatprep.subr.mxu0 0.0
    %2461 = vmatpush1.msra.mxu0 0.0
    %2462 = vmatprep.subr.mxu0 0.0
    %2463 = vmatpush1.msra.mxu0 0.0
    %2464 = vmatprep.subr.mxu0 0.0
    %2465 = vmatpush1.msra.mxu0 0.0
    %2466 = vmatprep.subr.mxu0 0.0
    %2467 = vmatpush1.msra.mxu0 0.0
    %2468 = vmatprep.subr.mxu0 0.0
    %2469 = vmatpush1.msra.mxu0 0.0
    %2470 = vmatprep.subr.mxu0 0.0
    %2471 = vmatpush1.msra.mxu0 0.0
    %2472 = vmatprep.subr.mxu0 0.0
    %2473 = vmatpush1.msra.mxu0 0.0
    %2474 = vmatprep.subr.mxu0 0.0
    %2475 = vmatpush1.msra.mxu0 0.0
    %2476 = vmatprep.subr.mxu0 0.0
    %2477 = vmatpush1.msra.mxu0 0.0
    %2478 = vmatprep.subr.mxu0 0.0
    %2479 = vmatpush1.msra.mxu0 0.0
    %2480 = vmatprep.subr.mxu0 0.0
    %2481 = vmatpush1.msra.mxu0 0.0
    %2482 = vmatprep.mubr.f32.mxu0 0.0
    %2483 = vmatmul.mubr.f32.gmra.mrb[0].mxu0 %v2281
    %v2484 = vpop.f32.mrb[0].mxu0
    %v2485 = vadd.f32 %v2343, %v2484
    %v2486 = vpop.f32.mrb[0].mxu0
    %2487 = vdwg.mxu0
    %v2488 = vld [vmem:[#allocation9] sm:$0xff]
    %v2489 = vld [vmem:[#allocation9 + $0x8] sm:$0xff]
    %v2490 = vld [vmem:[#allocation9 + $0x10] sm:$0xff]
    %v2491 = vld [vmem:[#allocation9 + $0x18] sm:$0xff]
    %v2492 = vld [vmem:[#allocation9 + $0x20] sm:$0xff]
    %v2493 = vld [vmem:[#allocation9 + $0x28] sm:$0xff]
    %v2494 = vld [vmem:[#allocation9 + $0x30] sm:$0xff]
    %v2495 = vld [vmem:[#allocation9 + $0x38] sm:$0xff]
    %v2496 = vld [vmem:[#allocation9 + $0x40] sm:$0xff]
    %v2497 = vld [vmem:[#allocation9 + $0x48] sm:$0xff]
    %v2498 = vld [vmem:[#allocation9 + $0x50] sm:$0xff]
    %v2499 = vld [vmem:[#allocation9 + $0x58] sm:$0xff]
    %v2500 = vld [vmem:[#allocation9 + $0x60] sm:$0xff]
    %v2501 = vld [vmem:[#allocation9 + $0x68] sm:$0xff]
    %v2502 = vld [vmem:[#allocation9 + $0x70] sm:$0xff]
    %v2503 = vld [vmem:[#allocation9 + $0x78] sm:$0xff]
    %v2504 = vld [vmem:[#allocation9 + $0x80] sm:$0xff]
    %v2505 = vld [vmem:[#allocation9 + $0x88] sm:$0xff]
    %v2506 = vld [vmem:[#allocation9 + $0x90] sm:$0xff]
    %v2507 = vld [vmem:[#allocation9 + $0x98] sm:$0xff]
    %v2508 = vld [vmem:[#allocation9 + $0xa0] sm:$0xff]
    %v2509 = vld [vmem:[#allocation9 + $0xa8] sm:$0xff]
    %v2510 = vld [vmem:[#allocation9 + $0xb0] sm:$0xff]
    %v2511 = vld [vmem:[#allocation9 + $0xb8] sm:$0xff]
    %v2512 = vld [vmem:[#allocation9 + $0xc0] sm:$0xff]
    %v2513 = vld [vmem:[#allocation9 + $0xc8] sm:$0xff]
    %v2514 = vld [vmem:[#allocation9 + $0xd0] sm:$0xff]
    %v2515 = vld [vmem:[#allocation9 + $0xd8] sm:$0xff]
    %v2516 = vld [vmem:[#allocation9 + $0xe0] sm:$0xff]
    %v2517 = vld [vmem:[#allocation9 + $0xe8] sm:$0xff]
    %v2518 = vld [vmem:[#allocation9 + $0xf0] sm:$0xff]
    %v2519 = vld [vmem:[#allocation9 + $0xf8] sm:$0xff]
    %v2520 = vld [vmem:[#allocation9 + $0x100] sm:$0xff]
    %v2521 = vld [vmem:[#allocation9 + $0x108] sm:$0xff]
    %v2522 = vld [vmem:[#allocation9 + $0x110] sm:$0xff]
    %v2523 = vld [vmem:[#allocation9 + $0x118] sm:$0xff]
    %v2524 = vld [vmem:[#allocation9 + $0x120] sm:$0xff]
    %v2525 = vld [vmem:[#allocation9 + $0x128] sm:$0xff]
    %v2526 = vld [vmem:[#allocation9 + $0x130] sm:$0xff]
    %v2527 = vld [vmem:[#allocation9 + $0x138] sm:$0xff]
    %v2528 = vld [vmem:[#allocation9 + $0x140] sm:$0xff]
    %v2529 = vld [vmem:[#allocation9 + $0x148] sm:$0xff]
    %v2530 = vld [vmem:[#allocation9 + $0x150] sm:$0xff]
    %v2531 = vld [vmem:[#allocation9 + $0x158] sm:$0xff]
    %v2532 = vld [vmem:[#allocation9 + $0x160] sm:$0xff]
    %v2533 = vld [vmem:[#allocation9 + $0x168] sm:$0xff]
    %v2534 = vld [vmem:[#allocation9 + $0x170] sm:$0xff]
    %v2535 = vld [vmem:[#allocation9 + $0x178] sm:$0xff]
    %v2536 = vld [vmem:[%s6] sm:$0x7]
    %v2538 = vlaneseq
    %v2539 = vshrl.u32 %v2538, 7
    %v2540 = vsub.s32 0, %v2539
    %v2541 = vrot.slane %v2536, %v2540
    %v2542 = vlaneseq
    %v2543 = vshrl.u32 %v2542, 7
    %v2544 = vsub.s32 1, %v2543
    %v2545 = vrot.slane %v2536, %v2544
    %v2546 = vlaneseq
    %v2547 = vshrl.u32 %v2546, 7
    %v2548 = vsub.s32 2, %v2547
    %v2549 = vrot.slane %v2536, %v2548
    %2553 = vmatprep.subr.mxu0 %v2489
    %2554 = vmatpush1.msra.mxu0 %v2488
    %2555 = vmatprep.subr.mxu0 %v2492
    %2556 = vmatpush1.msra.mxu0 %v2491
    %2557 = vmatprep.subr.mxu0 %v2495
    %2558 = vmatpush1.msra.mxu0 %v2494
    %2559 = vmatprep.subr.mxu0 %v2498
    %2560 = vmatpush1.msra.mxu0 %v2497
    %2561 = vmatprep.subr.mxu0 %v2501
    %2562 = vmatpush1.msra.mxu0 %v2500
    %2563 = vmatprep.subr.mxu0 %v2504
    %2564 = vmatpush1.msra.mxu0 %v2503
    %2565 = vmatprep.subr.mxu0 %v2507
    %2566 = vmatpush1.msra.mxu0 %v2506
    %2567 = vmatprep.subr.mxu0 %v2510
    %2568 = vmatpush1.msra.mxu0 %v2509
    %2569 = vmatprep.subr.mxu0 %v2513
    %2570 = vmatpush1.msra.mxu0 %v2512
    %2571 = vmatprep.subr.mxu0 %v2516
    %2572 = vmatpush1.msra.mxu0 %v2515
    %2573 = vmatprep.subr.mxu0 %v2519
    %2574 = vmatpush1.msra.mxu0 %v2518
    %2575 = vmatprep.subr.mxu0 %v2522
    %2576 = vmatpush1.msra.mxu0 %v2521
    %2577 = vmatprep.subr.mxu0 %v2525
    %2578 = vmatpush1.msra.mxu0 %v2524
    %2579 = vmatprep.subr.mxu0 %v2528
    %2580 = vmatpush1.msra.mxu0 %v2527
    %2581 = vmatprep.subr.mxu0 %v2531
    %2582 = vmatpush1.msra.mxu0 %v2530
    %2583 = vmatprep.subr.mxu0 %v2534
    %2584 = vmatpush1.msra.mxu0 %v2533
    %2585 = vmatprep.subr.mxu0 0.0
    %2586 = vmatpush1.msra.mxu0 0.0
    %2587 = vmatprep.subr.mxu0 0.0
    %2588 = vmatpush1.msra.mxu0 0.0
    %2589 = vmatprep.subr.mxu0 0.0
    %2590 = vmatpush1.msra.mxu0 0.0
    %2591 = vmatprep.subr.mxu0 0.0
    %2592 = vmatpush1.msra.mxu0 0.0
    %2593 = vmatprep.subr.mxu0 0.0
    %2594 = vmatpush1.msra.mxu0 0.0
    %2595 = vmatprep.subr.mxu0 0.0
    %2596 = vmatpush1.msra.mxu0 0.0
    %2597 = vmatprep.subr.mxu0 0.0
    %2598 = vmatpush1.msra.mxu0 0.0
    %2599 = vmatprep.subr.mxu0 0.0
    %2600 = vmatpush1.msra.mxu0 0.0
    %2601 = vmatprep.subr.mxu0 0.0
    %2602 = vmatpush1.msra.mxu0 0.0
    %2603 = vmatprep.subr.mxu0 0.0
    %2604 = vmatpush1.msra.mxu0 0.0
    %2605 = vmatprep.subr.mxu0 0.0
    %2606 = vmatpush1.msra.mxu0 0.0
    %2607 = vmatprep.subr.mxu0 0.0
    %2608 = vmatpush1.msra.mxu0 0.0
    %2609 = vmatprep.subr.mxu0 0.0
    %2610 = vmatpush1.msra.mxu0 0.0
    %2611 = vmatprep.subr.mxu0 0.0
    %2612 = vmatpush1.msra.mxu0 0.0
    %2613 = vmatprep.subr.mxu0 0.0
    %2614 = vmatpush1.msra.mxu0 0.0
    %2615 = vmatprep.subr.mxu0 0.0
    %2616 = vmatpush1.msra.mxu0 0.0
    %2617 = vmatprep.mubr.f32.mxu0 0.0
    %2618 = vmatmul.mubr.f32.gmra.mrb[0].mxu0 %v2276
    %v2619 = vpop.f32.mrb[0].mxu0
    %v2620 = vadd.f32 %v2541, %v2619
    %v2621 = vpop.f32.mrb[0].mxu0
    %v2622 = vadd.f32 %v2545, %v2621
    %2623 = vdwg.mxu0
    %2624 = vmatprep.subr.mxu0 0.0
    %2625 = vmatpush1.msra.mxu0 %v2490
    %2626 = vmatprep.subr.mxu0 0.0
    %2627 = vmatpush1.msra.mxu0 %v2493
    %2628 = vmatprep.subr.mxu0 0.0
    %2629 = vmatpush1.msra.mxu0 %v2496
    %2630 = vmatprep.subr.mxu0 0.0
    %2631 = vmatpush1.msra.mxu0 %v2499
    %2632 = vmatprep.subr.mxu0 0.0
    %2633 = vmatpush1.msra.mxu0 %v2502
    %2634 = vmatprep.subr.mxu0 0.0
    %2635 = vmatpush1.msra.mxu0 %v2505
    %2636 = vmatprep.subr.mxu0 0.0
    %2637 = vmatpush1.msra.mxu0 %v2508
    %2638 = vmatprep.subr.mxu0 0.0
    %2639 = vmatpush1.msra.mxu0 %v2511
    %2640 = vmatprep.subr.mxu0 0.0
    %2641 = vmatpush1.msra.mxu0 %v2514
    %2642 = vmatprep.subr.mxu0 0.0
    %2643 = vmatpush1.msra.mxu0 %v2517
    %2644 = vmatprep.subr.mxu0 0.0
    %2645 = vmatpush1.msra.mxu0 %v2520
    %2646 = vmatprep.subr.mxu0 0.0
    %2647 = vmatpush1.msra.mxu0 %v2523
    %2648 = vmatprep.subr.mxu0 0.0
    %2649 = vmatpush1.msra.mxu0 %v2526
    %2650 = vmatprep.subr.mxu0 0.0
    %2651 = vmatpush1.msra.mxu0 %v2529
    %2652 = vmatprep.subr.mxu0 0.0
    %2653 = vmatpush1.msra.mxu0 %v2532
    %2654 = vmatprep.subr.mxu0 0.0
    %2655 = vmatpush1.msra.mxu0 %v2535
    %2656 = vmatprep.subr.mxu0 0.0
    %2657 = vmatpush1.msra.mxu0 0.0
    %2658 = vmatprep.subr.mxu0 0.0
    %2659 = vmatpush1.msra.mxu0 0.0
    %2660 = vmatprep.subr.mxu0 0.0
    %2661 = vmatpush1.msra.mxu0 0.0
    %2662 = vmatprep.subr.mxu0 0.0
    %2663 = vmatpush1.msra.mxu0 0.0
    %2664 = vmatprep.subr.mxu0 0.0
    %2665 = vmatpush1.msra.mxu0 0.0
    %2666 = vmatprep.subr.mxu0 0.0
    %2667 = vmatpush1.msra.mxu0 0.0
    %2668 = vmatprep.subr.mxu0 0.0
    %2669 = vmatpush1.msra.mxu0 0.0
    %2670 = vmatprep.subr.mxu0 0.0
    %2671 = vmatpush1.msra.mxu0 0.0
    %2672 = vmatprep.subr.mxu0 0.0
    %2673 = vmatpush1.msra.mxu0 0.0
    %2674 = vmatprep.subr.mxu0 0.0
    %2675 = vmatpush1.msra.mxu0 0.0
    %2676 = vmatprep.subr.mxu0 0.0
    %2677 = vmatpush1.msra.mxu0 0.0
    %2678 = vmatprep.subr.mxu0 0.0
    %2679 = vmatpush1.msra.mxu0 0.0
    %2680 = vmatprep.subr.mxu0 0.0
    %2681 = vmatpush1.msra.mxu0 0.0
    %2682 = vmatprep.subr.mxu0 0.0
    %2683 = vmatpush1.msra.mxu0 0.0
    %2684 = vmatprep.subr.mxu0 0.0
    %2685 = vmatpush1.msra.mxu0 0.0
    %2686 = vmatprep.subr.mxu0 0.0
    %2687 = vmatpush1.msra.mxu0 0.0
    %2688 = vmatprep.mubr.f32.mxu0 0.0
    %2689 = vmatmul.mubr.f32.gmra.mrb[0].mxu0 %v2276
    %v2690 = vpop.f32.mrb[0].mxu0
    %v2691 = vadd.f32 %v2549, %v2690
    %v2692 = vpop.f32.mrb[0].mxu0
    %2693 = vdwg.mxu0
    %v2694 = vadd.f32 %v2414, %v2620
    %v2695 = vxor.u32 %v2694, 2147483648
    %v2696 = vmul.f32 %v2695, 1.442695
    %v2697 = vpow.pop %v2696
    %v2698 = vadd.f32 %v2697, 1.0
    %v2699 = vrcp.pop %v2698
    %v2700 = vmul.f32 1.0, %v2699
    %v2701 = vadd.f32 %v2416, %v2622
    %v2702 = vxor.u32 %v2701, 2147483648
    %v2703 = vmul.f32 %v2702, 1.442695
    %v2704 = vpow.pop %v2703
    %v2705 = vadd.f32 %v2704, 1.0
    %v2706 = vrcp.pop %v2705
    %v2707 = vmul.f32 1.0, %v2706
    %v2708 = vmul.f32 %v2700, %v2691
    %v2709 = vadd.f32 %v2485, %v2708
    %v2710 = vtanh.pop %v2709
    %v2711 = vsub.f32 1.0, %v2707
    %v2712 = vmul.f32 %v2711, %v2710
    %v2713 = vmul.f32 %v2707, %v2276
    %v2714 = vadd.f32 %v2712, %v2713
    %v2715 = vld [vmem:[#allocation10] sm:$0xff]
    %v2716 = vld [vmem:[#allocation10 + $0x8] sm:$0xff]
    %v2717 = vld [vmem:[#allocation10 + $0x10] sm:$0xff]
    %v2718 = vld [vmem:[#allocation10 + $0x18] sm:$0xff]
    %v2719 = vld [vmem:[#allocation10 + $0x20] sm:$0xff]
    %v2720 = vld [vmem:[#allocation10 + $0x28] sm:$0xff]
    %v2721 = vld [vmem:[#allocation10 + $0x30] sm:$0xff]
    %v2722 = vld [vmem:[#allocation10 + $0x38] sm:$0xff]
    %v2723 = vld [vmem:[#allocation10 + $0x40] sm:$0xff]
    %v2724 = vld [vmem:[#allocation10 + $0x48] sm:$0xff]
    %v2725 = vld [vmem:[#allocation10 + $0x50] sm:$0xff]
    %v2726 = vld [vmem:[#allocation10 + $0x58] sm:$0xff]
    %v2727 = vld [vmem:[#allocation10 + $0x60] sm:$0xff]
    %v2728 = vld [vmem:[#allocation10 + $0x68] sm:$0xff]
    %v2729 = vld [vmem:[#allocation10 + $0x70] sm:$0xff]
    %v2730 = vld [vmem:[#allocation10 + $0x78] sm:$0xff]
    %v2731 = vld [vmem:[%s8] sm:$0x1]
    %2732 = vmatprep.subr.mxu0 0.0
    %2733 = vmatpush1.msra.mxu0 %v2715
    %2734 = vmatprep.subr.mxu0 0.0
    %2735 = vmatpush1.msra.mxu0 %v2716
    %2736 = vmatprep.subr.mxu0 0.0
    %2737 = vmatpush1.msra.mxu0 %v2717
    %2738 = vmatprep.subr.mxu0 0.0
    %2739 = vmatpush1.msra.mxu0 %v2718
    %2740 = vmatprep.subr.mxu0 0.0
    %2741 = vmatpush1.msra.mxu0 %v2719
    %2742 = vmatprep.subr.mxu0 0.0
    %2743 = vmatpush1.msra.mxu0 %v2720
    %2744 = vmatprep.subr.mxu0 0.0
    %2745 = vmatpush1.msra.mxu0 %v2721
    %2746 = vmatprep.subr.mxu0 0.0
    %2747 = vmatpush1.msra.mxu0 %v2722
    %2748 = vmatprep.subr.mxu0 0.0
    %2749 = vmatpush1.msra.mxu0 %v2723
    %2750 = vmatprep.subr.mxu0 0.0
    %2751 = vmatpush1.msra.mxu0 %v2724
    %2752 = vmatprep.subr.mxu0 0.0
    %2753 = vmatpush1.msra.mxu0 %v2725
    %2754 = vmatprep.subr.mxu0 0.0
    %2755 = vmatpush1.msra.mxu0 %v2726
    %2756 = vmatprep.subr.mxu0 0.0
    %2757 = vmatpush1.msra.mxu0 %v2727
    %2758 = vmatprep.subr.mxu0 0.0
    %2759 = vmatpush1.msra.mxu0 %v2728
    %2760 = vmatprep.subr.mxu0 0.0
    %2761 = vmatpush1.msra.mxu0 %v2729
    %2762 = vmatprep.subr.mxu0 0.0
    %2763 = vmatpush1.msra.mxu0 %v2730
    %2764 = vmatprep.subr.mxu0 0.0
    %2765 = vmatpush1.msra.mxu0 0.0
    %2766 = vmatprep.subr.mxu0 0.0
    %2767 = vmatpush1.msra.mxu0 0.0
    %2768 = vmatprep.subr.mxu0 0.0
    %2769 = vmatpush1.msra.mxu0 0.0
    %2770 = vmatprep.subr.mxu0 0.0
    %2771 = vmatpush1.msra.mxu0 0.0
    %2772 = vmatprep.subr.mxu0 0.0
    %2773 = vmatpush1.msra.mxu0 0.0
    %2774 = vmatprep.subr.mxu0 0.0
    %2775 = vmatpush1.msra.mxu0 0.0
    %2776 = vmatprep.subr.mxu0 0.0
    %2777 = vmatpush1.msra.mxu0 0.0
    %2778 = vmatprep.subr.mxu0 0.0
    %2779 = vmatpush1.msra.mxu0 0.0
    %2780 = vmatprep.subr.mxu0 0.0
    %2781 = vmatpush1.msra.mxu0 0.0
    %2782 = vmatprep.subr.mxu0 0.0
    %2783 = vmatpush1.msra.mxu0 0.0
    %2784 = vmatprep.subr.mxu0 0.0
    %2785 = vmatpush1.msra.mxu0 0.0
    %2786 = vmatprep.subr.mxu0 0.0
    %2787 = vmatpush1.msra.mxu0 0.0
    %2788 = vmatprep.subr.mxu0 0.0
    %2789 = vmatpush1.msra.mxu0 0.0
    %2790 = vmatprep.subr.mxu0 0.0
    %2791 = vmatpush1.msra.mxu0 0.0
    %2792 = vmatprep.subr.mxu0 0.0
    %2793 = vmatpush1.msra.mxu0 0.0
    %2794 = vmatprep.subr.mxu0 0.0
    %2795 = vmatpush1.msra.mxu0 0.0
    %2796 = vmatprep.mubr.f32.mxu0 0.0
    %2797 = vmatmul.mubr.f32.gmra.mrb[0].mxu0 %v2714
    %v2798 = vpop.f32.mrb[0].mxu0
    %v2799 = vadd.f32 %v2731, %v2798
    %v2800 = vpop.f32.mrb[0].mxu0
    %2801 = vdwg.mxu0
    %v2802 = vsel %vm625, %v2799, -inf
    %2803 = vmax.xlane.f32.xlu0 %v2802
    %v2804 = vpop.xlane.xlu0 %2803
    %v2805 = vsub.f32 %v2799, %v2804
    %v2806 = vmul.f32 %v2805, 1.442695
    %v2807 = vpow.pop %v2806
    %v2808 = vsel %vm625, %v2807, 0.0
    %2809 = vadd.xlane.f32.xlu0 %v2808
    %v2810 = vpop.xlane.xlu0 %2809
    %v2811 = vlog2.pop %v2810
    %v2812 = vmul.f32 %v2811, 0.6931472
    %v2813 = vadd.f32 %v2804, %v2812
    %v2814 = vsub.f32 %v2799, %v2813
    %2815 = vst [vmem:[#allocation12 + $0x4] sm:$0x1] %v2814
    %p2816 = scmp.lt.s32.totalorder %s2277, 1
    %s2817 = scalar_select %p2816, 1, 0
    %v2818 = vstv %s2817
    %vm2819 = vcmp.eq.s32.totalorder %v2818, 1
    %v2820 = vsel %vm2819, %v2714, %v2276
    %s2821 = sadd.s32 %s99, 5
    %s2822 = sld [smem:[#allocation3 + %s2821]]
    %s2823 = scalar_lea.vmem [#allocation4], %s2822
    %v2824 = vld [vmem:[%s2823] sm:$0x1]
    %v2825 = vmax.f32 %v2824, 0.0
    %v2826 = vld [vmem:[#allocation7] sm:$0xff]
    %v2827 = vld [vmem:[#allocation7 + $0x8] sm:$0xff]
    %v2828 = vld [vmem:[#allocation7 + $0x10] sm:$0xff]
    %v2829 = vld [vmem:[#allocation7 + $0x18] sm:$0xff]
    %v2830 = vld [vmem:[#allocation7 + $0x20] sm:$0xff]
    %v2831 = vld [vmem:[#allocation7 + $0x28] sm:$0xff]
    %v2832 = vld [vmem:[#allocation7 + $0x30] sm:$0xff]
    %v2833 = vld [vmem:[#allocation7 + $0x38] sm:$0xff]
    %v2834 = vld [vmem:[#allocation7 + $0x40] sm:$0xff]
    %v2835 = vld [vmem:[#allocation7 + $0x48] sm:$0xff]
    %v2836 = vld [vmem:[#allocation7 + $0x50] sm:$0xff]
    %v2837 = vld [vmem:[#allocation7 + $0x58] sm:$0xff]
    %v2838 = vld [vmem:[#allocation7 + $0x60] sm:$0xff]
    %v2839 = vld [vmem:[#allocation7 + $0x68] sm:$0xff]
    %v2840 = vld [vmem:[#allocation7 + $0x70] sm:$0xff]
    %v2841 = vld [vmem:[#allocation7 + $0x78] sm:$0xff]
    %v2842 = vld [vmem:[#allocation7 + $0x80] sm:$0xff]
    %v2843 = vld [vmem:[#allocation7 + $0x88] sm:$0xff]
    %v2844 = vld [vmem:[#allocation7 + $0x90] sm:$0xff]
    %v2845 = vld [vmem:[#allocation7 + $0x98] sm:$0xff]
    %v2846 = vld [vmem:[#allocation7 + $0xa0] sm:$0xff]
    %v2847 = vld [vmem:[#allocation7 + $0xa8] sm:$0xff]
    %v2848 = vld [vmem:[#allocation7 + $0xb0] sm:$0xff]
    %v2849 = vld [vmem:[#allocation7 + $0xb8] sm:$0xff]
    %v2850 = vld [vmem:[#allocation7 + $0xc0] sm:$0xff]
    %v2851 = vld [vmem:[#allocation7 + $0xc8] sm:$0xff]
    %v2852 = vld [vmem:[#allocation7 + $0xd0] sm:$0xff]
    %v2853 = vld [vmem:[#allocation7 + $0xd8] sm:$0xff]
    %v2854 = vld [vmem:[#allocation7 + $0xe0] sm:$0xff]
    %v2855 = vld [vmem:[#allocation7 + $0xe8] sm:$0xff]
    %v2856 = vld [vmem:[#allocation7 + $0xf0] sm:$0xff]
    %v2857 = vld [vmem:[#allocation7 + $0xf8] sm:$0xff]
    %v2858 = vld [vmem:[#allocation7 + $0x100] sm:$0xff]
    %v2859 = vld [vmem:[#allocation7 + $0x108] sm:$0xff]
    %v2860 = vld [vmem:[#allocation7 + $0x110] sm:$0xff]
    %v2861 = vld [vmem:[#allocation7 + $0x118] sm:$0xff]
    %v2862 = vld [vmem:[#allocation7 + $0x120] sm:$0xff]
    %v2863 = vld [vmem:[#allocation7 + $0x128] sm:$0xff]
    %v2864 = vld [vmem:[#allocation7 + $0x130] sm:$0xff]
    %v2865 = vld [vmem:[#allocation7 + $0x138] sm:$0xff]
    %v2866 = vld [vmem:[#allocation7 + $0x140] sm:$0xff]
    %v2867 = vld [vmem:[#allocation7 + $0x148] sm:$0xff]
    %v2868 = vld [vmem:[#allocation7 + $0x150] sm:$0xff]
    %v2869 = vld [vmem:[#allocation7 + $0x158] sm:$0xff]
    %v2870 = vld [vmem:[#allocation7 + $0x160] sm:$0xff]
    %v2871 = vld [vmem:[#allocation7 + $0x168] sm:$0xff]
    %v2872 = vld [vmem:[#allocation7 + $0x170] sm:$0xff]
    %v2873 = vld [vmem:[#allocation7 + $0x178] sm:$0xff]
    %v2874 = vld [vmem:[%s5] sm:$0x7]
    %v2876 = vlaneseq
    %v2877 = vshrl.u32 %v2876, 7
    %v2878 = vsub.s32 0, %v2877
    %v2879 = vrot.slane %v2874, %v2878
    %v2880 = vlaneseq
    %v2881 = vshrl.u32 %v2880, 7
    %v2882 = vsub.s32 1, %v2881
    %v2883 = vrot.slane %v2874, %v2882
    %v2884 = vlaneseq
    %v2885 = vshrl.u32 %v2884, 7
    %v2886 = vsub.s32 2, %v2885
    %v2887 = vrot.slane %v2874, %v2886
    %2891 = vmatprep.subr.mxu0 %v2827
    %2892 = vmatpush1.msra.mxu0 %v2826
    %2893 = vmatprep.subr.mxu0 %v2830
    %2894 = vmatpush1.msra.mxu0 %v2829
    %2895 = vmatprep.subr.mxu0 %v2833
    %2896 = vmatpush1.msra.mxu0 %v2832
    %2897 = vmatprep.subr.mxu0 %v2836
    %2898 = vmatpush1.msra.mxu0 %v2835
    %2899 = vmatprep.subr.mxu0 %v2839
    %2900 = vmatpush1.msra.mxu0 %v2838
    %2901 = vmatprep.subr.mxu0 %v2842
    %2902 = vmatpush1.msra.mxu0 %v2841
    %2903 = vmatprep.subr.mxu0 %v2845
    %2904 = vmatpush1.msra.mxu0 %v2844
    %2905 = vmatprep.subr.mxu0 %v2848
    %2906 = vmatpush1.msra.mxu0 %v2847
    %2907 = vmatprep.subr.mxu0 %v2851
    %2908 = vmatpush1.msra.mxu0 %v2850
    %2909 = vmatprep.subr.mxu0 %v2854
    %2910 = vmatpush1.msra.mxu0 %v2853
    %2911 = vmatprep.subr.mxu0 %v2857
    %2912 = vmatpush1.msra.mxu0 %v2856
    %2913 = vmatprep.subr.mxu0 %v2860
    %2914 = vmatpush1.msra.mxu0 %v2859
    %2915 = vmatprep.subr.mxu0 %v2863
    %2916 = vmatpush1.msra.mxu0 %v2862
    %2917 = vmatprep.subr.mxu0 %v2866
    %2918 = vmatpush1.msra.mxu0 %v2865
    %2919 = vmatprep.subr.mxu0 %v2869
    %2920 = vmatpush1.msra.mxu0 %v2868
    %2921 = vmatprep.subr.mxu0 %v2872
    %2922 = vmatpush1.msra.mxu0 %v2871
    %2923 = vmatprep.subr.mxu0 0.0
    %2924 = vmatpush1.msra.mxu0 0.0
    %2925 = vmatprep.subr.mxu0 0.0
    %2926 = vmatpush1.msra.mxu0 0.0
    %2927 = vmatprep.subr.mxu0 0.0
    %2928 = vmatpush1.msra.mxu0 0.0
    %2929 = vmatprep.subr.mxu0 0.0
    %2930 = vmatpush1.msra.mxu0 0.0
    %2931 = vmatprep.subr.mxu0 0.0
    %2932 = vmatpush1.msra.mxu0 0.0
    %2933 = vmatprep.subr.mxu0 0.0
    %2934 = vmatpush1.msra.mxu0 0.0
    %2935 = vmatprep.subr.mxu0 0.0
    %2936 = vmatpush1.msra.mxu0 0.0
    %2937 = vmatprep.subr.mxu0 0.0
    %2938 = vmatpush1.msra.mxu0 0.0
    %2939 = vmatprep.subr.mxu0 0.0
    %2940 = vmatpush1.msra.mxu0 0.0
    %2941 = vmatprep.subr.mxu0 0.0
    %2942 = vmatpush1.msra.mxu0 0.0
    %2943 = vmatprep.subr.mxu0 0.0
    %2944 = vmatpush1.msra.mxu0 0.0
    %2945 = vmatprep.subr.mxu0 0.0
    %2946 = vmatpush1.msra.mxu0 0.0
    %2947 = vmatprep.subr.mxu0 0.0
    %2948 = vmatpush1.msra.mxu0 0.0
    %2949 = vmatprep.subr.mxu0 0.0
    %2950 = vmatpush1.msra.mxu0 0.0
    %2951 = vmatprep.subr.mxu0 0.0
    %2952 = vmatpush1.msra.mxu0 0.0
    %2953 = vmatprep.subr.mxu0 0.0
    %2954 = vmatpush1.msra.mxu0 0.0
    %2955 = vmatprep.mubr.f32.mxu0 0.0
    %2956 = vmatmul.mubr.f32.gmra.mrb[0].mxu0 %v2825
    %v2957 = vpop.f32.mrb[0].mxu0
    %v2958 = vadd.f32 %v2879, %v2957
    %v2959 = vpop.f32.mrb[0].mxu0
    %v2960 = vadd.f32 %v2883, %v2959
    %2961 = vdwg.mxu0
    %2962 = vmatprep.subr.mxu0 0.0
    %2963 = vmatpush1.msra.mxu0 %v2828
    %2964 = vmatprep.subr.mxu0 0.0
    %2965 = vmatpush1.msra.mxu0 %v2831
    %2966 = vmatprep.subr.mxu0 0.0
    %2967 = vmatpush1.msra.mxu0 %v2834
    %2968 = vmatprep.subr.mxu0 0.0
    %2969 = vmatpush1.msra.mxu0 %v2837
    %2970 = vmatprep.subr.mxu0 0.0
    %2971 = vmatpush1.msra.mxu0 %v2840
    %2972 = vmatprep.subr.mxu0 0.0
    %2973 = vmatpush1.msra.mxu0 %v2843
    %2974 = vmatprep.subr.mxu0 0.0
    %2975 = vmatpush1.msra.mxu0 %v2846
    %2976 = vmatprep.subr.mxu0 0.0
    %2977 = vmatpush1.msra.mxu0 %v2849
    %2978 = vmatprep.subr.mxu0 0.0
    %2979 = vmatpush1.msra.mxu0 %v2852
    %2980 = vmatprep.subr.mxu0 0.0
    %2981 = vmatpush1.msra.mxu0 %v2855
    %2982 = vmatprep.subr.mxu0 0.0
    %2983 = vmatpush1.msra.mxu0 %v2858
    %2984 = vmatprep.subr.mxu0 0.0
    %2985 = vmatpush1.msra.mxu0 %v2861
    %2986 = vmatprep.subr.mxu0 0.0
    %2987 = vmatpush1.msra.mxu0 %v2864
    %2988 = vmatprep.subr.mxu0 0.0
    %2989 = vmatpush1.msra.mxu0 %v2867
    %2990 = vmatprep.subr.mxu0 0.0
    %2991 = vmatpush1.msra.mxu0 %v2870
    %2992 = vmatprep.subr.mxu0 0.0
    %2993 = vmatpush1.msra.mxu0 %v2873
    %2994 = vmatprep.subr.mxu0 0.0
    %2995 = vmatpush1.msra.mxu0 0.0
    %2996 = vmatprep.subr.mxu0 0.0
    %2997 = vmatpush1.msra.mxu0 0.0
    %2998 = vmatprep.subr.mxu0 0.0
    %2999 = vmatpush1.msra.mxu0 0.0
    %3000 = vmatprep.subr.mxu0 0.0
    %3001 = vmatpush1.msra.mxu0 0.0
    %3002 = vmatprep.subr.mxu0 0.0
    %3003 = vmatpush1.msra.mxu0 0.0
    %3004 = vmatprep.subr.mxu0 0.0
    %3005 = vmatpush1.msra.mxu0 0.0
    %3006 = vmatprep.subr.mxu0 0.0
    %3007 = vmatpush1.msra.mxu0 0.0
    %3008 = vmatprep.subr.mxu0 0.0
    %3009 = vmatpush1.msra.mxu0 0.0
    %3010 = vmatprep.subr.mxu0 0.0
    %3011 = vmatpush1.msra.mxu0 0.0
    %3012 = vmatprep.subr.mxu0 0.0
    %3013 = vmatpush1.msra.mxu0 0.0
    %3014 = vmatprep.subr.mxu0 0.0
    %3015 = vmatpush1.msra.mxu0 0.0
    %3016 = vmatprep.subr.mxu0 0.0
    %3017 = vmatpush1.msra.mxu0 0.0
    %3018 = vmatprep.subr.mxu0 0.0
    %3019 = vmatpush1.msra.mxu0 0.0
    %3020 = vmatprep.subr.mxu0 0.0
    %3021 = vmatpush1.msra.mxu0 0.0
    %3022 = vmatprep.subr.mxu0 0.0
    %3023 = vmatpush1.msra.mxu0 0.0
    %3024 = vmatprep.subr.mxu0 0.0
    %3025 = vmatpush1.msra.mxu0 0.0
    %3026 = vmatprep.mubr.f32.mxu0 0.0
    %3027 = vmatmul.mubr.f32.gmra.mrb[0].mxu0 %v2825
    %v3028 = vpop.f32.mrb[0].mxu0
    %v3029 = vadd.f32 %v2887, %v3028
    %v3030 = vpop.f32.mrb[0].mxu0
    %3031 = vdwg.mxu0
    %v3032 = vld [vmem:[#allocation9] sm:$0xff]
    %v3033 = vld [vmem:[#allocation9 + $0x8] sm:$0xff]
    %v3034 = vld [vmem:[#allocation9 + $0x10] sm:$0xff]
    %v3035 = vld [vmem:[#allocation9 + $0x18] sm:$0xff]
    %v3036 = vld [vmem:[#allocation9 + $0x20] sm:$0xff]
    %v3037 = vld [vmem:[#allocation9 + $0x28] sm:$0xff]
    %v3038 = vld [vmem:[#allocation9 + $0x30] sm:$0xff]
    %v3039 = vld [vmem:[#allocation9 + $0x38] sm:$0xff]
    %v3040 = vld [vmem:[#allocation9 + $0x40] sm:$0xff]
    %v3041 = vld [vmem:[#allocation9 + $0x48] sm:$0xff]
    %v3042 = vld [vmem:[#allocation9 + $0x50] sm:$0xff]
    %v3043 = vld [vmem:[#allocation9 + $0x58] sm:$0xff]
    %v3044 = vld [vmem:[#allocation9 + $0x60] sm:$0xff]
    %v3045 = vld [vmem:[#allocation9 + $0x68] sm:$0xff]
    %v3046 = vld [vmem:[#allocation9 + $0x70] sm:$0xff]
    %v3047 = vld [vmem:[#allocation9 + $0x78] sm:$0xff]
    %v3048 = vld [vmem:[#allocation9 + $0x80] sm:$0xff]
    %v3049 = vld [vmem:[#allocation9 + $0x88] sm:$0xff]
    %v3050 = vld [vmem:[#allocation9 + $0x90] sm:$0xff]
    %v3051 = vld [vmem:[#allocation9 + $0x98] sm:$0xff]
    %v3052 = vld [vmem:[#allocation9 + $0xa0] sm:$0xff]
    %v3053 = vld [vmem:[#allocation9 + $0xa8] sm:$0xff]
    %v3054 = vld [vmem:[#allocation9 + $0xb0] sm:$0xff]
    %v3055 = vld [vmem:[#allocation9 + $0xb8] sm:$0xff]
    %v3056 = vld [vmem:[#allocation9 + $0xc0] sm:$0xff]
    %v3057 = vld [vmem:[#allocation9 + $0xc8] sm:$0xff]
    %v3058 = vld [vmem:[#allocation9 + $0xd0] sm:$0xff]
    %v3059 = vld [vmem:[#allocation9 + $0xd8] sm:$0xff]
    %v3060 = vld [vmem:[#allocation9 + $0xe0] sm:$0xff]
    %v3061 = vld [vmem:[#allocation9 + $0xe8] sm:$0xff]
    %v3062 = vld [vmem:[#allocation9 + $0xf0] sm:$0xff]
    %v3063 = vld [vmem:[#allocation9 + $0xf8] sm:$0xff]
    %v3064 = vld [vmem:[#allocation9 + $0x100] sm:$0xff]
    %v3065 = vld [vmem:[#allocation9 + $0x108] sm:$0xff]
    %v3066 = vld [vmem:[#allocation9 + $0x110] sm:$0xff]
    %v3067 = vld [vmem:[#allocation9 + $0x118] sm:$0xff]
    %v3068 = vld [vmem:[#allocation9 + $0x120] sm:$0xff]
    %v3069 = vld [vmem:[#allocation9 + $0x128] sm:$0xff]
    %v3070 = vld [vmem:[#allocation9 + $0x130] sm:$0xff]
    %v3071 = vld [vmem:[#allocation9 + $0x138] sm:$0xff]
    %v3072 = vld [vmem:[#allocation9 + $0x140] sm:$0xff]
    %v3073 = vld [vmem:[#allocation9 + $0x148] sm:$0xff]
    %v3074 = vld [vmem:[#allocation9 + $0x150] sm:$0xff]
    %v3075 = vld [vmem:[#allocation9 + $0x158] sm:$0xff]
    %v3076 = vld [vmem:[#allocation9 + $0x160] sm:$0xff]
    %v3077 = vld [vmem:[#allocation9 + $0x168] sm:$0xff]
    %v3078 = vld [vmem:[#allocation9 + $0x170] sm:$0xff]
    %v3079 = vld [vmem:[#allocation9 + $0x178] sm:$0xff]
    %v3080 = vld [vmem:[%s6] sm:$0x7]
    %v3082 = vlaneseq
    %v3083 = vshrl.u32 %v3082, 7
    %v3084 = vsub.s32 0, %v3083
    %v3085 = vrot.slane %v3080, %v3084
    %v3086 = vlaneseq
    %v3087 = vshrl.u32 %v3086, 7
    %v3088 = vsub.s32 1, %v3087
    %v3089 = vrot.slane %v3080, %v3088
    %v3090 = vlaneseq
    %v3091 = vshrl.u32 %v3090, 7
    %v3092 = vsub.s32 2, %v3091
    %v3093 = vrot.slane %v3080, %v3092
    %3097 = vmatprep.subr.mxu0 %v3033
    %3098 = vmatpush1.msra.mxu0 %v3032
    %3099 = vmatprep.subr.mxu0 %v3036
    %3100 = vmatpush1.msra.mxu0 %v3035
    %3101 = vmatprep.subr.mxu0 %v3039
    %3102 = vmatpush1.msra.mxu0 %v3038
    %3103 = vmatprep.subr.mxu0 %v3042
    %3104 = vmatpush1.msra.mxu0 %v3041
    %3105 = vmatprep.subr.mxu0 %v3045
    %3106 = vmatpush1.msra.mxu0 %v3044
    %3107 = vmatprep.subr.mxu0 %v3048
    %3108 = vmatpush1.msra.mxu0 %v3047
    %3109 = vmatprep.subr.mxu0 %v3051
    %3110 = vmatpush1.msra.mxu0 %v3050
    %3111 = vmatprep.subr.mxu0 %v3054
    %3112 = vmatpush1.msra.mxu0 %v3053
    %3113 = vmatprep.subr.mxu0 %v3057
    %3114 = vmatpush1.msra.mxu0 %v3056
    %3115 = vmatprep.subr.mxu0 %v3060
    %3116 = vmatpush1.msra.mxu0 %v3059
    %3117 = vmatprep.subr.mxu0 %v3063
    %3118 = vmatpush1.msra.mxu0 %v3062
    %3119 = vmatprep.subr.mxu0 %v3066
    %3120 = vmatpush1.msra.mxu0 %v3065
    %3121 = vmatprep.subr.mxu0 %v3069
    %3122 = vmatpush1.msra.mxu0 %v3068
    %3123 = vmatprep.subr.mxu0 %v3072
    %3124 = vmatpush1.msra.mxu0 %v3071
    %3125 = vmatprep.subr.mxu0 %v3075
    %3126 = vmatpush1.msra.mxu0 %v3074
    %3127 = vmatprep.subr.mxu0 %v3078
    %3128 = vmatpush1.msra.mxu0 %v3077
    %3129 = vmatprep.subr.mxu0 0.0
    %3130 = vmatpush1.msra.mxu0 0.0
    %3131 = vmatprep.subr.mxu0 0.0
    %3132 = vmatpush1.msra.mxu0 0.0
    %3133 = vmatprep.subr.mxu0 0.0
    %3134 = vmatpush1.msra.mxu0 0.0
    %3135 = vmatprep.subr.mxu0 0.0
    %3136 = vmatpush1.msra.mxu0 0.0
    %3137 = vmatprep.subr.mxu0 0.0
    %3138 = vmatpush1.msra.mxu0 0.0
    %3139 = vmatprep.subr.mxu0 0.0
    %3140 = vmatpush1.msra.mxu0 0.0
    %3141 = vmatprep.subr.mxu0 0.0
    %3142 = vmatpush1.msra.mxu0 0.0
    %3143 = vmatprep.subr.mxu0 0.0
    %3144 = vmatpush1.msra.mxu0 0.0
    %3145 = vmatprep.subr.mxu0 0.0
    %3146 = vmatpush1.msra.mxu0 0.0
    %3147 = vmatprep.subr.mxu0 0.0
    %3148 = vmatpush1.msra.mxu0 0.0
    %3149 = vmatprep.subr.mxu0 0.0
    %3150 = vmatpush1.msra.mxu0 0.0
    %3151 = vmatprep.subr.mxu0 0.0
    %3152 = vmatpush1.msra.mxu0 0.0
    %3153 = vmatprep.subr.mxu0 0.0
    %3154 = vmatpush1.msra.mxu0 0.0
    %3155 = vmatprep.subr.mxu0 0.0
    %3156 = vmatpush1.msra.mxu0 0.0
    %3157 = vmatprep.subr.mxu0 0.0
    %3158 = vmatpush1.msra.mxu0 0.0
    %3159 = vmatprep.subr.mxu0 0.0
    %3160 = vmatpush1.msra.mxu0 0.0
    %3161 = vmatprep.mubr.f32.mxu0 0.0
    %3162 = vmatmul.mubr.f32.gmra.mrb[0].mxu0 %v2820
    %v3163 = vpop.f32.mrb[0].mxu0
    %v3164 = vadd.f32 %v3085, %v3163
    %v3165 = vpop.f32.mrb[0].mxu0
    %v3166 = vadd.f32 %v3089, %v3165
    %3167 = vdwg.mxu0
    %3168 = vmatprep.subr.mxu0 0.0
    %3169 = vmatpush1.msra.mxu0 %v3034
    %3170 = vmatprep.subr.mxu0 0.0
    %3171 = vmatpush1.msra.mxu0 %v3037
    %3172 = vmatprep.subr.mxu0 0.0
    %3173 = vmatpush1.msra.mxu0 %v3040
    %3174 = vmatprep.subr.mxu0 0.0
    %3175 = vmatpush1.msra.mxu0 %v3043
    %3176 = vmatprep.subr.mxu0 0.0
    %3177 = vmatpush1.msra.mxu0 %v3046
    %3178 = vmatprep.subr.mxu0 0.0
    %3179 = vmatpush1.msra.mxu0 %v3049
    %3180 = vmatprep.subr.mxu0 0.0
    %3181 = vmatpush1.msra.mxu0 %v3052
    %3182 = vmatprep.subr.mxu0 0.0
    %3183 = vmatpush1.msra.mxu0 %v3055
    %3184 = vmatprep.subr.mxu0 0.0
    %3185 = vmatpush1.msra.mxu0 %v3058
    %3186 = vmatprep.subr.mxu0 0.0
    %3187 = vmatpush1.msra.mxu0 %v3061
    %3188 = vmatprep.subr.mxu0 0.0
    %3189 = vmatpush1.msra.mxu0 %v3064
    %3190 = vmatprep.subr.mxu0 0.0
    %3191 = vmatpush1.msra.mxu0 %v3067
    %3192 = vmatprep.subr.mxu0 0.0
    %3193 = vmatpush1.msra.mxu0 %v3070
    %3194 = vmatprep.subr.mxu0 0.0
    %3195 = vmatpush1.msra.mxu0 %v3073
    %3196 = vmatprep.subr.mxu0 0.0
    %3197 = vmatpush1.msra.mxu0 %v3076
    %3198 = vmatprep.subr.mxu0 0.0
    %3199 = vmatpush1.msra.mxu0 %v3079
    %3200 = vmatprep.subr.mxu0 0.0
    %3201 = vmatpush1.msra.mxu0 0.0
    %3202 = vmatprep.subr.mxu0 0.0
    %3203 = vmatpush1.msra.mxu0 0.0
    %3204 = vmatprep.subr.mxu0 0.0
    %3205 = vmatpush1.msra.mxu0 0.0
    %3206 = vmatprep.subr.mxu0 0.0
    %3207 = vmatpush1.msra.mxu0 0.0
    %3208 = vmatprep.subr.mxu0 0.0
    %3209 = vmatpush1.msra.mxu0 0.0
    %3210 = vmatprep.subr.mxu0 0.0
    %3211 = vmatpush1.msra.mxu0 0.0
    %3212 = vmatprep.subr.mxu0 0.0
    %3213 = vmatpush1.msra.mxu0 0.0
    %3214 = vmatprep.subr.mxu0 0.0
    %3215 = vmatpush1.msra.mxu0 0.0
    %3216 = vmatprep.subr.mxu0 0.0
    %3217 = vmatpush1.msra.mxu0 0.0
    %3218 = vmatprep.subr.mxu0 0.0
    %3219 = vmatpush1.msra.mxu0 0.0
    %3220 = vmatprep.subr.mxu0 0.0
    %3221 = vmatpush1.msra.mxu0 0.0
    %3222 = vmatprep.subr.mxu0 0.0
    %3223 = vmatpush1.msra.mxu0 0.0
    %3224 = vmatprep.subr.mxu0 0.0
    %3225 = vmatpush1.msra.mxu0 0.0
    %3226 = vmatprep.subr.mxu0 0.0
    %3227 = vmatpush1.msra.mxu0 0.0
    %3228 = vmatprep.subr.mxu0 0.0
    %3229 = vmatpush1.msra.mxu0 0.0
    %3230 = vmatprep.subr.mxu0 0.0
    %3231 = vmatpush1.msra.mxu0 0.0
    %3232 = vmatprep.mubr.f32.mxu0 0.0
    %3233 = vmatmul.mubr.f32.gmra.mrb[0].mxu0 %v2820
    %v3234 = vpop.f32.mrb[0].mxu0
    %v3235 = vadd.f32 %v3093, %v3234
    %v3236 = vpop.f32.mrb[0].mxu0
    %3237 = vdwg.mxu0
    %v3238 = vadd.f32 %v2958, %v3164
    %v3239 = vxor.u32 %v3238, 2147483648
    %v3240 = vmul.f32 %v3239, 1.442695
    %v3241 = vpow.pop %v3240
    %v3242 = vadd.f32 %v3241, 1.0
    %v3243 = vrcp.pop %v3242
    %v3244 = vmul.f32 1.0, %v3243
    %v3245 = vadd.f32 %v2960, %v3166
    %v3246 = vxor.u32 %v3245, 2147483648
    %v3247 = vmul.f32 %v3246, 1.442695
    %v3248 = vpow.pop %v3247
    %v3249 = vadd.f32 %v3248, 1.0
    %v3250 = vrcp.pop %v3249
    %v3251 = vmul.f32 1.0, %v3250
    %v3252 = vmul.f32 %v3244, %v3235
    %v3253 = vadd.f32 %v3029, %v3252
    %v3254 = vtanh.pop %v3253
    %v3255 = vsub.f32 1.0, %v3251
    %v3256 = vmul.f32 %v3255, %v3254
    %v3257 = vmul.f32 %v3251, %v2820
    %v3258 = vadd.f32 %v3256, %v3257
    %v3259 = vld [vmem:[#allocation10] sm:$0xff]
    %v3260 = vld [vmem:[#allocation10 + $0x8] sm:$0xff]
    %v3261 = vld [vmem:[#allocation10 + $0x10] sm:$0xff]
    %v3262 = vld [vmem:[#allocation10 + $0x18] sm:$0xff]
    %v3263 = vld [vmem:[#allocation10 + $0x20] sm:$0xff]
    %v3264 = vld [vmem:[#allocation10 + $0x28] sm:$0xff]
    %v3265 = vld [vmem:[#allocation10 + $0x30] sm:$0xff]
    %v3266 = vld [vmem:[#allocation10 + $0x38] sm:$0xff]
    %v3267 = vld [vmem:[#allocation10 + $0x40] sm:$0xff]
    %v3268 = vld [vmem:[#allocation10 + $0x48] sm:$0xff]
    %v3269 = vld [vmem:[#allocation10 + $0x50] sm:$0xff]
    %v3270 = vld [vmem:[#allocation10 + $0x58] sm:$0xff]
    %v3271 = vld [vmem:[#allocation10 + $0x60] sm:$0xff]
    %v3272 = vld [vmem:[#allocation10 + $0x68] sm:$0xff]
    %v3273 = vld [vmem:[#allocation10 + $0x70] sm:$0xff]
    %v3274 = vld [vmem:[#allocation10 + $0x78] sm:$0xff]
    %v3275 = vld [vmem:[%s8] sm:$0x1]
    %3276 = vmatprep.subr.mxu0 0.0
    %3277 = vmatpush1.msra.mxu0 %v3259
    %3278 = vmatprep.subr.mxu0 0.0
    %3279 = vmatpush1.msra.mxu0 %v3260
    %3280 = vmatprep.subr.mxu0 0.0
    %3281 = vmatpush1.msra.mxu0 %v3261
    %3282 = vmatprep.subr.mxu0 0.0
    %3283 = vmatpush1.msra.mxu0 %v3262
    %3284 = vmatprep.subr.mxu0 0.0
    %3285 = vmatpush1.msra.mxu0 %v3263
    %3286 = vmatprep.subr.mxu0 0.0
    %3287 = vmatpush1.msra.mxu0 %v3264
    %3288 = vmatprep.subr.mxu0 0.0
    %3289 = vmatpush1.msra.mxu0 %v3265
    %3290 = vmatprep.subr.mxu0 0.0
    %3291 = vmatpush1.msra.mxu0 %v3266
    %3292 = vmatprep.subr.mxu0 0.0
    %3293 = vmatpush1.msra.mxu0 %v3267
    %3294 = vmatprep.subr.mxu0 0.0
    %3295 = vmatpush1.msra.mxu0 %v3268
    %3296 = vmatprep.subr.mxu0 0.0
    %3297 = vmatpush1.msra.mxu0 %v3269
    %3298 = vmatprep.subr.mxu0 0.0
    %3299 = vmatpush1.msra.mxu0 %v3270
    %3300 = vmatprep.subr.mxu0 0.0
    %3301 = vmatpush1.msra.mxu0 %v3271
    %3302 = vmatprep.subr.mxu0 0.0
    %3303 = vmatpush1.msra.mxu0 %v3272
    %3304 = vmatprep.subr.mxu0 0.0
    %3305 = vmatpush1.msra.mxu0 %v3273
    %3306 = vmatprep.subr.mxu0 0.0
    %3307 = vmatpush1.msra.mxu0 %v3274
    %3308 = vmatprep.subr.mxu0 0.0
    %3309 = vmatpush1.msra.mxu0 0.0
    %3310 = vmatprep.subr.mxu0 0.0
    %3311 = vmatpush1.msra.mxu0 0.0
    %3312 = vmatprep.subr.mxu0 0.0
    %3313 = vmatpush1.msra.mxu0 0.0
    %3314 = vmatprep.subr.mxu0 0.0
    %3315 = vmatpush1.msra.mxu0 0.0
    %3316 = vmatprep.subr.mxu0 0.0
    %3317 = vmatpush1.msra.mxu0 0.0
    %3318 = vmatprep.subr.mxu0 0.0
    %3319 = vmatpush1.msra.mxu0 0.0
    %3320 = vmatprep.subr.mxu0 0.0
    %3321 = vmatpush1.msra.mxu0 0.0
    %3322 = vmatprep.subr.mxu0 0.0
    %3323 = vmatpush1.msra.mxu0 0.0
    %3324 = vmatprep.subr.mxu0 0.0
    %3325 = vmatpush1.msra.mxu0 0.0
    %3326 = vmatprep.subr.mxu0 0.0
    %3327 = vmatpush1.msra.mxu0 0.0
    %3328 = vmatprep.subr.mxu0 0.0
    %3329 = vmatpush1.msra.mxu0 0.0
    %3330 = vmatprep.subr.mxu0 0.0
    %3331 = vmatpush1.msra.mxu0 0.0
    %3332 = vmatprep.subr.mxu0 0.0
    %3333 = vmatpush1.msra.mxu0 0.0
    %3334 = vmatprep.subr.mxu0 0.0
    %3335 = vmatpush1.msra.mxu0 0.0
    %3336 = vmatprep.subr.mxu0 0.0
    %3337 = vmatpush1.msra.mxu0 0.0
    %3338 = vmatprep.subr.mxu0 0.0
    %3339 = vmatpush1.msra.mxu0 0.0
    %3340 = vmatprep.mubr.f32.mxu0 0.0
    %3341 = vmatmul.mubr.f32.gmra.mrb[0].mxu0 %v3258
    %v3342 = vpop.f32.mrb[0].mxu0
    %v3343 = vadd.f32 %v3275, %v3342
    %v3344 = vpop.f32.mrb[0].mxu0
    %3345 = vdwg.mxu0
    %v3346 = vsel %vm625, %v3343, -inf
    %3347 = vmax.xlane.f32.xlu0 %v3346
    %v3348 = vpop.xlane.xlu0 %3347
    %v3349 = vsub.f32 %v3343, %v3348
    %v3350 = vmul.f32 %v3349, 1.442695
    %v3351 = vpow.pop %v3350
    %v3352 = vsel %vm625, %v3351, 0.0
    %3353 = vadd.xlane.f32.xlu0 %v3352
    %v3354 = vpop.xlane.xlu0 %3353
    %v3355 = vlog2.pop %v3354
    %v3356 = vmul.f32 %v3355, 0.6931472
    %v3357 = vadd.f32 %v3348, %v3356
    %v3358 = vsub.f32 %v3343, %v3357
    %3359 = vst [vmem:[#allocation12 + $0x5] sm:$0x1] %v3358
    %p3360 = scmp.lt.s32.totalorder %s2821, 1
    %s3361 = scalar_select %p3360, 1, 0
    %v3362 = vstv %s3361
    %vm3363 = vcmp.eq.s32.totalorder %v3362, 1
    %v3364 = vsel %vm3363, %v3258, %v2820
    %s3365 = sadd.s32 %s99, 6
    %s3366 = sld [smem:[#allocation3 + %s3365]]
    %s3367 = scalar_lea.vmem [#allocation4], %s3366
    %v3368 = vld [vmem:[%s3367] sm:$0x1]
    %v3369 = vmax.f32 %v3368, 0.0
    %v3370 = vld [vmem:[#allocation7] sm:$0xff]
    %v3371 = vld [vmem:[#allocation7 + $0x8] sm:$0xff]
    %v3372 = vld [vmem:[#allocation7 + $0x10] sm:$0xff]
    %v3373 = vld [vmem:[#allocation7 + $0x18] sm:$0xff]
    %v3374 = vld [vmem:[#allocation7 + $0x20] sm:$0xff]
    %v3375 = vld [vmem:[#allocation7 + $0x28] sm:$0xff]
    %v3376 = vld [vmem:[#allocation7 + $0x30] sm:$0xff]
    %v3377 = vld [vmem:[#allocation7 + $0x38] sm:$0xff]
    %v3378 = vld [vmem:[#allocation7 + $0x40] sm:$0xff]
    %v3379 = vld [vmem:[#allocation7 + $0x48] sm:$0xff]
    %v3380 = vld [vmem:[#allocation7 + $0x50] sm:$0xff]
    %v3381 = vld [vmem:[#allocation7 + $0x58] sm:$0xff]
    %v3382 = vld [vmem:[#allocation7 + $0x60] sm:$0xff]
    %v3383 = vld [vmem:[#allocation7 + $0x68] sm:$0xff]
    %v3384 = vld [vmem:[#allocation7 + $0x70] sm:$0xff]
    %v3385 = vld [vmem:[#allocation7 + $0x78] sm:$0xff]
    %v3386 = vld [vmem:[#allocation7 + $0x80] sm:$0xff]
    %v3387 = vld [vmem:[#allocation7 + $0x88] sm:$0xff]
    %v3388 = vld [vmem:[#allocation7 + $0x90] sm:$0xff]
    %v3389 = vld [vmem:[#allocation7 + $0x98] sm:$0xff]
    %v3390 = vld [vmem:[#allocation7 + $0xa0] sm:$0xff]
    %v3391 = vld [vmem:[#allocation7 + $0xa8] sm:$0xff]
    %v3392 = vld [vmem:[#allocation7 + $0xb0] sm:$0xff]
    %v3393 = vld [vmem:[#allocation7 + $0xb8] sm:$0xff]
    %v3394 = vld [vmem:[#allocation7 + $0xc0] sm:$0xff]
    %v3395 = vld [vmem:[#allocation7 + $0xc8] sm:$0xff]
    %v3396 = vld [vmem:[#allocation7 + $0xd0] sm:$0xff]
    %v3397 = vld [vmem:[#allocation7 + $0xd8] sm:$0xff]
    %v3398 = vld [vmem:[#allocation7 + $0xe0] sm:$0xff]
    %v3399 = vld [vmem:[#allocation7 + $0xe8] sm:$0xff]
    %v3400 = vld [vmem:[#allocation7 + $0xf0] sm:$0xff]
    %v3401 = vld [vmem:[#allocation7 + $0xf8] sm:$0xff]
    %v3402 = vld [vmem:[#allocation7 + $0x100] sm:$0xff]
    %v3403 = vld [vmem:[#allocation7 + $0x108] sm:$0xff]
    %v3404 = vld [vmem:[#allocation7 + $0x110] sm:$0xff]
    %v3405 = vld [vmem:[#allocation7 + $0x118] sm:$0xff]
    %v3406 = vld [vmem:[#allocation7 + $0x120] sm:$0xff]
    %v3407 = vld [vmem:[#allocation7 + $0x128] sm:$0xff]
    %v3408 = vld [vmem:[#allocation7 + $0x130] sm:$0xff]
    %v3409 = vld [vmem:[#allocation7 + $0x138] sm:$0xff]
    %v3410 = vld [vmem:[#allocation7 + $0x140] sm:$0xff]
    %v3411 = vld [vmem:[#allocation7 + $0x148] sm:$0xff]
    %v3412 = vld [vmem:[#allocation7 + $0x150] sm:$0xff]
    %v3413 = vld [vmem:[#allocation7 + $0x158] sm:$0xff]
    %v3414 = vld [vmem:[#allocation7 + $0x160] sm:$0xff]
    %v3415 = vld [vmem:[#allocation7 + $0x168] sm:$0xff]
    %v3416 = vld [vmem:[#allocation7 + $0x170] sm:$0xff]
    %v3417 = vld [vmem:[#allocation7 + $0x178] sm:$0xff]
    %v3418 = vld [vmem:[%s5] sm:$0x7]
    %v3420 = vlaneseq
    %v3421 = vshrl.u32 %v3420, 7
    %v3422 = vsub.s32 0, %v3421
    %v3423 = vrot.slane %v3418, %v3422
    %v3424 = vlaneseq
    %v3425 = vshrl.u32 %v3424, 7
    %v3426 = vsub.s32 1, %v3425
    %v3427 = vrot.slane %v3418, %v3426
    %v3428 = vlaneseq
    %v3429 = vshrl.u32 %v3428, 7
    %v3430 = vsub.s32 2, %v3429
    %v3431 = vrot.slane %v3418, %v3430
    %3435 = vmatprep.subr.mxu0 %v3371
    %3436 = vmatpush1.msra.mxu0 %v3370
    %3437 = vmatprep.subr.mxu0 %v3374
    %3438 = vmatpush1.msra.mxu0 %v3373
    %3439 = vmatprep.subr.mxu0 %v3377
    %3440 = vmatpush1.msra.mxu0 %v3376
    %3441 = vmatprep.subr.mxu0 %v3380
    %3442 = vmatpush1.msra.mxu0 %v3379
    %3443 = vmatprep.subr.mxu0 %v3383
    %3444 = vmatpush1.msra.mxu0 %v3382
    %3445 = vmatprep.subr.mxu0 %v3386
    %3446 = vmatpush1.msra.mxu0 %v3385
    %3447 = vmatprep.subr.mxu0 %v3389
    %3448 = vmatpush1.msra.mxu0 %v3388
    %3449 = vmatprep.subr.mxu0 %v3392
    %3450 = vmatpush1.msra.mxu0 %v3391
    %3451 = vmatprep.subr.mxu0 %v3395
    %3452 = vmatpush1.msra.mxu0 %v3394
    %3453 = vmatprep.subr.mxu0 %v3398
    %3454 = vmatpush1.msra.mxu0 %v3397
    %3455 = vmatprep.subr.mxu0 %v3401
    %3456 = vmatpush1.msra.mxu0 %v3400
    %3457 = vmatprep.subr.mxu0 %v3404
    %3458 = vmatpush1.msra.mxu0 %v3403
    %3459 = vmatprep.subr.mxu0 %v3407
    %3460 = vmatpush1.msra.mxu0 %v3406
    %3461 = vmatprep.subr.mxu0 %v3410
    %3462 = vmatpush1.msra.mxu0 %v3409
    %3463 = vmatprep.subr.mxu0 %v3413
    %3464 = vmatpush1.msra.mxu0 %v3412
    %3465 = vmatprep.subr.mxu0 %v3416
    %3466 = vmatpush1.msra.mxu0 %v3415
    %3467 = vmatprep.subr.mxu0 0.0
    %3468 = vmatpush1.msra.mxu0 0.0
    %3469 = vmatprep.subr.mxu0 0.0
    %3470 = vmatpush1.msra.mxu0 0.0
    %3471 = vmatprep.subr.mxu0 0.0
    %3472 = vmatpush1.msra.mxu0 0.0
    %3473 = vmatprep.subr.mxu0 0.0
    %3474 = vmatpush1.msra.mxu0 0.0
    %3475 = vmatprep.subr.mxu0 0.0
    %3476 = vmatpush1.msra.mxu0 0.0
    %3477 = vmatprep.subr.mxu0 0.0
    %3478 = vmatpush1.msra.mxu0 0.0
    %3479 = vmatprep.subr.mxu0 0.0
    %3480 = vmatpush1.msra.mxu0 0.0
    %3481 = vmatprep.subr.mxu0 0.0
    %3482 = vmatpush1.msra.mxu0 0.0
    %3483 = vmatprep.subr.mxu0 0.0
    %3484 = vmatpush1.msra.mxu0 0.0
    %3485 = vmatprep.subr.mxu0 0.0
    %3486 = vmatpush1.msra.mxu0 0.0
    %3487 = vmatprep.subr.mxu0 0.0
    %3488 = vmatpush1.msra.mxu0 0.0
    %3489 = vmatprep.subr.mxu0 0.0
    %3490 = vmatpush1.msra.mxu0 0.0
    %3491 = vmatprep.subr.mxu0 0.0
    %3492 = vmatpush1.msra.mxu0 0.0
    %3493 = vmatprep.subr.mxu0 0.0
    %3494 = vmatpush1.msra.mxu0 0.0
    %3495 = vmatprep.subr.mxu0 0.0
    %3496 = vmatpush1.msra.mxu0 0.0
    %3497 = vmatprep.subr.mxu0 0.0
    %3498 = vmatpush1.msra.mxu0 0.0
    %3499 = vmatprep.mubr.f32.mxu0 0.0
    %3500 = vmatmul.mubr.f32.gmra.mrb[0].mxu0 %v3369
    %v3501 = vpop.f32.mrb[0].mxu0
    %v3502 = vadd.f32 %v3423, %v3501
    %v3503 = vpop.f32.mrb[0].mxu0
    %v3504 = vadd.f32 %v3427, %v3503
    %3505 = vdwg.mxu0
    %3506 = vmatprep.subr.mxu0 0.0
    %3507 = vmatpush1.msra.mxu0 %v3372
    %3508 = vmatprep.subr.mxu0 0.0
    %3509 = vmatpush1.msra.mxu0 %v3375
    %3510 = vmatprep.subr.mxu0 0.0
    %3511 = vmatpush1.msra.mxu0 %v3378
    %3512 = vmatprep.subr.mxu0 0.0
    %3513 = vmatpush1.msra.mxu0 %v3381
    %3514 = vmatprep.subr.mxu0 0.0
    %3515 = vmatpush1.msra.mxu0 %v3384
    %3516 = vmatprep.subr.mxu0 0.0
    %3517 = vmatpush1.msra.mxu0 %v3387
    %3518 = vmatprep.subr.mxu0 0.0
    %3519 = vmatpush1.msra.mxu0 %v3390
    %3520 = vmatprep.subr.mxu0 0.0
    %3521 = vmatpush1.msra.mxu0 %v3393
    %3522 = vmatprep.subr.mxu0 0.0
    %3523 = vmatpush1.msra.mxu0 %v3396
    %3524 = vmatprep.subr.mxu0 0.0
    %3525 = vmatpush1.msra.mxu0 %v3399
    %3526 = vmatprep.subr.mxu0 0.0
    %3527 = vmatpush1.msra.mxu0 %v3402
    %3528 = vmatprep.subr.mxu0 0.0
    %3529 = vmatpush1.msra.mxu0 %v3405
    %3530 = vmatprep.subr.mxu0 0.0
    %3531 = vmatpush1.msra.mxu0 %v3408
    %3532 = vmatprep.subr.mxu0 0.0
    %3533 = vmatpush1.msra.mxu0 %v3411
    %3534 = vmatprep.subr.mxu0 0.0
    %3535 = vmatpush1.msra.mxu0 %v3414
    %3536 = vmatprep.subr.mxu0 0.0
    %3537 = vmatpush1.msra.mxu0 %v3417
    %3538 = vmatprep.subr.mxu0 0.0
    %3539 = vmatpush1.msra.mxu0 0.0
    %3540 = vmatprep.subr.mxu0 0.0
    %3541 = vmatpush1.msra.mxu0 0.0
    %3542 = vmatprep.subr.mxu0 0.0
    %3543 = vmatpush1.msra.mxu0 0.0
    %3544 = vmatprep.subr.mxu0 0.0
    %3545 = vmatpush1.msra.mxu0 0.0
    %3546 = vmatprep.subr.mxu0 0.0
    %3547 = vmatpush1.msra.mxu0 0.0
    %3548 = vmatprep.subr.mxu0 0.0
    %3549 = vmatpush1.msra.mxu0 0.0
    %3550 = vmatprep.subr.mxu0 0.0
    %3551 = vmatpush1.msra.mxu0 0.0
    %3552 = vmatprep.subr.mxu0 0.0
    %3553 = vmatpush1.msra.mxu0 0.0
    %3554 = vmatprep.subr.mxu0 0.0
    %3555 = vmatpush1.msra.mxu0 0.0
    %3556 = vmatprep.subr.mxu0 0.0
    %3557 = vmatpush1.msra.mxu0 0.0
    %3558 = vmatprep.subr.mxu0 0.0
    %3559 = vmatpush1.msra.mxu0 0.0
    %3560 = vmatprep.subr.mxu0 0.0
    %3561 = vmatpush1.msra.mxu0 0.0
    %3562 = vmatprep.subr.mxu0 0.0
    %3563 = vmatpush1.msra.mxu0 0.0
    %3564 = vmatprep.subr.mxu0 0.0
    %3565 = vmatpush1.msra.mxu0 0.0
    %3566 = vmatprep.subr.mxu0 0.0
    %3567 = vmatpush1.msra.mxu0 0.0
    %3568 = vmatprep.subr.mxu0 0.0
    %3569 = vmatpush1.msra.mxu0 0.0
    %3570 = vmatprep.mubr.f32.mxu0 0.0
    %3571 = vmatmul.mubr.f32.gmra.mrb[0].mxu0 %v3369
    %v3572 = vpop.f32.mrb[0].mxu0
    %v3573 = vadd.f32 %v3431, %v3572
    %v3574 = vpop.f32.mrb[0].mxu0
    %3575 = vdwg.mxu0
    %v3576 = vld [vmem:[#allocation9] sm:$0xff]
    %v3577 = vld [vmem:[#allocation9 + $0x8] sm:$0xff]
    %v3578 = vld [vmem:[#allocation9 + $0x10] sm:$0xff]
    %v3579 = vld [vmem:[#allocation9 + $0x18] sm:$0xff]
    %v3580 = vld [vmem:[#allocation9 + $0x20] sm:$0xff]
    %v3581 = vld [vmem:[#allocation9 + $0x28] sm:$0xff]
    %v3582 = vld [vmem:[#allocation9 + $0x30] sm:$0xff]
    %v3583 = vld [vmem:[#allocation9 + $0x38] sm:$0xff]
    %v3584 = vld [vmem:[#allocation9 + $0x40] sm:$0xff]
    %v3585 = vld [vmem:[#allocation9 + $0x48] sm:$0xff]
    %v3586 = vld [vmem:[#allocation9 + $0x50] sm:$0xff]
    %v3587 = vld [vmem:[#allocation9 + $0x58] sm:$0xff]
    %v3588 = vld [vmem:[#allocation9 + $0x60] sm:$0xff]
    %v3589 = vld [vmem:[#allocation9 + $0x68] sm:$0xff]
    %v3590 = vld [vmem:[#allocation9 + $0x70] sm:$0xff]
    %v3591 = vld [vmem:[#allocation9 + $0x78] sm:$0xff]
    %v3592 = vld [vmem:[#allocation9 + $0x80] sm:$0xff]
    %v3593 = vld [vmem:[#allocation9 + $0x88] sm:$0xff]
    %v3594 = vld [vmem:[#allocation9 + $0x90] sm:$0xff]
    %v3595 = vld [vmem:[#allocation9 + $0x98] sm:$0xff]
    %v3596 = vld [vmem:[#allocation9 + $0xa0] sm:$0xff]
    %v3597 = vld [vmem:[#allocation9 + $0xa8] sm:$0xff]
    %v3598 = vld [vmem:[#allocation9 + $0xb0] sm:$0xff]
    %v3599 = vld [vmem:[#allocation9 + $0xb8] sm:$0xff]
    %v3600 = vld [vmem:[#allocation9 + $0xc0] sm:$0xff]
    %v3601 = vld [vmem:[#allocation9 + $0xc8] sm:$0xff]
    %v3602 = vld [vmem:[#allocation9 + $0xd0] sm:$0xff]
    %v3603 = vld [vmem:[#allocation9 + $0xd8] sm:$0xff]
    %v3604 = vld [vmem:[#allocation9 + $0xe0] sm:$0xff]
    %v3605 = vld [vmem:[#allocation9 + $0xe8] sm:$0xff]
    %v3606 = vld [vmem:[#allocation9 + $0xf0] sm:$0xff]
    %v3607 = vld [vmem:[#allocation9 + $0xf8] sm:$0xff]
    %v3608 = vld [vmem:[#allocation9 + $0x100] sm:$0xff]
    %v3609 = vld [vmem:[#allocation9 + $0x108] sm:$0xff]
    %v3610 = vld [vmem:[#allocation9 + $0x110] sm:$0xff]
    %v3611 = vld [vmem:[#allocation9 + $0x118] sm:$0xff]
    %v3612 = vld [vmem:[#allocation9 + $0x120] sm:$0xff]
    %v3613 = vld [vmem:[#allocation9 + $0x128] sm:$0xff]
    %v3614 = vld [vmem:[#allocation9 + $0x130] sm:$0xff]
    %v3615 = vld [vmem:[#allocation9 + $0x138] sm:$0xff]
    %v3616 = vld [vmem:[#allocation9 + $0x140] sm:$0xff]
    %v3617 = vld [vmem:[#allocation9 + $0x148] sm:$0xff]
    %v3618 = vld [vmem:[#allocation9 + $0x150] sm:$0xff]
    %v3619 = vld [vmem:[#allocation9 + $0x158] sm:$0xff]
    %v3620 = vld [vmem:[#allocation9 + $0x160] sm:$0xff]
    %v3621 = vld [vmem:[#allocation9 + $0x168] sm:$0xff]
    %v3622 = vld [vmem:[#allocation9 + $0x170] sm:$0xff]
    %v3623 = vld [vmem:[#allocation9 + $0x178] sm:$0xff]
    %v3624 = vld [vmem:[%s6] sm:$0x7]
    %v3626 = vlaneseq
    %v3627 = vshrl.u32 %v3626, 7
    %v3628 = vsub.s32 0, %v3627
    %v3629 = vrot.slane %v3624, %v3628
    %v3630 = vlaneseq
    %v3631 = vshrl.u32 %v3630, 7
    %v3632 = vsub.s32 1, %v3631
    %v3633 = vrot.slane %v3624, %v3632
    %v3634 = vlaneseq
    %v3635 = vshrl.u32 %v3634, 7
    %v3636 = vsub.s32 2, %v3635
    %v3637 = vrot.slane %v3624, %v3636
    %3641 = vmatprep.subr.mxu0 %v3577
    %3642 = vmatpush1.msra.mxu0 %v3576
    %3643 = vmatprep.subr.mxu0 %v3580
    %3644 = vmatpush1.msra.mxu0 %v3579
    %3645 = vmatprep.subr.mxu0 %v3583
    %3646 = vmatpush1.msra.mxu0 %v3582
    %3647 = vmatprep.subr.mxu0 %v3586
    %3648 = vmatpush1.msra.mxu0 %v3585
    %3649 = vmatprep.subr.mxu0 %v3589
    %3650 = vmatpush1.msra.mxu0 %v3588
    %3651 = vmatprep.subr.mxu0 %v3592
    %3652 = vmatpush1.msra.mxu0 %v3591
    %3653 = vmatprep.subr.mxu0 %v3595
    %3654 = vmatpush1.msra.mxu0 %v3594
    %3655 = vmatprep.subr.mxu0 %v3598
    %3656 = vmatpush1.msra.mxu0 %v3597
    %3657 = vmatprep.subr.mxu0 %v3601
    %3658 = vmatpush1.msra.mxu0 %v3600
    %3659 = vmatprep.subr.mxu0 %v3604
    %3660 = vmatpush1.msra.mxu0 %v3603
    %3661 = vmatprep.subr.mxu0 %v3607
    %3662 = vmatpush1.msra.mxu0 %v3606
    %3663 = vmatprep.subr.mxu0 %v3610
    %3664 = vmatpush1.msra.mxu0 %v3609
    %3665 = vmatprep.subr.mxu0 %v3613
    %3666 = vmatpush1.msra.mxu0 %v3612
    %3667 = vmatprep.subr.mxu0 %v3616
    %3668 = vmatpush1.msra.mxu0 %v3615
    %3669 = vmatprep.subr.mxu0 %v3619
    %3670 = vmatpush1.msra.mxu0 %v3618
    %3671 = vmatprep.subr.mxu0 %v3622
    %3672 = vmatpush1.msra.mxu0 %v3621
    %3673 = vmatprep.subr.mxu0 0.0
    %3674 = vmatpush1.msra.mxu0 0.0
    %3675 = vmatprep.subr.mxu0 0.0
    %3676 = vmatpush1.msra.mxu0 0.0
    %3677 = vmatprep.subr.mxu0 0.0
    %3678 = vmatpush1.msra.mxu0 0.0
    %3679 = vmatprep.subr.mxu0 0.0
    %3680 = vmatpush1.msra.mxu0 0.0
    %3681 = vmatprep.subr.mxu0 0.0
    %3682 = vmatpush1.msra.mxu0 0.0
    %3683 = vmatprep.subr.mxu0 0.0
    %3684 = vmatpush1.msra.mxu0 0.0
    %3685 = vmatprep.subr.mxu0 0.0
    %3686 = vmatpush1.msra.mxu0 0.0
    %3687 = vmatprep.subr.mxu0 0.0
    %3688 = vmatpush1.msra.mxu0 0.0
    %3689 = vmatprep.subr.mxu0 0.0
    %3690 = vmatpush1.msra.mxu0 0.0
    %3691 = vmatprep.subr.mxu0 0.0
    %3692 = vmatpush1.msra.mxu0 0.0
    %3693 = vmatprep.subr.mxu0 0.0
    %3694 = vmatpush1.msra.mxu0 0.0
    %3695 = vmatprep.subr.mxu0 0.0
    %3696 = vmatpush1.msra.mxu0 0.0
    %3697 = vmatprep.subr.mxu0 0.0
    %3698 = vmatpush1.msra.mxu0 0.0
    %3699 = vmatprep.subr.mxu0 0.0
    %3700 = vmatpush1.msra.mxu0 0.0
    %3701 = vmatprep.subr.mxu0 0.0
    %3702 = vmatpush1.msra.mxu0 0.0
    %3703 = vmatprep.subr.mxu0 0.0
    %3704 = vmatpush1.msra.mxu0 0.0
    %3705 = vmatprep.mubr.f32.mxu0 0.0
    %3706 = vmatmul.mubr.f32.gmra.mrb[0].mxu0 %v3364
    %v3707 = vpop.f32.mrb[0].mxu0
    %v3708 = vadd.f32 %v3629, %v3707
    %v3709 = vpop.f32.mrb[0].mxu0
    %v3710 = vadd.f32 %v3633, %v3709
    %3711 = vdwg.mxu0
    %3712 = vmatprep.subr.mxu0 0.0
    %3713 = vmatpush1.msra.mxu0 %v3578
    %3714 = vmatprep.subr.mxu0 0.0
    %3715 = vmatpush1.msra.mxu0 %v3581
    %3716 = vmatprep.subr.mxu0 0.0
    %3717 = vmatpush1.msra.mxu0 %v3584
    %3718 = vmatprep.subr.mxu0 0.0
    %3719 = vmatpush1.msra.mxu0 %v3587
    %3720 = vmatprep.subr.mxu0 0.0
    %3721 = vmatpush1.msra.mxu0 %v3590
    %3722 = vmatprep.subr.mxu0 0.0
    %3723 = vmatpush1.msra.mxu0 %v3593
    %3724 = vmatprep.subr.mxu0 0.0
    %3725 = vmatpush1.msra.mxu0 %v3596
    %3726 = vmatprep.subr.mxu0 0.0
    %3727 = vmatpush1.msra.mxu0 %v3599
    %3728 = vmatprep.subr.mxu0 0.0
    %3729 = vmatpush1.msra.mxu0 %v3602
    %3730 = vmatprep.subr.mxu0 0.0
    %3731 = vmatpush1.msra.mxu0 %v3605
    %3732 = vmatprep.subr.mxu0 0.0
    %3733 = vmatpush1.msra.mxu0 %v3608
    %3734 = vmatprep.subr.mxu0 0.0
    %3735 = vmatpush1.msra.mxu0 %v3611
    %3736 = vmatprep.subr.mxu0 0.0
    %3737 = vmatpush1.msra.mxu0 %v3614
    %3738 = vmatprep.subr.mxu0 0.0
    %3739 = vmatpush1.msra.mxu0 %v3617
    %3740 = vmatprep.subr.mxu0 0.0
    %3741 = vmatpush1.msra.mxu0 %v3620
    %3742 = vmatprep.subr.mxu0 0.0
    %3743 = vmatpush1.msra.mxu0 %v3623
    %3744 = vmatprep.subr.mxu0 0.0
    %3745 = vmatpush1.msra.mxu0 0.0
    %3746 = vmatprep.subr.mxu0 0.0
    %3747 = vmatpush1.msra.mxu0 0.0
    %3748 = vmatprep.subr.mxu0 0.0
    %3749 = vmatpush1.msra.mxu0 0.0
    %3750 = vmatprep.subr.mxu0 0.0
    %3751 = vmatpush1.msra.mxu0 0.0
    %3752 = vmatprep.subr.mxu0 0.0
    %3753 = vmatpush1.msra.mxu0 0.0
    %3754 = vmatprep.subr.mxu0 0.0
    %3755 = vmatpush1.msra.mxu0 0.0
    %3756 = vmatprep.subr.mxu0 0.0
    %3757 = vmatpush1.msra.mxu0 0.0
    %3758 = vmatprep.subr.mxu0 0.0
    %3759 = vmatpush1.msra.mxu0 0.0
    %3760 = vmatprep.subr.mxu0 0.0
    %3761 = vmatpush1.msra.mxu0 0.0
    %3762 = vmatprep.subr.mxu0 0.0
    %3763 = vmatpush1.msra.mxu0 0.0
    %3764 = vmatprep.subr.mxu0 0.0
    %3765 = vmatpush1.msra.mxu0 0.0
    %3766 = vmatprep.subr.mxu0 0.0
    %3767 = vmatpush1.msra.mxu0 0.0
    %3768 = vmatprep.subr.mxu0 0.0
    %3769 = vmatpush1.msra.mxu0 0.0
    %3770 = vmatprep.subr.mxu0 0.0
    %3771 = vmatpush1.msra.mxu0 0.0
    %3772 = vmatprep.subr.mxu0 0.0
    %3773 = vmatpush1.msra.mxu0 0.0
    %3774 = vmatprep.subr.mxu0 0.0
    %3775 = vmatpush1.msra.mxu0 0.0
    %3776 = vmatprep.mubr.f32.mxu0 0.0
    %3777 = vmatmul.mubr.f32.gmra.mrb[0].mxu0 %v3364
    %v3778 = vpop.f32.mrb[0].mxu0
    %v3779 = vadd.f32 %v3637, %v3778
    %v3780 = vpop.f32.mrb[0].mxu0
    %3781 = vdwg.mxu0
    %v3782 = vadd.f32 %v3502, %v3708
    %v3783 = vxor.u32 %v3782, 2147483648
    %v3784 = vmul.f32 %v3783, 1.442695
    %v3785 = vpow.pop %v3784
    %v3786 = vadd.f32 %v3785, 1.0
    %v3787 = vrcp.pop %v3786
    %v3788 = vmul.f32 1.0, %v3787
    %v3789 = vadd.f32 %v3504, %v3710
    %v3790 = vxor.u32 %v3789, 2147483648
    %v3791 = vmul.f32 %v3790, 1.442695
    %v3792 = vpow.pop %v3791
    %v3793 = vadd.f32 %v3792, 1.0
    %v3794 = vrcp.pop %v3793
    %v3795 = vmul.f32 1.0, %v3794
    %v3796 = vmul.f32 %v3788, %v3779
    %v3797 = vadd.f32 %v3573, %v3796
    %v3798 = vtanh.pop %v3797
    %v3799 = vsub.f32 1.0, %v3795
    %v3800 = vmul.f32 %v3799, %v3798
    %v3801 = vmul.f32 %v3795, %v3364
    %v3802 = vadd.f32 %v3800, %v3801
    %v3803 = vld [vmem:[#allocation10] sm:$0xff]
    %v3804 = vld [vmem:[#allocation10 + $0x8] sm:$0xff]
    %v3805 = vld [vmem:[#allocation10 + $0x10] sm:$0xff]
    %v3806 = vld [vmem:[#allocation10 + $0x18] sm:$0xff]
    %v3807 = vld [vmem:[#allocation10 + $0x20] sm:$0xff]
    %v3808 = vld [vmem:[#allocation10 + $0x28] sm:$0xff]
    %v3809 = vld [vmem:[#allocation10 + $0x30] sm:$0xff]
    %v3810 = vld [vmem:[#allocation10 + $0x38] sm:$0xff]
    %v3811 = vld [vmem:[#allocation10 + $0x40] sm:$0xff]
    %v3812 = vld [vmem:[#allocation10 + $0x48] sm:$0xff]
    %v3813 = vld [vmem:[#allocation10 + $0x50] sm:$0xff]
    %v3814 = vld [vmem:[#allocation10 + $0x58] sm:$0xff]
    %v3815 = vld [vmem:[#allocation10 + $0x60] sm:$0xff]
    %v3816 = vld [vmem:[#allocation10 + $0x68] sm:$0xff]
    %v3817 = vld [vmem:[#allocation10 + $0x70] sm:$0xff]
    %v3818 = vld [vmem:[#allocation10 + $0x78] sm:$0xff]
    %v3819 = vld [vmem:[%s8] sm:$0x1]
    %3820 = vmatprep.subr.mxu0 0.0
    %3821 = vmatpush1.msra.mxu0 %v3803
    %3822 = vmatprep.subr.mxu0 0.0
    %3823 = vmatpush1.msra.mxu0 %v3804
    %3824 = vmatprep.subr.mxu0 0.0
    %3825 = vmatpush1.msra.mxu0 %v3805
    %3826 = vmatprep.subr.mxu0 0.0
    %3827 = vmatpush1.msra.mxu0 %v3806
    %3828 = vmatprep.subr.mxu0 0.0
    %3829 = vmatpush1.msra.mxu0 %v3807
    %3830 = vmatprep.subr.mxu0 0.0
    %3831 = vmatpush1.msra.mxu0 %v3808
    %3832 = vmatprep.subr.mxu0 0.0
    %3833 = vmatpush1.msra.mxu0 %v3809
    %3834 = vmatprep.subr.mxu0 0.0
    %3835 = vmatpush1.msra.mxu0 %v3810
    %3836 = vmatprep.subr.mxu0 0.0
    %3837 = vmatpush1.msra.mxu0 %v3811
    %3838 = vmatprep.subr.mxu0 0.0
    %3839 = vmatpush1.msra.mxu0 %v3812
    %3840 = vmatprep.subr.mxu0 0.0
    %3841 = vmatpush1.msra.mxu0 %v3813
    %3842 = vmatprep.subr.mxu0 0.0
    %3843 = vmatpush1.msra.mxu0 %v3814
    %3844 = vmatprep.subr.mxu0 0.0
    %3845 = vmatpush1.msra.mxu0 %v3815
    %3846 = vmatprep.subr.mxu0 0.0
    %3847 = vmatpush1.msra.mxu0 %v3816
    %3848 = vmatprep.subr.mxu0 0.0
    %3849 = vmatpush1.msra.mxu0 %v3817
    %3850 = vmatprep.subr.mxu0 0.0
    %3851 = vmatpush1.msra.mxu0 %v3818
    %3852 = vmatprep.subr.mxu0 0.0
    %3853 = vmatpush1.msra.mxu0 0.0
    %3854 = vmatprep.subr.mxu0 0.0
    %3855 = vmatpush1.msra.mxu0 0.0
    %3856 = vmatprep.subr.mxu0 0.0
    %3857 = vmatpush1.msra.mxu0 0.0
    %3858 = vmatprep.subr.mxu0 0.0
    %3859 = vmatpush1.msra.mxu0 0.0
    %3860 = vmatprep.subr.mxu0 0.0
    %3861 = vmatpush1.msra.mxu0 0.0
    %3862 = vmatprep.subr.mxu0 0.0
    %3863 = vmatpush1.msra.mxu0 0.0
    %3864 = vmatprep.subr.mxu0 0.0
    %3865 = vmatpush1.msra.mxu0 0.0
    %3866 = vmatprep.subr.mxu0 0.0
    %3867 = vmatpush1.msra.mxu0 0.0
    %3868 = vmatprep.subr.mxu0 0.0
    %3869 = vmatpush1.msra.mxu0 0.0
    %3870 = vmatprep.subr.mxu0 0.0
    %3871 = vmatpush1.msra.mxu0 0.0
    %3872 = vmatprep.subr.mxu0 0.0
    %3873 = vmatpush1.msra.mxu0 0.0
    %3874 = vmatprep.subr.mxu0 0.0
    %3875 = vmatpush1.msra.mxu0 0.0
    %3876 = vmatprep.subr.mxu0 0.0
    %3877 = vmatpush1.msra.mxu0 0.0
    %3878 = vmatprep.subr.mxu0 0.0
    %3879 = vmatpush1.msra.mxu0 0.0
    %3880 = vmatprep.subr.mxu0 0.0
    %3881 = vmatpush1.msra.mxu0 0.0
    %3882 = vmatprep.subr.mxu0 0.0
    %3883 = vmatpush1.msra.mxu0 0.0
    %3884 = vmatprep.mubr.f32.mxu0 0.0
    %3885 = vmatmul.mubr.f32.gmra.mrb[0].mxu0 %v3802
    %v3886 = vpop.f32.mrb[0].mxu0
    %v3887 = vadd.f32 %v3819, %v3886
    %v3888 = vpop.f32.mrb[0].mxu0
    %3889 = vdwg.mxu0
    %v3890 = vsel %vm625, %v3887, -inf
    %3891 = vmax.xlane.f32.xlu0 %v3890
    %v3892 = vpop.xlane.xlu0 %3891
    %v3893 = vsub.f32 %v3887, %v3892
    %v3894 = vmul.f32 %v3893, 1.442695
    %v3895 = vpow.pop %v3894
    %v3896 = vsel %vm625, %v3895, 0.0
    %3897 = vadd.xlane.f32.xlu0 %v3896
    %v3898 = vpop.xlane.xlu0 %3897
    %v3899 = vlog2.pop %v3898
    %v3900 = vmul.f32 %v3899, 0.6931472
    %v3901 = vadd.f32 %v3892, %v3900
    %v3902 = vsub.f32 %v3887, %v3901
    %3903 = vst [vmem:[#allocation12 + $0x6] sm:$0x1] %v3902
    %p3904 = scmp.lt.s32.totalorder %s3365, 1
    %s3905 = scalar_select %p3904, 1, 0
    %v3906 = vstv %s3905
    %vm3907 = vcmp.eq.s32.totalorder %v3906, 1
    %v3908 = vsel %vm3907, %v3802, %v3364
    %s3909 = sadd.s32 %s99, 7
    %s3910 = sld [smem:[#allocation3 + %s3909]]
    %s3911 = scalar_lea.vmem [#allocation4], %s3910
    %v3912 = vld [vmem:[%s3911] sm:$0x1]
    %v3913 = vmax.f32 %v3912, 0.0
    %v3914 = vld [vmem:[#allocation7] sm:$0xff]
    %v3915 = vld [vmem:[#allocation7 + $0x8] sm:$0xff]
    %v3916 = vld [vmem:[#allocation7 + $0x10] sm:$0xff]
    %v3917 = vld [vmem:[#allocation7 + $0x18] sm:$0xff]
    %v3918 = vld [vmem:[#allocation7 + $0x20] sm:$0xff]
    %v3919 = vld [vmem:[#allocation7 + $0x28] sm:$0xff]
    %v3920 = vld [vmem:[#allocation7 + $0x30] sm:$0xff]
    %v3921 = vld [vmem:[#allocation7 + $0x38] sm:$0xff]
    %v3922 = vld [vmem:[#allocation7 + $0x40] sm:$0xff]
    %v3923 = vld [vmem:[#allocation7 + $0x48] sm:$0xff]
    %v3924 = vld [vmem:[#allocation7 + $0x50] sm:$0xff]
    %v3925 = vld [vmem:[#allocation7 + $0x58] sm:$0xff]
    %v3926 = vld [vmem:[#allocation7 + $0x60] sm:$0xff]
    %v3927 = vld [vmem:[#allocation7 + $0x68] sm:$0xff]
    %v3928 = vld [vmem:[#allocation7 + $0x70] sm:$0xff]
    %v3929 = vld [vmem:[#allocation7 + $0x78] sm:$0xff]
    %v3930 = vld [vmem:[#allocation7 + $0x80] sm:$0xff]
    %v3931 = vld [vmem:[#allocation7 + $0x88] sm:$0xff]
    %v3932 = vld [vmem:[#allocation7 + $0x90] sm:$0xff]
    %v3933 = vld [vmem:[#allocation7 + $0x98] sm:$0xff]
    %v3934 = vld [vmem:[#allocation7 + $0xa0] sm:$0xff]
    %v3935 = vld [vmem:[#allocation7 + $0xa8] sm:$0xff]
    %v3936 = vld [vmem:[#allocation7 + $0xb0] sm:$0xff]
    %v3937 = vld [vmem:[#allocation7 + $0xb8] sm:$0xff]
    %v3938 = vld [vmem:[#allocation7 + $0xc0] sm:$0xff]
    %v3939 = vld [vmem:[#allocation7 + $0xc8] sm:$0xff]
    %v3940 = vld [vmem:[#allocation7 + $0xd0] sm:$0xff]
    %v3941 = vld [vmem:[#allocation7 + $0xd8] sm:$0xff]
    %v3942 = vld [vmem:[#allocation7 + $0xe0] sm:$0xff]
    %v3943 = vld [vmem:[#allocation7 + $0xe8] sm:$0xff]
    %v3944 = vld [vmem:[#allocation7 + $0xf0] sm:$0xff]
    %v3945 = vld [vmem:[#allocation7 + $0xf8] sm:$0xff]
    %v3946 = vld [vmem:[#allocation7 + $0x100] sm:$0xff]
    %v3947 = vld [vmem:[#allocation7 + $0x108] sm:$0xff]
    %v3948 = vld [vmem:[#allocation7 + $0x110] sm:$0xff]
    %v3949 = vld [vmem:[#allocation7 + $0x118] sm:$0xff]
    %v3950 = vld [vmem:[#allocation7 + $0x120] sm:$0xff]
    %v3951 = vld [vmem:[#allocation7 + $0x128] sm:$0xff]
    %v3952 = vld [vmem:[#allocation7 + $0x130] sm:$0xff]
    %v3953 = vld [vmem:[#allocation7 + $0x138] sm:$0xff]
    %v3954 = vld [vmem:[#allocation7 + $0x140] sm:$0xff]
    %v3955 = vld [vmem:[#allocation7 + $0x148] sm:$0xff]
    %v3956 = vld [vmem:[#allocation7 + $0x150] sm:$0xff]
    %v3957 = vld [vmem:[#allocation7 + $0x158] sm:$0xff]
    %v3958 = vld [vmem:[#allocation7 + $0x160] sm:$0xff]
    %v3959 = vld [vmem:[#allocation7 + $0x168] sm:$0xff]
    %v3960 = vld [vmem:[#allocation7 + $0x170] sm:$0xff]
    %v3961 = vld [vmem:[#allocation7 + $0x178] sm:$0xff]
    %v3962 = vld [vmem:[%s5] sm:$0x7]
    %v3964 = vlaneseq
    %v3965 = vshrl.u32 %v3964, 7
    %v3966 = vsub.s32 0, %v3965
    %v3967 = vrot.slane %v3962, %v3966
    %v3968 = vlaneseq
    %v3969 = vshrl.u32 %v3968, 7
    %v3970 = vsub.s32 1, %v3969
    %v3971 = vrot.slane %v3962, %v3970
    %v3972 = vlaneseq
    %v3973 = vshrl.u32 %v3972, 7
    %v3974 = vsub.s32 2, %v3973
    %v3975 = vrot.slane %v3962, %v3974
    %3979 = vmatprep.subr.mxu0 %v3915
    %3980 = vmatpush1.msra.mxu0 %v3914
    %3981 = vmatprep.subr.mxu0 %v3918
    %3982 = vmatpush1.msra.mxu0 %v3917
    %3983 = vmatprep.subr.mxu0 %v3921
    %3984 = vmatpush1.msra.mxu0 %v3920
    %3985 = vmatprep.subr.mxu0 %v3924
    %3986 = vmatpush1.msra.mxu0 %v3923
    %3987 = vmatprep.subr.mxu0 %v3927
    %3988 = vmatpush1.msra.mxu0 %v3926
    %3989 = vmatprep.subr.mxu0 %v3930
    %3990 = vmatpush1.msra.mxu0 %v3929
    %3991 = vmatprep.subr.mxu0 %v3933
    %3992 = vmatpush1.msra.mxu0 %v3932
    %3993 = vmatprep.subr.mxu0 %v3936
    %3994 = vmatpush1.msra.mxu0 %v3935
    %3995 = vmatprep.subr.mxu0 %v3939
    %3996 = vmatpush1.msra.mxu0 %v3938
    %3997 = vmatprep.subr.mxu0 %v3942
    %3998 = vmatpush1.msra.mxu0 %v3941
    %3999 = vmatprep.subr.mxu0 %v3945
    %4000 = vmatpush1.msra.mxu0 %v3944
    %4001 = vmatprep.subr.mxu0 %v3948
    %4002 = vmatpush1.msra.mxu0 %v3947
    %4003 = vmatprep.subr.mxu0 %v3951
    %4004 = vmatpush1.msra.mxu0 %v3950
    %4005 = vmatprep.subr.mxu0 %v3954
    %4006 = vmatpush1.msra.mxu0 %v3953
    %4007 = vmatprep.subr.mxu0 %v3957
    %4008 = vmatpush1.msra.mxu0 %v3956
    %4009 = vmatprep.subr.mxu0 %v3960
    %4010 = vmatpush1.msra.mxu0 %v3959
    %4011 = vmatprep.subr.mxu0 0.0
    %4012 = vmatpush1.msra.mxu0 0.0
    %4013 = vmatprep.subr.mxu0 0.0
    %4014 = vmatpush1.msra.mxu0 0.0
    %4015 = vmatprep.subr.mxu0 0.0
    %4016 = vmatpush1.msra.mxu0 0.0
    %4017 = vmatprep.subr.mxu0 0.0
    %4018 = vmatpush1.msra.mxu0 0.0
    %4019 = vmatprep.subr.mxu0 0.0
    %4020 = vmatpush1.msra.mxu0 0.0
    %4021 = vmatprep.subr.mxu0 0.0
    %4022 = vmatpush1.msra.mxu0 0.0
    %4023 = vmatprep.subr.mxu0 0.0
    %4024 = vmatpush1.msra.mxu0 0.0
    %4025 = vmatprep.subr.mxu0 0.0
    %4026 = vmatpush1.msra.mxu0 0.0
    %4027 = vmatprep.subr.mxu0 0.0
    %4028 = vmatpush1.msra.mxu0 0.0
    %4029 = vmatprep.subr.mxu0 0.0
    %4030 = vmatpush1.msra.mxu0 0.0
    %4031 = vmatprep.subr.mxu0 0.0
    %4032 = vmatpush1.msra.mxu0 0.0
    %4033 = vmatprep.subr.mxu0 0.0
    %4034 = vmatpush1.msra.mxu0 0.0
    %4035 = vmatprep.subr.mxu0 0.0
    %4036 = vmatpush1.msra.mxu0 0.0
    %4037 = vmatprep.subr.mxu0 0.0
    %4038 = vmatpush1.msra.mxu0 0.0
    %4039 = vmatprep.subr.mxu0 0.0
    %4040 = vmatpush1.msra.mxu0 0.0
    %4041 = vmatprep.subr.mxu0 0.0
    %4042 = vmatpush1.msra.mxu0 0.0
    %4043 = vmatprep.mubr.f32.mxu0 0.0
    %4044 = vmatmul.mubr.f32.gmra.mrb[0].mxu0 %v3913
    %v4045 = vpop.f32.mrb[0].mxu0
    %v4046 = vadd.f32 %v3967, %v4045
    %v4047 = vpop.f32.mrb[0].mxu0
    %v4048 = vadd.f32 %v3971, %v4047
    %4049 = vdwg.mxu0
    %4050 = vmatprep.subr.mxu0 0.0
    %4051 = vmatpush1.msra.mxu0 %v3916
    %4052 = vmatprep.subr.mxu0 0.0
    %4053 = vmatpush1.msra.mxu0 %v3919
    %4054 = vmatprep.subr.mxu0 0.0
    %4055 = vmatpush1.msra.mxu0 %v3922
    %4056 = vmatprep.subr.mxu0 0.0
    %4057 = vmatpush1.msra.mxu0 %v3925
    %4058 = vmatprep.subr.mxu0 0.0
    %4059 = vmatpush1.msra.mxu0 %v3928
    %4060 = vmatprep.subr.mxu0 0.0
    %4061 = vmatpush1.msra.mxu0 %v3931
    %4062 = vmatprep.subr.mxu0 0.0
    %4063 = vmatpush1.msra.mxu0 %v3934
    %4064 = vmatprep.subr.mxu0 0.0
    %4065 = vmatpush1.msra.mxu0 %v3937
    %4066 = vmatprep.subr.mxu0 0.0
    %4067 = vmatpush1.msra.mxu0 %v3940
    %4068 = vmatprep.subr.mxu0 0.0
    %4069 = vmatpush1.msra.mxu0 %v3943
    %4070 = vmatprep.subr.mxu0 0.0
    %4071 = vmatpush1.msra.mxu0 %v3946
    %4072 = vmatprep.subr.mxu0 0.0
    %4073 = vmatpush1.msra.mxu0 %v3949
    %4074 = vmatprep.subr.mxu0 0.0
    %4075 = vmatpush1.msra.mxu0 %v3952
    %4076 = vmatprep.subr.mxu0 0.0
    %4077 = vmatpush1.msra.mxu0 %v3955
    %4078 = vmatprep.subr.mxu0 0.0
    %4079 = vmatpush1.msra.mxu0 %v3958
    %4080 = vmatprep.subr.mxu0 0.0
    %4081 = vmatpush1.msra.mxu0 %v3961
    %4082 = vmatprep.subr.mxu0 0.0
    %4083 = vmatpush1.msra.mxu0 0.0
    %4084 = vmatprep.subr.mxu0 0.0
    %4085 = vmatpush1.msra.mxu0 0.0
    %4086 = vmatprep.subr.mxu0 0.0
    %4087 = vmatpush1.msra.mxu0 0.0
    %4088 = vmatprep.subr.mxu0 0.0
    %4089 = vmatpush1.msra.mxu0 0.0
    %4090 = vmatprep.subr.mxu0 0.0
    %4091 = vmatpush1.msra.mxu0 0.0
    %4092 = vmatprep.subr.mxu0 0.0
    %4093 = vmatpush1.msra.mxu0 0.0
    %4094 = vmatprep.subr.mxu0 0.0
    %4095 = vmatpush1.msra.mxu0 0.0
    %4096 = vmatprep.subr.mxu0 0.0
    %4097 = vmatpush1.msra.mxu0 0.0
    %4098 = vmatprep.subr.mxu0 0.0
    %4099 = vmatpush1.msra.mxu0 0.0
    %4100 = vmatprep.subr.mxu0 0.0
    %4101 = vmatpush1.msra.mxu0 0.0
    %4102 = vmatprep.subr.mxu0 0.0
    %4103 = vmatpush1.msra.mxu0 0.0
    %4104 = vmatprep.subr.mxu0 0.0
    %4105 = vmatpush1.msra.mxu0 0.0
    %4106 = vmatprep.subr.mxu0 0.0
    %4107 = vmatpush1.msra.mxu0 0.0
    %4108 = vmatprep.subr.mxu0 0.0
    %4109 = vmatpush1.msra.mxu0 0.0
    %4110 = vmatprep.subr.mxu0 0.0
    %4111 = vmatpush1.msra.mxu0 0.0
    %4112 = vmatprep.subr.mxu0 0.0
    %4113 = vmatpush1.msra.mxu0 0.0
    %4114 = vmatprep.mubr.f32.mxu0 0.0
    %4115 = vmatmul.mubr.f32.gmra.mrb[0].mxu0 %v3913
    %v4116 = vpop.f32.mrb[0].mxu0
    %v4117 = vadd.f32 %v3975, %v4116
    %v4118 = vpop.f32.mrb[0].mxu0
    %4119 = vdwg.mxu0
    %v4120 = vld [vmem:[#allocation9] sm:$0xff]
    %v4121 = vld [vmem:[#allocation9 + $0x8] sm:$0xff]
    %v4122 = vld [vmem:[#allocation9 + $0x10] sm:$0xff]
    %v4123 = vld [vmem:[#allocation9 + $0x18] sm:$0xff]
    %v4124 = vld [vmem:[#allocation9 + $0x20] sm:$0xff]
    %v4125 = vld [vmem:[#allocation9 + $0x28] sm:$0xff]
    %v4126 = vld [vmem:[#allocation9 + $0x30] sm:$0xff]
    %v4127 = vld [vmem:[#allocation9 + $0x38] sm:$0xff]
    %v4128 = vld [vmem:[#allocation9 + $0x40] sm:$0xff]
    %v4129 = vld [vmem:[#allocation9 + $0x48] sm:$0xff]
    %v4130 = vld [vmem:[#allocation9 + $0x50] sm:$0xff]
    %v4131 = vld [vmem:[#allocation9 + $0x58] sm:$0xff]
    %v4132 = vld [vmem:[#allocation9 + $0x60] sm:$0xff]
    %v4133 = vld [vmem:[#allocation9 + $0x68] sm:$0xff]
    %v4134 = vld [vmem:[#allocation9 + $0x70] sm:$0xff]
    %v4135 = vld [vmem:[#allocation9 + $0x78] sm:$0xff]
    %v4136 = vld [vmem:[#allocation9 + $0x80] sm:$0xff]
    %v4137 = vld [vmem:[#allocation9 + $0x88] sm:$0xff]
    %v4138 = vld [vmem:[#allocation9 + $0x90] sm:$0xff]
    %v4139 = vld [vmem:[#allocation9 + $0x98] sm:$0xff]
    %v4140 = vld [vmem:[#allocation9 + $0xa0] sm:$0xff]
    %v4141 = vld [vmem:[#allocation9 + $0xa8] sm:$0xff]
    %v4142 = vld [vmem:[#allocation9 + $0xb0] sm:$0xff]
    %v4143 = vld [vmem:[#allocation9 + $0xb8] sm:$0xff]
    %v4144 = vld [vmem:[#allocation9 + $0xc0] sm:$0xff]
    %v4145 = vld [vmem:[#allocation9 + $0xc8] sm:$0xff]
    %v4146 = vld [vmem:[#allocation9 + $0xd0] sm:$0xff]
    %v4147 = vld [vmem:[#allocation9 + $0xd8] sm:$0xff]
    %v4148 = vld [vmem:[#allocation9 + $0xe0] sm:$0xff]
    %v4149 = vld [vmem:[#allocation9 + $0xe8] sm:$0xff]
    %v4150 = vld [vmem:[#allocation9 + $0xf0] sm:$0xff]
    %v4151 = vld [vmem:[#allocation9 + $0xf8] sm:$0xff]
    %v4152 = vld [vmem:[#allocation9 + $0x100] sm:$0xff]
    %v4153 = vld [vmem:[#allocation9 + $0x108] sm:$0xff]
    %v4154 = vld [vmem:[#allocation9 + $0x110] sm:$0xff]
    %v4155 = vld [vmem:[#allocation9 + $0x118] sm:$0xff]
    %v4156 = vld [vmem:[#allocation9 + $0x120] sm:$0xff]
    %v4157 = vld [vmem:[#allocation9 + $0x128] sm:$0xff]
    %v4158 = vld [vmem:[#allocation9 + $0x130] sm:$0xff]
    %v4159 = vld [vmem:[#allocation9 + $0x138] sm:$0xff]
    %v4160 = vld [vmem:[#allocation9 + $0x140] sm:$0xff]
    %v4161 = vld [vmem:[#allocation9 + $0x148] sm:$0xff]
    %v4162 = vld [vmem:[#allocation9 + $0x150] sm:$0xff]
    %v4163 = vld [vmem:[#allocation9 + $0x158] sm:$0xff]
    %v4164 = vld [vmem:[#allocation9 + $0x160] sm:$0xff]
    %v4165 = vld [vmem:[#allocation9 + $0x168] sm:$0xff]
    %v4166 = vld [vmem:[#allocation9 + $0x170] sm:$0xff]
    %v4167 = vld [vmem:[#allocation9 + $0x178] sm:$0xff]
    %v4168 = vld [vmem:[%s6] sm:$0x7]
    %v4170 = vlaneseq
    %v4171 = vshrl.u32 %v4170, 7
    %v4172 = vsub.s32 0, %v4171
    %v4173 = vrot.slane %v4168, %v4172
    %v4174 = vlaneseq
    %v4175 = vshrl.u32 %v4174, 7
    %v4176 = vsub.s32 1, %v4175
    %v4177 = vrot.slane %v4168, %v4176
    %v4178 = vlaneseq
    %v4179 = vshrl.u32 %v4178, 7
    %v4180 = vsub.s32 2, %v4179
    %v4181 = vrot.slane %v4168, %v4180
    %4185 = vmatprep.subr.mxu0 %v4121
    %4186 = vmatpush1.msra.mxu0 %v4120
    %4187 = vmatprep.subr.mxu0 %v4124
    %4188 = vmatpush1.msra.mxu0 %v4123
    %4189 = vmatprep.subr.mxu0 %v4127
    %4190 = vmatpush1.msra.mxu0 %v4126
    %4191 = vmatprep.subr.mxu0 %v4130
    %4192 = vmatpush1.msra.mxu0 %v4129
    %4193 = vmatprep.subr.mxu0 %v4133
    %4194 = vmatpush1.msra.mxu0 %v4132
    %4195 = vmatprep.subr.mxu0 %v4136
    %4196 = vmatpush1.msra.mxu0 %v4135
    %4197 = vmatprep.subr.mxu0 %v4139
    %4198 = vmatpush1.msra.mxu0 %v4138
    %4199 = vmatprep.subr.mxu0 %v4142
    %4200 = vmatpush1.msra.mxu0 %v4141
    %4201 = vmatprep.subr.mxu0 %v4145
    %4202 = vmatpush1.msra.mxu0 %v4144
    %4203 = vmatprep.subr.mxu0 %v4148
    %4204 = vmatpush1.msra.mxu0 %v4147
    %4205 = vmatprep.subr.mxu0 %v4151
    %4206 = vmatpush1.msra.mxu0 %v4150
    %4207 = vmatprep.subr.mxu0 %v4154
    %4208 = vmatpush1.msra.mxu0 %v4153
    %4209 = vmatprep.subr.mxu0 %v4157
    %4210 = vmatpush1.msra.mxu0 %v4156
    %4211 = vmatprep.subr.mxu0 %v4160
    %4212 = vmatpush1.msra.mxu0 %v4159
    %4213 = vmatprep.subr.mxu0 %v4163
    %4214 = vmatpush1.msra.mxu0 %v4162
    %4215 = vmatprep.subr.mxu0 %v4166
    %4216 = vmatpush1.msra.mxu0 %v4165
    %4217 = vmatprep.subr.mxu0 0.0
    %4218 = vmatpush1.msra.mxu0 0.0
    %4219 = vmatprep.subr.mxu0 0.0
    %4220 = vmatpush1.msra.mxu0 0.0
    %4221 = vmatprep.subr.mxu0 0.0
    %4222 = vmatpush1.msra.mxu0 0.0
    %4223 = vmatprep.subr.mxu0 0.0
    %4224 = vmatpush1.msra.mxu0 0.0
    %4225 = vmatprep.subr.mxu0 0.0
    %4226 = vmatpush1.msra.mxu0 0.0
    %4227 = vmatprep.subr.mxu0 0.0
    %4228 = vmatpush1.msra.mxu0 0.0
    %4229 = vmatprep.subr.mxu0 0.0
    %4230 = vmatpush1.msra.mxu0 0.0
    %4231 = vmatprep.subr.mxu0 0.0
    %4232 = vmatpush1.msra.mxu0 0.0
    %4233 = vmatprep.subr.mxu0 0.0
    %4234 = vmatpush1.msra.mxu0 0.0
    %4235 = vmatprep.subr.mxu0 0.0
    %4236 = vmatpush1.msra.mxu0 0.0
    %4237 = vmatprep.subr.mxu0 0.0
    %4238 = vmatpush1.msra.mxu0 0.0
    %4239 = vmatprep.subr.mxu0 0.0
    %4240 = vmatpush1.msra.mxu0 0.0
    %4241 = vmatprep.subr.mxu0 0.0
    %4242 = vmatpush1.msra.mxu0 0.0
    %4243 = vmatprep.subr.mxu0 0.0
    %4244 = vmatpush1.msra.mxu0 0.0
    %4245 = vmatprep.subr.mxu0 0.0
    %4246 = vmatpush1.msra.mxu0 0.0
    %4247 = vmatprep.subr.mxu0 0.0
    %4248 = vmatpush1.msra.mxu0 0.0
    %4249 = vmatprep.mubr.f32.mxu0 0.0
    %4250 = vmatmul.mubr.f32.gmra.mrb[0].mxu0 %v3908
    %v4251 = vpop.f32.mrb[0].mxu0
    %v4252 = vadd.f32 %v4173, %v4251
    %v4253 = vpop.f32.mrb[0].mxu0
    %v4254 = vadd.f32 %v4177, %v4253
    %4255 = vdwg.mxu0
    %4256 = vmatprep.subr.mxu0 0.0
    %4257 = vmatpush1.msra.mxu0 %v4122
    %4258 = vmatprep.subr.mxu0 0.0
    %4259 = vmatpush1.msra.mxu0 %v4125
    %4260 = vmatprep.subr.mxu0 0.0
    %4261 = vmatpush1.msra.mxu0 %v4128
    %4262 = vmatprep.subr.mxu0 0.0
    %4263 = vmatpush1.msra.mxu0 %v4131
    %4264 = vmatprep.subr.mxu0 0.0
    %4265 = vmatpush1.msra.mxu0 %v4134
    %4266 = vmatprep.subr.mxu0 0.0
    %4267 = vmatpush1.msra.mxu0 %v4137
    %4268 = vmatprep.subr.mxu0 0.0
    %4269 = vmatpush1.msra.mxu0 %v4140
    %4270 = vmatprep.subr.mxu0 0.0
    %4271 = vmatpush1.msra.mxu0 %v4143
    %4272 = vmatprep.subr.mxu0 0.0
    %4273 = vmatpush1.msra.mxu0 %v4146
    %4274 = vmatprep.subr.mxu0 0.0
    %4275 = vmatpush1.msra.mxu0 %v4149
    %4276 = vmatprep.subr.mxu0 0.0
    %4277 = vmatpush1.msra.mxu0 %v4152
    %4278 = vmatprep.subr.mxu0 0.0
    %4279 = vmatpush1.msra.mxu0 %v4155
    %4280 = vmatprep.subr.mxu0 0.0
    %4281 = vmatpush1.msra.mxu0 %v4158
    %4282 = vmatprep.subr.mxu0 0.0
    %4283 = vmatpush1.msra.mxu0 %v4161
    %4284 = vmatprep.subr.mxu0 0.0
    %4285 = vmatpush1.msra.mxu0 %v4164
    %4286 = vmatprep.subr.mxu0 0.0
    %4287 = vmatpush1.msra.mxu0 %v4167
    %4288 = vmatprep.subr.mxu0 0.0
    %4289 = vmatpush1.msra.mxu0 0.0
    %4290 = vmatprep.subr.mxu0 0.0
    %4291 = vmatpush1.msra.mxu0 0.0
    %4292 = vmatprep.subr.mxu0 0.0
    %4293 = vmatpush1.msra.mxu0 0.0
    %4294 = vmatprep.subr.mxu0 0.0
    %4295 = vmatpush1.msra.mxu0 0.0
    %4296 = vmatprep.subr.mxu0 0.0
    %4297 = vmatpush1.msra.mxu0 0.0
    %4298 = vmatprep.subr.mxu0 0.0
    %4299 = vmatpush1.msra.mxu0 0.0
    %4300 = vmatprep.subr.mxu0 0.0
    %4301 = vmatpush1.msra.mxu0 0.0
    %4302 = vmatprep.subr.mxu0 0.0
    %4303 = vmatpush1.msra.mxu0 0.0
    %4304 = vmatprep.subr.mxu0 0.0
    %4305 = vmatpush1.msra.mxu0 0.0
    %4306 = vmatprep.subr.mxu0 0.0
    %4307 = vmatpush1.msra.mxu0 0.0
    %4308 = vmatprep.subr.mxu0 0.0
    %4309 = vmatpush1.msra.mxu0 0.0
    %4310 = vmatprep.subr.mxu0 0.0
    %4311 = vmatpush1.msra.mxu0 0.0
    %4312 = vmatprep.subr.mxu0 0.0
    %4313 = vmatpush1.msra.mxu0 0.0
    %4314 = vmatprep.subr.mxu0 0.0
    %4315 = vmatpush1.msra.mxu0 0.0
    %4316 = vmatprep.subr.mxu0 0.0
    %4317 = vmatpush1.msra.mxu0 0.0
    %4318 = vmatprep.subr.mxu0 0.0
    %4319 = vmatpush1.msra.mxu0 0.0
    %4320 = vmatprep.mubr.f32.mxu0 0.0
    %4321 = vmatmul.mubr.f32.gmra.mrb[0].mxu0 %v3908
    %v4322 = vpop.f32.mrb[0].mxu0
    %v4323 = vadd.f32 %v4181, %v4322
    %v4324 = vpop.f32.mrb[0].mxu0
    %4325 = vdwg.mxu0
    %v4326 = vadd.f32 %v4046, %v4252
    %v4327 = vxor.u32 %v4326, 2147483648
    %v4328 = vmul.f32 %v4327, 1.442695
    %v4329 = vpow.pop %v4328
    %v4330 = vadd.f32 %v4329, 1.0
    %v4331 = vrcp.pop %v4330
    %v4332 = vmul.f32 1.0, %v4331
    %v4333 = vadd.f32 %v4048, %v4254
    %v4334 = vxor.u32 %v4333, 2147483648
    %v4335 = vmul.f32 %v4334, 1.442695
    %v4336 = vpow.pop %v4335
    %v4337 = vadd.f32 %v4336, 1.0
    %v4338 = vrcp.pop %v4337
    %v4339 = vmul.f32 1.0, %v4338
    %v4340 = vmul.f32 %v4332, %v4323
    %v4341 = vadd.f32 %v4117, %v4340
    %v4342 = vtanh.pop %v4341
    %v4343 = vsub.f32 1.0, %v4339
    %v4344 = vmul.f32 %v4343, %v4342
    %v4345 = vmul.f32 %v4339, %v3908
    %v4346 = vadd.f32 %v4344, %v4345
    %v4347 = vld [vmem:[#allocation10] sm:$0xff]
    %v4348 = vld [vmem:[#allocation10 + $0x8] sm:$0xff]
    %v4349 = vld [vmem:[#allocation10 + $0x10] sm:$0xff]
    %v4350 = vld [vmem:[#allocation10 + $0x18] sm:$0xff]
    %v4351 = vld [vmem:[#allocation10 + $0x20] sm:$0xff]
    %v4352 = vld [vmem:[#allocation10 + $0x28] sm:$0xff]
    %v4353 = vld [vmem:[#allocation10 + $0x30] sm:$0xff]
    %v4354 = vld [vmem:[#allocation10 + $0x38] sm:$0xff]
    %v4355 = vld [vmem:[#allocation10 + $0x40] sm:$0xff]
    %v4356 = vld [vmem:[#allocation10 + $0x48] sm:$0xff]
    %v4357 = vld [vmem:[#allocation10 + $0x50] sm:$0xff]
    %v4358 = vld [vmem:[#allocation10 + $0x58] sm:$0xff]
    %v4359 = vld [vmem:[#allocation10 + $0x60] sm:$0xff]
    %v4360 = vld [vmem:[#allocation10 + $0x68] sm:$0xff]
    %v4361 = vld [vmem:[#allocation10 + $0x70] sm:$0xff]
    %v4362 = vld [vmem:[#allocation10 + $0x78] sm:$0xff]
    %v4363 = vld [vmem:[%s8] sm:$0x1]
    %4364 = vmatprep.subr.mxu0 0.0
    %4365 = vmatpush1.msra.mxu0 %v4347
    %4366 = vmatprep.subr.mxu0 0.0
    %4367 = vmatpush1.msra.mxu0 %v4348
    %4368 = vmatprep.subr.mxu0 0.0
    %4369 = vmatpush1.msra.mxu0 %v4349
    %4370 = vmatprep.subr.mxu0 0.0
    %4371 = vmatpush1.msra.mxu0 %v4350
    %4372 = vmatprep.subr.mxu0 0.0
    %4373 = vmatpush1.msra.mxu0 %v4351
    %4374 = vmatprep.subr.mxu0 0.0
    %4375 = vmatpush1.msra.mxu0 %v4352
    %4376 = vmatprep.subr.mxu0 0.0
    %4377 = vmatpush1.msra.mxu0 %v4353
    %4378 = vmatprep.subr.mxu0 0.0
    %4379 = vmatpush1.msra.mxu0 %v4354
    %4380 = vmatprep.subr.mxu0 0.0
    %4381 = vmatpush1.msra.mxu0 %v4355
    %4382 = vmatprep.subr.mxu0 0.0
    %4383 = vmatpush1.msra.mxu0 %v4356
    %4384 = vmatprep.subr.mxu0 0.0
    %4385 = vmatpush1.msra.mxu0 %v4357
    %4386 = vmatprep.subr.mxu0 0.0
    %4387 = vmatpush1.msra.mxu0 %v4358
    %4388 = vmatprep.subr.mxu0 0.0
    %4389 = vmatpush1.msra.mxu0 %v4359
    %4390 = vmatprep.subr.mxu0 0.0
    %4391 = vmatpush1.msra.mxu0 %v4360
    %4392 = vmatprep.subr.mxu0 0.0
    %4393 = vmatpush1.msra.mxu0 %v4361
    %4394 = vmatprep.subr.mxu0 0.0
    %4395 = vmatpush1.msra.mxu0 %v4362
    %4396 = vmatprep.subr.mxu0 0.0
    %4397 = vmatpush1.msra.mxu0 0.0
    %4398 = vmatprep.subr.mxu0 0.0
    %4399 = vmatpush1.msra.mxu0 0.0
    %4400 = vmatprep.subr.mxu0 0.0
    %4401 = vmatpush1.msra.mxu0 0.0
    %4402 = vmatprep.subr.mxu0 0.0
    %4403 = vmatpush1.msra.mxu0 0.0
    %4404 = vmatprep.subr.mxu0 0.0
    %4405 = vmatpush1.msra.mxu0 0.0
    %4406 = vmatprep.subr.mxu0 0.0
    %4407 = vmatpush1.msra.mxu0 0.0
    %4408 = vmatprep.subr.mxu0 0.0
    %4409 = vmatpush1.msra.mxu0 0.0
    %4410 = vmatprep.subr.mxu0 0.0
    %4411 = vmatpush1.msra.mxu0 0.0
    %4412 = vmatprep.subr.mxu0 0.0
    %4413 = vmatpush1.msra.mxu0 0.0
    %4414 = vmatprep.subr.mxu0 0.0
    %4415 = vmatpush1.msra.mxu0 0.0
    %4416 = vmatprep.subr.mxu0 0.0
    %4417 = vmatpush1.msra.mxu0 0.0
    %4418 = vmatprep.subr.mxu0 0.0
    %4419 = vmatpush1.msra.mxu0 0.0
    %4420 = vmatprep.subr.mxu0 0.0
    %4421 = vmatpush1.msra.mxu0 0.0
    %4422 = vmatprep.subr.mxu0 0.0
    %4423 = vmatpush1.msra.mxu0 0.0
    %4424 = vmatprep.subr.mxu0 0.0
    %4425 = vmatpush1.msra.mxu0 0.0
    %4426 = vmatprep.subr.mxu0 0.0
    %4427 = vmatpush1.msra.mxu0 0.0
    %4428 = vmatprep.mubr.f32.mxu0 0.0
    %4429 = vmatmul.mubr.f32.gmra.mrb[0].mxu0 %v4346
    %v4430 = vpop.f32.mrb[0].mxu0
    %v4431 = vadd.f32 %v4363, %v4430
    %v4432 = vpop.f32.mrb[0].mxu0
    %4433 = vdwg.mxu0
    %v4434 = vsel %vm625, %v4431, -inf
    %4435 = vmax.xlane.f32.xlu0 %v4434
    %v4436 = vpop.xlane.xlu0 %4435
    %v4437 = vsub.f32 %v4431, %v4436
    %v4438 = vmul.f32 %v4437, 1.442695
    %v4439 = vpow.pop %v4438
    %v4440 = vsel %vm625, %v4439, 0.0
    %4441 = vadd.xlane.f32.xlu0 %v4440
    %v4442 = vpop.xlane.xlu0 %4441
    %v4443 = vlog2.pop %v4442
    %v4444 = vmul.f32 %v4443, 0.6931472
    %v4445 = vadd.f32 %v4436, %v4444
    %v4446 = vsub.f32 %v4431, %v4445
    %4447 = vst [vmem:[#allocation12 + $0x7] sm:$0x1] %v4446
    %p4448 = scmp.lt.s32.totalorder %s3909, 1
    %s4449 = scalar_select %p4448, 1, 0
    %v4450 = vstv %s4449
    %vm4451 = vcmp.eq.s32.totalorder %v4450, 1
    %v4452 = vsel %vm4451, %v4346, %v3908
    %4453 = vst [vmem:[#allocation13] sm:$0x1] %v4452
    // Predicated region
    $region54: #{tpu_custom_call.1} parent=1 // pred_check
      _
    $region55: #{tpu_custom_call.1} parent=1 // pred_check_branch
      %4455 = sbr.rel (0) target = $region57
    $region56: #{tpu_custom_call.1} parent=1 // pred_region
      %s4457 = ssub.s32 128, 128
      %4458 = vsyncadd [#allocation6], %s4457
      %s4460 = sshll.u32 [#allocation12], 4
      %s4461 = int_to_ptr.vmem [resolvable:$true] %s4460
      %4463 = dma.vmem_to_hbm [thread:$0]  %s4461, 128, %s9, [#allocation6]
    $region57: #{tpu_custom_call.1} parent=1 // pred_fallthru
      _
    // Predicated region
    $region58: #{tpu_custom_call.1} parent=1 // pred_check
      _
    $region59: #{tpu_custom_call.1} parent=1 // pred_check_branch
      %4465 = sbr.rel (0) target = $region61
    $region60: #{tpu_custom_call.1} parent=1 // pred_region
      %s4467 = ssub.s32 16, 16
      %4468 = vsyncadd [#allocation14], %s4467
      %s4470 = sshll.u32 [#allocation13], 4
      %s4471 = int_to_ptr.vmem [resolvable:$true] %s4470
      %4473 = dma.vmem_to_hbm [thread:$0]  %s4471, 16, %s10, [#allocation14]
    $region61: #{tpu_custom_call.1} parent=1 // pred_fallthru
      _
    // Predicated region
    $region62: #{tpu_custom_call.1} parent=1 // pred_check
      _
    $region63: #{tpu_custom_call.1} parent=1 // pred_check_branch
      %4475 = sbr.rel (0) target = $region65
    $region64: #{tpu_custom_call.1} parent=1 // pred_region
      %4476 = dma.done [#allocation6], 128
    $region65: #{tpu_custom_call.1} parent=1 // pred_fallthru
      _
    // Predicated region
    $region66: #{tpu_custom_call.1} parent=1 // pred_check
      _
    $region67: #{tpu_custom_call.1} parent=1 // pred_check_branch
      %4478 = sbr.rel (0) target = $region69
    $region68: #{tpu_custom_call.1} parent=1 // pred_region
      %4479 = dma.done [#allocation14], 16
    $region69: #{tpu_custom_call.1} parent=1 // pred_fallthru
      _
    %4480 = vsyncpa [#allocation5], 1
    %4481 = vsyncpa [#allocation8], 1
    %4482 = vsyncpa [#allocation11], 1
    %4483 = vsyncpa [#allocation6], 1
    %4484 = vsyncpa [#allocation14], 1

</llo_original>
